<compile_context>
chip_gen: v5e
topology: v5e:2x2
jax: 0.10.0
libtpu: 0.0.40
codegen_flags: <defaults>
</compile_context>

<pallas_src>
import math
import jax
import jax.numpy as jnp
from jax.experimental import pallas as pl
from jax.experimental.pallas import tpu as pltpu

EPS = 1e-5


# ---------------------------------------------------------------------------
# Hardware-aware helpers
# ---------------------------------------------------------------------------
def _vmem_capacity_bytes():
    try:
        return int(pltpu.get_tpu_info().vmem_capacity_bytes)
    except Exception:
        return 64 << 20          # conservative fallback (v7x per-core VMEM)


def _vmem_limit(need_bytes):
    """Request what we need (+slack), capped below physical VMEM capacity."""
    cap = _vmem_capacity_bytes()
    limit = int(need_bytes) + (4 << 20)
    return int(min(max(limit, 16 << 20), int(cap * 0.8)))


def _pick_tb(batch, vmem_cap):
    """Generation-aware batch tile for the tiled path.

    v7x-class (<=64 MiB/core, 2 TCs): want >= 4 tiles so each core pipelines
    DMA against compute.  v5e/v6e (128 MiB, 1 TC): large tiles to amortize the
    ~0.35 us per-grid-step overhead.
    """
    target = max(batch // 4, 128) if vmem_cap <= (64 << 20) else 1024
    target = min(target, batch)
    best = None
    t = 8
    while t <= target:
        if batch % t == 0:
            best = t
        t *= 2
    return best if best is not None else batch


def _tiled_compiler_params(varying_bytes, const_bytes):
    # Double-buffer only the per-tile (varying) blocks; constants counted once.
    need = 2 * int(varying_bytes) + int(const_bytes)
    return pltpu.CompilerParams(
        dimension_semantics=("parallel",),      # independent batch tiles
        vmem_limit_bytes=_vmem_limit(need))


def _feature_mean_block(h4):
    """Feature mean -> lane-dense (8, tile) f32 block via the MXU."""
    n4 = h4.shape[1]
    ones = jnp.full((8, n4), 1.0 / n4, jnp.bfloat16)
    return jax.lax.dot_general(
        ones, h4.astype(jnp.bfloat16), (((1,), (1,)), ((), ())),
        preferred_element_type=jnp.float32)


# ---------------------------------------------------------------------------
# Fused path: one pallas_call, whole batch resident in VMEM
# ---------------------------------------------------------------------------
def _fused_kernel(x_ref, w1_ref, b1_ref, g1_ref, be1_ref,
                  w2_ref, b2_ref, g2_ref, be2_ref,
                  w3_ref, b3_ref, w4_ref, b4_ref, o_ref):
    inv_b = 1.0 / x_ref.shape[0]

    def bn_relu(acc, g, be):
        # Batch statistics straight from the f32 accumulator.
        mean = jnp.sum(acc, axis=0, keepdims=True) * inv_b
        var = jnp.sum(acc * acc, axis=0, keepdims=True) * inv_b - mean * mean
        var = jnp.maximum(var, 0.0)              # guard one-pass cancellation
        scale = g * jax.lax.rsqrt(var + EPS)
        return jnp.maximum(acc * scale + (be - mean * scale), 0.0)

    h1 = jnp.dot(x_ref[...], w1_ref[...],
                 preferred_element_type=jnp.float32) + b1_ref[...]
    a1 = bn_relu(h1, g1_ref[...], be1_ref[...])
    # dropout: identity (eval semantics)
    h2 = jnp.dot(a1.astype(jnp.bfloat16), w2_ref[...],
                 preferred_element_type=jnp.float32) + b2_ref[...]
    a2 = bn_relu(h2, g2_ref[...], be2_ref[...])
    # dropout: identity (eval semantics)
    h3 = jnp.dot(a2.astype(jnp.bfloat16), w3_ref[...],
                 preferred_element_type=jnp.float32) + b3_ref[...]
    h3 = jnp.maximum(h3, 0.0)
    h4 = jnp.dot(h3.astype(jnp.bfloat16), w4_ref[...],
                 preferred_element_type=jnp.float32) + b4_ref[...]
    h4 = jax.nn.sigmoid(h4)
    o_ref[...] = _feature_mean_block(h4)


def net_forward_fused(x, params):
    (w1, b1, g1, be1, w2, b2, g2, be2, w3, b3, w4, b4) = params
    B, D = x.shape
    H1, H2, H3, H4 = w1.shape[1], w2.shape[1], w3.shape[1], w4.shape[1]
    assert B % 8 == 0, "batch must be 8-aligned"
    for h in (D, H1, H2, H3, H4):
        assert h % 128 == 0, "feature dims must be lane-aligned (128)"

    bf16, f32 = jnp.bfloat16, jnp.float32
    xb = x.astype(bf16)
    w1b, w2b, w3b, w4b = (w.astype(bf16) for w in (w1, w2, w3, w4))

    weight_bytes = 2 * (D * H1 + H1 * H2 + H2 * H3 + H3 * H4)
    act_bytes = 2 * B * D + 4 * B * (H1 + H2 + H3 + H4) + 4 * 8 * B
    need = weight_bytes + act_bytes

    out = pl.pallas_call(
        _fused_kernel,
        out_shape=jax.ShapeDtypeStruct((8, B), f32),
        compiler_params=pltpu.CompilerParams(
            vmem_limit_bytes=_vmem_limit(2 * need)),
        cost_estimate=pl.CostEstimate(
            flops=2 * B * (D * H1 + H1 * H2 + H2 * H3 + H3 * H4 + 8 * H4),
            transcendentals=B * H4 + 2 * (H1 + H2),
            bytes_accessed=need),
    )(xb, w1b, b1, g1, be1, w2b, b2, g2, be2, w3b, b3, w4b, b4)
    return out[0, :]


# ---------------------------------------------------------------------------
# Tiled path (large B): three pallas_calls over independent batch tiles
# ---------------------------------------------------------------------------
def _fc_stats_kernel(x_ref, w_ref, b_ref, h_ref, stats_ref):
    """h = x @ W + b (bf16 MXU in, f32 acc); emit per-tile [sum; sum_sq]."""
    acc = jnp.dot(x_ref[...], w_ref[...],
                  preferred_element_type=jnp.float32) + b_ref[...]
    h_ref[...] = acc.astype(jnp.bfloat16)
    # Statistics from the f32 accumulator (not the bf16-rounded activation).
    stats_ref[0:1, :] = jnp.sum(acc, axis=0, keepdims=True)
    stats_ref[1:2, :] = jnp.sum(acc * acc, axis=0, keepdims=True)


def _bn_relu_fc_stats_kernel(h_ref, scale_ref, shift_ref, w_ref, b_ref,
                             o_ref, stats_ref):
    """(folded BN) -> ReLU -> [dropout=identity] -> fc; emit partial stats."""
    a = h_ref[...].astype(jnp.float32) * scale_ref[...] + shift_ref[...]
    a = jnp.maximum(a, 0.0)
    acc = jnp.dot(a.astype(jnp.bfloat16), w_ref[...],
                  preferred_element_type=jnp.float32) + b_ref[...]
    o_ref[...] = acc.astype(jnp.bfloat16)
    stats_ref[0:1, :] = jnp.sum(acc, axis=0, keepdims=True)
    stats_ref[1:2, :] = jnp.sum(acc * acc, axis=0, keepdims=True)


def _bn_relu_tail_kernel(h_ref, scale_ref, shift_ref, w3_ref, b3_ref,
                         w4_ref, b4_ref, o_ref):
    """(folded BN)->ReLU->fc3->ReLU->fc4->sigmoid->feature mean (8, tb)."""
    a = h_ref[...].astype(jnp.float32) * scale_ref[...] + shift_ref[...]
    a = jnp.maximum(a, 0.0)
    h3 = jnp.dot(a.astype(jnp.bfloat16), w3_ref[...],
                 preferred_element_type=jnp.float32) + b3_ref[...]
    h3 = jnp.maximum(h3, 0.0)
    h4 = jnp.dot(h3.astype(jnp.bfloat16), w4_ref[...],
                 preferred_element_type=jnp.float32) + b4_ref[...]
    h4 = jax.nn.sigmoid(h4)
    o_ref[...] = _feature_mean_block(h4)


def _fold_bn(partial, gamma, beta, batch):
    """Fold global batch statistics into a per-feature affine (scale, shift).

    partial: [num_tiles, 2, H] with row 0 = per-tile sum, row 1 = sum of sq.
    """
    s = jnp.sum(partial[:, 0, :], axis=0)
    sq = jnp.sum(partial[:, 1, :], axis=0)
    mean = s / batch
    var = jnp.maximum(sq / batch - mean * mean, 0.0)   # clamp cancellation
    rstd = jax.lax.rsqrt(var + EPS)
    scale = gamma * rstd[None, :]
    shift = beta - mean[None, :] * scale
    return scale, shift


def net_forward_tiled(x, params, *, tb=None):
    (w1, b1, g1, be1, w2, b2, g2, be2, w3, b3, w4, b4) = params
    B, D = x.shape
    H1, H2, H3, H4 = w1.shape[1], w2.shape[1], w3.shape[1], w4.shape[1]
    if tb is None:
        tb = _pick_tb(B, _vmem_capacity_bytes())
    tb = min(tb, B)
    assert B % tb == 0 and tb % 8 == 0, "batch must tile evenly (8-aligned)"
    for h in (D, H1, H2, H3, H4):
        assert h % 128 == 0, "feature dims must be lane-aligned (128)"
    nb = B // tb

    f32, bf16 = jnp.float32, jnp.bfloat16
    xb = x.astype(bf16)
    w1b, w2b, w3b, w4b = (w.astype(bf16) for w in (w1, w2, w3, w4))

    # ---- fc1 (+ per-tile BN1 partial statistics) --------------------------
    h1, p1 = pl.pallas_call(
        _fc_stats_kernel,
        grid=(nb,),
        in_specs=[
            pl.BlockSpec((tb, D), lambda i: (i, 0)),
            pl.BlockSpec((D, H1), lambda i: (0, 0)),   # weights VMEM-resident
            pl.BlockSpec((1, H1), lambda i: (0, 0)),
        ],
        out_specs=(
            pl.BlockSpec((tb, H1), lambda i: (i, 0)),
            pl.BlockSpec((None, 2, H1), lambda i: (i, 0, 0)),
        ),
        out_shape=(
            jax.ShapeDtypeStruct((B, H1), bf16),
            jax.ShapeDtypeStruct((nb, 2, H1), f32),
        ),
        compiler_params=_tiled_compiler_params(
            tb * D * 2 + tb * H1 * 2 + 2 * H1 * 4, D * H1 * 2 + H1 * 4),
        cost_estimate=pl.CostEstimate(
            flops=2 * B * D * H1, transcendentals=0,
            bytes_accessed=(B * D * 2 + D * H1 * 2 + H1 * 4
                            + B * H1 * 2 + nb * 2 * H1 * 4)),
    )(xb, w1b, b1)
    scale1, shift1 = _fold_bn(p1, g1, be1, B)

    # ---- bn1 + relu + fc2 (+ per-tile BN2 partial statistics) -------------
    h2, p2 = pl.pallas_call(
        _bn_relu_fc_stats_kernel,
        grid=(nb,),
        in_specs=[
            pl.BlockSpec((tb, H1), lambda i: (i, 0)),
            pl.BlockSpec((1, H1), lambda i: (0, 0)),
            pl.BlockSpec((1, H1), lambda i: (0, 0)),
            pl.BlockSpec((H1, H2), lambda i: (0, 0)),
            pl.BlockSpec((1, H2), lambda i: (0, 0)),
        ],
        out_specs=(
            pl.BlockSpec((tb, H2), lambda i: (i, 0)),
            pl.BlockSpec((None, 2, H2), lambda i: (i, 0, 0)),
        ),
        out_shape=(
            jax.ShapeDtypeStruct((B, H2), bf16),
            jax.ShapeDtypeStruct((nb, 2, H2), f32),
        ),
        compiler_params=_tiled_compiler_params(
            tb * H1 * 2 + tb * H2 * 2 + 2 * H2 * 4,
            2 * H1 * 4 + H1 * H2 * 2 + H2 * 4),
        cost_estimate=pl.CostEstimate(
            flops=2 * B * H1 * H2, transcendentals=0,
            bytes_accessed=(B * H1 * 2 + 2 * H1 * 4 + H1 * H2 * 2 + H2 * 4
                            + B * H2 * 2 + nb * 2 * H2 * 4)),
    )(h1, scale1, shift1, w2b, b2)
    scale2, shift2 = _fold_bn(p2, g2, be2, B)

    # ---- bn2 + relu + fc3 + relu + fc4 + sigmoid + feature mean -----------
    out = pl.pallas_call(
        _bn_relu_tail_kernel,
        grid=(nb,),
        in_specs=[
            pl.BlockSpec((tb, H2), lambda i: (i, 0)),
            pl.BlockSpec((1, H2), lambda i: (0, 0)),
            pl.BlockSpec((1, H2), lambda i: (0, 0)),
            pl.BlockSpec((H2, H3), lambda i: (0, 0)),
            pl.BlockSpec((1, H3), lambda i: (0, 0)),
            pl.BlockSpec((H3, H4), lambda i: (0, 0)),
            pl.BlockSpec((1, H4), lambda i: (0, 0)),
        ],
        out_specs=pl.BlockSpec((8, tb), lambda i: (0, i)),
        out_shape=jax.ShapeDtypeStruct((8, B), f32),
        compiler_params=_tiled_compiler_params(
            tb * H2 * 2 + 8 * tb * 4,
            2 * H2 * 4 + H2 * H3 * 2 + H3 * 4 + H3 * H4 * 2 + H4 * 4),
        cost_estimate=pl.CostEstimate(
            flops=2 * B * (H2 * H3 + H3 * H4 + 8 * H4),
            transcendentals=B * H4,
            bytes_accessed=(B * H2 * 2 + 2 * H2 * 4 + H2 * H3 * 2 + H3 * 4
                            + H3 * H4 * 2 + H4 * 4 + 8 * B * 4)),
    )(h2, scale2, shift2, w3b, b3, w4b, b4)

    return out[0, :]


# ---------------------------------------------------------------------------
# Dispatcher: fuse everything when the batch fits VMEM, tile otherwise
# ---------------------------------------------------------------------------
def net_forward(x, params, *, tb=None):
    (w1, b1, g1, be1, w2, b2, g2, be2, w3, b3, w4, b4) = params
    B, D = x.shape
    H1, H2, H3, H4 = w1.shape[1], w2.shape[1], w3.shape[1], w4.shape[1]
    weight_bytes = 2 * (D * H1 + H1 * H2 + H2 * H3 + H3 * H4)
    act_bytes = 2 * B * D + 4 * B * (H1 + H2 + H3 + H4) + 4 * 8 * B
    cap = _vmem_capacity_bytes()
    if tb is None and 2 * (weight_bytes + act_bytes) <= int(cap * 0.4):
        return net_forward_fused(x, params)
    return net_forward_tiled(x, params, tb=tb)


# ---------------------------------------------------------------------------
# Params / references
# ---------------------------------------------------------------------------
def init_params(key, input_size, m1, m2, m3, m4):
    """PyTorch-style Linear init; BN gamma=1, beta=0.

    Linear weights are [in, out] (transposed vs. PyTorch's [out, in]);
    biases / BN params are [1, out], all float32.
    """
    h1, h2, h3, h4 = (m1 * input_size, m2 * input_size,
                      m3 * input_size, m4 * input_size)

    def linear(key, fan_in, fan_out):
        kw, kb = jax.random.split(key)
        bound = 1.0 / math.sqrt(fan_in)
        w = jax.random.uniform(kw, (fan_in, fan_out), jnp.float32, -bound, bound)
        b = jax.random.uniform(kb, (1, fan_out), jnp.float32, -bound, bound)
        return w, b

    k1, k2, k3, k4 = jax.random.split(key, 4)
    w1, b1 = linear(k1, input_size, h1)
    w2, b2 = linear(k2, h1, h2)
    w3, b3 = linear(k3, h2, h3)
    w4, b4 = linear(k4, h3, h4)

    g1, be1 = jnp.ones((1, h1), jnp.float32), jnp.zeros((1, h1), jnp.float32)
    g2, be2 = jnp.ones((1, h2), jnp.float32), jnp.zeros((1, h2), jnp.float32)
    return (w1, b1, g1, be1, w2, b2, g2, be2, w3, b3, w4, b4)


def net_forward_ref_mirror(x, params):
    """Pure-JAX reference mirroring the fused-kernel numerics (bf16 MXU in,
    f32 accumulate, BN stats from the f32 pre-activations)."""
    (w1, b1, g1, be1, w2, b2, g2, be2, w3, b3, w4, b4) = params
    bf16 = jnp.bfloat16

    def fc(a, w, b):
        return jnp.dot(a.astype(bf16), w.astype(bf16),
                       preferred_element_type=jnp.float32) + b

    def bn_relu(h, g, be):
        mean = jnp.mean(h, axis=0, keepdims=True)
        var = jnp.maximum(jnp.mean(h * h, axis=0, keepdims=True)
                          - mean * mean, 0.0)
        scale = g * jax.lax.rsqrt(var + EPS)
        return jnp.maximum(h * scale + (be - mean * scale), 0.0)

    h1 = fc(x, w1, b1)
    a1 = bn_relu(h1, g1, be1)
    h2 = fc(a1, w2, b2)
    a2 = bn_relu(h2, g2, be2)
    h3 = jnp.maximum(fc(a2, w3, b3), 0.0)
    h4 = jax.nn.sigmoid(fc(h3, w4, b4))
    n4 = h4.shape[1]
    ones = jnp.full((n4,), 1.0 / n4, bf16)
    return jnp.dot(h4.astype(bf16), ones, preferred_element_type=jnp.float32)


def net_forward_ref_f32(x, params):
    """Plain float32 reference of the original PyTorch forward semantics."""
    (w1, b1, g1, be1, w2, b2, g2, be2, w3, b3, w4, b4) = params

    def bn(h, g, be):
        mu = jnp.mean(h, axis=0, keepdims=True)
        var = jnp.mean((h - mu) ** 2, axis=0, keepdims=True)
        return (h - mu) / jnp.sqrt(var + EPS) * g + be

    h = jax.nn.relu(bn(x @ w1 + b1, g1, be1))
    h = jax.nn.relu(bn(h @ w2 + b2, g2, be2))
    h = jax.nn.relu(h @ w3 + b3)
    h = jax.nn.sigmoid(h @ w4 + b4)
    return jnp.mean(h, axis=1)


if __name__ == "__main__":
    # TPU-aligned shapes: input_size=128, m=(2,2,1,1) -> hidden 256/256/128/128.
    input_size, m1, m2, m3, m4 = 128, 2, 2, 1, 1
    key = jax.random.PRNGKey(0)
    kx, kp = jax.random.split(key)
    params = init_params(kp, input_size, m1, m2, m3, m4)

    # --- small batch -> fused single-kernel path ---------------------------
    B1 = 256
    x1 = jax.random.normal(kx, (B1, input_size), jnp.float32)
    y1 = jax.block_until_ready(jax.jit(net_forward)(x1, params))
    assert y1.shape == (B1,)
    y1_mirror = net_forward_ref_mirror(x1, params)
    y1_f32 = net_forward_ref_f32(x1, params)
    err_m = float(jnp.max(jnp.abs(y1 - y1_mirror)))
    err_f = float(jnp.max(jnp.abs(y1 - y1_f32)))
    assert jnp.allclose(y1, y1_mirror, atol=5e-3, rtol=5e-3), ("mirror", err_m)
    assert jnp.allclose(y1, y1_f32, atol=2e-2, rtol=2e-2), ("f32", err_f)

    # --- larger batch -> batch-tiled 3-kernel path (4 grid steps) ----------
    B2 = 512
    x2 = jax.random.normal(jax.random.fold_in(kx, 1), (B2, input_size),
                           jnp.float32)
    tiled_fn = jax.jit(lambda xx: net_forward_tiled(xx, params, tb=128))
    y2 = jax.block_until_ready(tiled_fn(x2))
    assert y2.shape == (B2,)
    y2_f32 = net_forward_ref_f32(x2, params)
    err_t = float(jnp.max(jnp.abs(y2 - y2_f32)))
    assert jnp.allclose(y2, y2_f32, atol=2e-2, rtol=2e-2), ("tiled f32", err_t)

    print("KERNEL_OK")
</pallas_src>

<mosaic_0001>
module attributes {stable_mosaic.version = 11 : i64} {
  func.func @_fused_kernel(%arg0: memref<256x128xbf16, #tpu.memory_space<vmem>>, %arg1: memref<128x256xbf16, #tpu.memory_space<vmem>>, %arg2: memref<1x256xf32, #tpu.memory_space<vmem>>, %arg3: memref<1x256xf32, #tpu.memory_space<vmem>>, %arg4: memref<1x256xf32, #tpu.memory_space<vmem>>, %arg5: memref<256x256xbf16, #tpu.memory_space<vmem>>, %arg6: memref<1x256xf32, #tpu.memory_space<vmem>>, %arg7: memref<1x256xf32, #tpu.memory_space<vmem>>, %arg8: memref<1x256xf32, #tpu.memory_space<vmem>>, %arg9: memref<256x128xbf16, #tpu.memory_space<vmem>>, %arg10: memref<1x128xf32, #tpu.memory_space<vmem>>, %arg11: memref<128x128xbf16, #tpu.memory_space<vmem>>, %arg12: memref<1x128xf32, #tpu.memory_space<vmem>>, %arg13: memref<8x256xf32, #tpu.memory_space<vmem>>) attributes {dimension_semantics = [], scalar_prefetch = 0 : i64, scratch_operands = 0 : i64, tpu.core_type = #tpu.core_type<tc>} {
    %c0 = arith.constant 0 : index
    %c0_0 = arith.constant 0 : index
    %0 = vector.load %arg0[%c0, %c0_0] : memref<256x128xbf16, #tpu.memory_space<vmem>>, vector<256x128xbf16>
    %c0_1 = arith.constant 0 : index
    %c0_2 = arith.constant 0 : index
    %1 = vector.load %arg1[%c0_1, %c0_2] : memref<128x256xbf16, #tpu.memory_space<vmem>>, vector<128x256xbf16>
    %cst = arith.constant dense<0.000000e+00> : vector<256x256xf32>
    %2 = tpu.matmul %0, %1, %cst {dimension_numbers = #tpu.dot_dimension_numbers<[1], [0], [0], [1], [0, 0, 1, 1], [], []>} : vector<256x128xbf16>, vector<128x256xbf16>, vector<256x256xf32> -> vector<256x256xf32>
    %c0_3 = arith.constant 0 : index
    %c0_4 = arith.constant 0 : index
    %3 = vector.load %arg2[%c0_3, %c0_4] : memref<1x256xf32, #tpu.memory_space<vmem>>, vector<1x256xf32>
    %4 = vector.broadcast %3 : vector<1x256xf32> to vector<256x256xf32>
    %5 = arith.addf %2, %4 : vector<256x256xf32>
    %c0_5 = arith.constant 0 : index
    %c0_6 = arith.constant 0 : index
    %6 = vector.load %arg3[%c0_5, %c0_6] : memref<1x256xf32, #tpu.memory_space<vmem>>, vector<1x256xf32>
    %c0_7 = arith.constant 0 : index
    %c0_8 = arith.constant 0 : index
    %7 = vector.load %arg4[%c0_7, %c0_8] : memref<1x256xf32, #tpu.memory_space<vmem>>, vector<1x256xf32>
    %cst_9 = arith.constant dense<0.000000e+00> : vector<256xf32>
    %8 = vector.multi_reduction <add>, %5, %cst_9 [0] : vector<256x256xf32> to vector<256xf32>
    %9 = vector.shape_cast %8 : vector<256xf32> to vector<1x256xf32>
    %cst_10 = arith.constant 3.906250e-03 : f32
    %10 = vector.broadcast %cst_10 : f32 to vector<1x256xf32>
    %11 = arith.mulf %9, %10 : vector<1x256xf32>
    %12 = arith.mulf %5, %5 : vector<256x256xf32>
    %cst_11 = arith.constant dense<0.000000e+00> : vector<256xf32>
    %13 = vector.multi_reduction <add>, %12, %cst_11 [0] : vector<256x256xf32> to vector<256xf32>
    %14 = vector.shape_cast %13 : vector<256xf32> to vector<1x256xf32>
    %cst_12 = arith.constant 3.906250e-03 : f32
    %15 = vector.broadcast %cst_12 : f32 to vector<1x256xf32>
    %16 = arith.mulf %14, %15 : vector<1x256xf32>
    %17 = arith.mulf %11, %11 : vector<1x256xf32>
    %18 = arith.subf %16, %17 : vector<1x256xf32>
    %cst_13 = arith.constant 0.000000e+00 : f32
    %19 = vector.broadcast %cst_13 : f32 to vector<1x256xf32>
    %20 = arith.maximumf %18, %19 : vector<1x256xf32>
    %cst_14 = arith.constant 9.99999974E-6 : f32
    %21 = vector.broadcast %cst_14 : f32 to vector<1x256xf32>
    %22 = arith.addf %20, %21 : vector<1x256xf32>
    %23 = math.rsqrt %22 : vector<1x256xf32>
    %24 = arith.mulf %6, %23 : vector<1x256xf32>
    %25 = vector.broadcast %24 : vector<1x256xf32> to vector<256x256xf32>
    %26 = arith.mulf %5, %25 : vector<256x256xf32>
    %27 = arith.mulf %11, %24 : vector<1x256xf32>
    %28 = arith.subf %7, %27 : vector<1x256xf32>
    %29 = vector.broadcast %28 : vector<1x256xf32> to vector<256x256xf32>
    %30 = arith.addf %26, %29 : vector<256x256xf32>
    %cst_15 = arith.constant 0.000000e+00 : f32
    %31 = vector.broadcast %cst_15 : f32 to vector<256x256xf32>
    %32 = arith.maximumf %30, %31 : vector<256x256xf32>
    %33 = arith.truncf %32 : vector<256x256xf32> to vector<256x256xbf16>
    %c0_16 = arith.constant 0 : index
    %c0_17 = arith.constant 0 : index
    %34 = vector.load %arg5[%c0_16, %c0_17] : memref<256x256xbf16, #tpu.memory_space<vmem>>, vector<256x256xbf16>
    %cst_18 = arith.constant dense<0.000000e+00> : vector<256x256xf32>
    %35 = tpu.matmul %33, %34, %cst_18 {dimension_numbers = #tpu.dot_dimension_numbers<[1], [0], [0], [1], [0, 0, 1, 1], [], []>} : vector<256x256xbf16>, vector<256x256xbf16>, vector<256x256xf32> -> vector<256x256xf32>
    %c0_19 = arith.constant 0 : index
    %c0_20 = arith.constant 0 : index
    %36 = vector.load %arg6[%c0_19, %c0_20] : memref<1x256xf32, #tpu.memory_space<vmem>>, vector<1x256xf32>
    %37 = vector.broadcast %36 : vector<1x256xf32> to vector<256x256xf32>
    %38 = arith.addf %35, %37 : vector<256x256xf32>
    %c0_21 = arith.constant 0 : index
    %c0_22 = arith.constant 0 : index
    %39 = vector.load %arg7[%c0_21, %c0_22] : memref<1x256xf32, #tpu.memory_space<vmem>>, vector<1x256xf32>
    %c0_23 = arith.constant 0 : index
    %c0_24 = arith.constant 0 : index
    %40 = vector.load %arg8[%c0_23, %c0_24] : memref<1x256xf32, #tpu.memory_space<vmem>>, vector<1x256xf32>
    %cst_25 = arith.constant dense<0.000000e+00> : vector<256xf32>
    %41 = vector.multi_reduction <add>, %38, %cst_25 [0] : vector<256x256xf32> to vector<256xf32>
    %42 = vector.shape_cast %41 : vector<256xf32> to vector<1x256xf32>
    %cst_26 = arith.constant 3.906250e-03 : f32
    %43 = vector.broadcast %cst_26 : f32 to vector<1x256xf32>
    %44 = arith.mulf %42, %43 : vector<1x256xf32>
    %45 = arith.mulf %38, %38 : vector<256x256xf32>
    %cst_27 = arith.constant dense<0.000000e+00> : vector<256xf32>
    %46 = vector.multi_reduction <add>, %45, %cst_27 [0] : vector<256x256xf32> to vector<256xf32>
    %47 = vector.shape_cast %46 : vector<256xf32> to vector<1x256xf32>
    %cst_28 = arith.constant 3.906250e-03 : f32
    %48 = vector.broadcast %cst_28 : f32 to vector<1x256xf32>
    %49 = arith.mulf %47, %48 : vector<1x256xf32>
    %50 = arith.mulf %44, %44 : vector<1x256xf32>
    %51 = arith.subf %49, %50 : vector<1x256xf32>
    %cst_29 = arith.constant 0.000000e+00 : f32
    %52 = vector.broadcast %cst_29 : f32 to vector<1x256xf32>
    %53 = arith.maximumf %51, %52 : vector<1x256xf32>
    %cst_30 = arith.constant 9.99999974E-6 : f32
    %54 = vector.broadcast %cst_30 : f32 to vector<1x256xf32>
    %55 = arith.addf %53, %54 : vector<1x256xf32>
    %56 = math.rsqrt %55 : vector<1x256xf32>
    %57 = arith.mulf %39, %56 : vector<1x256xf32>
    %58 = vector.broadcast %57 : vector<1x256xf32> to vector<256x256xf32>
    %59 = arith.mulf %38, %58 : vector<256x256xf32>
    %60 = arith.mulf %44, %57 : vector<1x256xf32>
    %61 = arith.subf %40, %60 : vector<1x256xf32>
    %62 = vector.broadcast %61 : vector<1x256xf32> to vector<256x256xf32>
    %63 = arith.addf %59, %62 : vector<256x256xf32>
    %cst_31 = arith.constant 0.000000e+00 : f32
    %64 = vector.broadcast %cst_31 : f32 to vector<256x256xf32>
    %65 = arith.maximumf %63, %64 : vector<256x256xf32>
    %66 = arith.truncf %65 : vector<256x256xf32> to vector<256x256xbf16>
    %c0_32 = arith.constant 0 : index
    %c0_33 = arith.constant 0 : index
    %67 = vector.load %arg9[%c0_32, %c0_33] : memref<256x128xbf16, #tpu.memory_space<vmem>>, vector<256x128xbf16>
    %cst_34 = arith.constant dense<0.000000e+00> : vector<256x128xf32>
    %68 = tpu.matmul %66, %67, %cst_34 {dimension_numbers = #tpu.dot_dimension_numbers<[1], [0], [0], [1], [0, 0, 1, 1], [], []>} : vector<256x256xbf16>, vector<256x128xbf16>, vector<256x128xf32> -> vector<256x128xf32>
    %c0_35 = arith.constant 0 : index
    %c0_36 = arith.constant 0 : index
    %69 = vector.load %arg10[%c0_35, %c0_36] : memref<1x128xf32, #tpu.memory_space<vmem>>, vector<1x128xf32>
    %70 = vector.broadcast %69 : vector<1x128xf32> to vector<256x128xf32>
    %71 = arith.addf %68, %70 : vector<256x128xf32>
    %cst_37 = arith.constant 0.000000e+00 : f32
    %72 = vector.broadcast %cst_37 : f32 to vector<256x128xf32>
    %73 = arith.maximumf %71, %72 : vector<256x128xf32>
    %74 = arith.truncf %73 : vector<256x128xf32> to vector<256x128xbf16>
    %c0_38 = arith.constant 0 : index
    %c0_39 = arith.constant 0 : index
    %75 = vector.load %arg11[%c0_38, %c0_39] : memref<128x128xbf16, #tpu.memory_space<vmem>>, vector<128x128xbf16>
    %cst_40 = arith.constant dense<0.000000e+00> : vector<256x128xf32>
    %76 = tpu.matmul %74, %75, %cst_40 {dimension_numbers = #tpu.dot_dimension_numbers<[1], [0], [0], [1], [0, 0, 1, 1], [], []>} : vector<256x128xbf16>, vector<128x128xbf16>, vector<256x128xf32> -> vector<256x128xf32>
    %c0_41 = arith.constant 0 : index
    %c0_42 = arith.constant 0 : index
    %77 = vector.load %arg12[%c0_41, %c0_42] : memref<1x128xf32, #tpu.memory_space<vmem>>, vector<1x128xf32>
    %78 = vector.broadcast %77 : vector<1x128xf32> to vector<256x128xf32>
    %79 = arith.addf %76, %78 : vector<256x128xf32>
    %80 = arith.negf %79 : vector<256x128xf32>
    %81 = math.exp %80 : vector<256x128xf32>
    %cst_43 = arith.constant 1.000000e+00 : f32
    %82 = vector.broadcast %cst_43 : f32 to vector<256x128xf32>
    %83 = arith.addf %82, %81 : vector<256x128xf32>
    %84 = arith.divf %82, %83 : vector<256x128xf32>
    %cst_44 = arith.constant 7.812500e-03 : bf16
    %85 = vector.broadcast %cst_44 : bf16 to vector<8x128xbf16>
    %86 = arith.truncf %84 : vector<256x128xf32> to vector<256x128xbf16>
    %cst_45 = arith.constant dense<0.000000e+00> : vector<8x256xf32>
    %87 = tpu.matmul %85, %86, %cst_45 {dimension_numbers = #tpu.dot_dimension_numbers<[1], [1], [0], [0], [0, 0, 1, 0], [], []>} : vector<8x128xbf16>, vector<256x128xbf16>, vector<8x256xf32> -> vector<8x256xf32>
    %c0_46 = arith.constant 0 : index
    %c0_47 = arith.constant 0 : index
    %88 = vector.load %arg13[%c0_46, %c0_47] : memref<8x256xf32, #tpu.memory_space<vmem>>, vector<8x256xf32>
    tpu.vector_store %arg13[%c0_46, %c0_47], %87 {strides = array<i32>} : memref<8x256xf32, #tpu.memory_space<vmem>>, vector<8x256xf32>,
    return
  }
}

</mosaic_0001>

<llo_original>
// kernel: net_forward.1
$region0: #{net_forward.1}
  #allocation0 [shape = 'u32[]', space=smem, size = 0x4, offset = 0x4, fixed_abs, tag = 'smem constant byte address 0x4 - core index']
  #allocation1 [shape = 'u32[72,128]{1,0:T(1,128)}', space=vmem, size = 0x9000, scoped, tag = 'internal scratch']
  %s0 = inlined_call_operand.vmem [shape: bf16[256,128], index: 0, kind: input, shape index: {}]
  %s1 = inlined_call_operand.vmem [shape: bf16[128,256], index: 1, kind: input, shape index: {}]
  %s2 = inlined_call_operand.vmem [shape: f32[1,256], index: 2, kind: input, shape index: {}]
  %s3 = inlined_call_operand.vmem [shape: f32[1,256], index: 3, kind: input, shape index: {}]
  %s4 = inlined_call_operand.vmem [shape: f32[1,256], index: 4, kind: input, shape index: {}]
  %s5 = inlined_call_operand.vmem [shape: bf16[256,256], index: 5, kind: input, shape index: {}]
  %s6 = inlined_call_operand.vmem [shape: f32[1,256], index: 6, kind: input, shape index: {}]
  %s7 = inlined_call_operand.vmem [shape: f32[1,256], index: 7, kind: input, shape index: {}]
  %s8 = inlined_call_operand.vmem [shape: f32[1,256], index: 8, kind: input, shape index: {}]
  %s9 = inlined_call_operand.vmem [shape: bf16[256,128], index: 9, kind: input, shape index: {}]
  %s10 = inlined_call_operand.vmem [shape: f32[1,128], index: 10, kind: input, shape index: {}]
  %s11 = inlined_call_operand.vmem [shape: bf16[128,128], index: 11, kind: input, shape index: {}]
  %s12 = inlined_call_operand.vmem [shape: f32[1,128], index: 12, kind: input, shape index: {}]
  %s13 = inlined_call_operand.vmem [shape: f32[8,256], index: 13, kind: output, shape index: {}]
  %s14 = sld [smem:[#allocation0]]
  $region62: #{net_forward.1} parent=0
    _
  %s16 = ssub.s32 1, %s14
  %s17 = scalar_select 0, %s16, %s14
  // Predicated region
  $region2: #{net_forward.1} parent=0 // pred_check
    _
  $region3: #{net_forward.1} parent=0 // pred_check_branch
    %19 = sbr.rel (0) target = $region5
  $region4: #{net_forward.1} parent=0 // pred_region
    _
  $region5: #{net_forward.1} parent=0 // pred_fallthru
    _
  // Predicated region
  $region6: #{net_forward.1} parent=0 // pred_check
    _
  $region7: #{net_forward.1} parent=0 // pred_check_branch
    %21 = sbr.rel (0) target = $region9
  $region8: #{net_forward.1} parent=0 // pred_region
    _
  $region9: #{net_forward.1} parent=0 // pred_fallthru
    _
  // Predicated region
  $region10: #{net_forward.1} parent=0 // pred_check
    _
  $region11: #{net_forward.1} parent=0 // pred_check_branch
    %23 = sbr.rel (0) target = $region13
  $region12: #{net_forward.1} parent=0 // pred_region
    _
  $region13: #{net_forward.1} parent=0 // pred_fallthru
    _
  // Predicated region
  $region14: #{net_forward.1} parent=0 // pred_check
    _
  $region15: #{net_forward.1} parent=0 // pred_check_branch
    %25 = sbr.rel (0) target = $region17
  $region16: #{net_forward.1} parent=0 // pred_region
    _
  $region17: #{net_forward.1} parent=0 // pred_fallthru
    _
  // Predicated region
  $region18: #{net_forward.1} parent=0 // pred_check
    _
  $region19: #{net_forward.1} parent=0 // pred_check_branch
    %27 = sbr.rel (0) target = $region21
  $region20: #{net_forward.1} parent=0 // pred_region
    _
  $region21: #{net_forward.1} parent=0 // pred_fallthru
    _
  // Predicated region
  $region22: #{net_forward.1} parent=0 // pred_check
    _
  $region23: #{net_forward.1} parent=0 // pred_check_branch
    %29 = sbr.rel (0) target = $region25
  $region24: #{net_forward.1} parent=0 // pred_region
    _
  $region25: #{net_forward.1} parent=0 // pred_fallthru
    _
  // Predicated region
  $region26: #{net_forward.1} parent=0 // pred_check
    _
  $region27: #{net_forward.1} parent=0 // pred_check_branch
    %31 = sbr.rel (0) target = $region29
  $region28: #{net_forward.1} parent=0 // pred_region
    _
  $region29: #{net_forward.1} parent=0 // pred_fallthru
    _
  // Predicated region
  $region30: #{net_forward.1} parent=0 // pred_check
    _
  $region31: #{net_forward.1} parent=0 // pred_check_branch
    %33 = sbr.rel (0) target = $region33
  $region32: #{net_forward.1} parent=0 // pred_region
    _
  $region33: #{net_forward.1} parent=0 // pred_fallthru
    _
  // Predicated region
  $region34: #{net_forward.1} parent=0 // pred_check
    _
  $region35: #{net_forward.1} parent=0 // pred_check_branch
    %35 = sbr.rel (0) target = $region37
  $region36: #{net_forward.1} parent=0 // pred_region
    _
  $region37: #{net_forward.1} parent=0 // pred_fallthru
    _
  // Predicated region
  $region38: #{net_forward.1} parent=0 // pred_check
    _
  $region39: #{net_forward.1} parent=0 // pred_check_branch
    %37 = sbr.rel (0) target = $region41
  $region40: #{net_forward.1} parent=0 // pred_region
    _
  $region41: #{net_forward.1} parent=0 // pred_fallthru
    _
  // Predicated region
  $region42: #{net_forward.1} parent=0 // pred_check
    _
  $region43: #{net_forward.1} parent=0 // pred_check_branch
    %39 = sbr.rel (0) target = $region45
  $region44: #{net_forward.1} parent=0 // pred_region
    _
  $region45: #{net_forward.1} parent=0 // pred_fallthru
    _
  // Predicated region
  $region46: #{net_forward.1} parent=0 // pred_check
    _
  $region47: #{net_forward.1} parent=0 // pred_check_branch
    %41 = sbr.rel (0) target = $region49
  $region48: #{net_forward.1} parent=0 // pred_region
    _
  $region49: #{net_forward.1} parent=0 // pred_fallthru
    _
  // Predicated region
  $region50: #{net_forward.1} parent=0 // pred_check
    _
  $region51: #{net_forward.1} parent=0 // pred_check_branch
    %43 = sbr.rel (0) target = $region53
  $region52: #{net_forward.1} parent=0 // pred_region
    _
  $region53: #{net_forward.1} parent=0 // pred_fallthru
    _
  %v45 = vld [vmem:[%s0] sm:$0xf]
  %v46 = vld [vmem:[%s0 + $0x4] sm:$0xf]
  %v47 = vld [vmem:[%s0 + $0x8] sm:$0xf]
  %v48 = vld [vmem:[%s0 + $0xc] sm:$0xf]
  %v49 = vld [vmem:[%s0 + $0x10] sm:$0xf]
  %v50 = vld [vmem:[%s0 + $0x14] sm:$0xf]
  %v51 = vld [vmem:[%s0 + $0x18] sm:$0xf]
  %v52 = vld [vmem:[%s0 + $0x1c] sm:$0xf]
  %v53 = vld [vmem:[%s0 + $0x20] sm:$0xf]
  %v54 = vld [vmem:[%s0 + $0x24] sm:$0xf]
  %v55 = vld [vmem:[%s0 + $0x28] sm:$0xf]
  %v56 = vld [vmem:[%s0 + $0x2c] sm:$0xf]
  %v57 = vld [vmem:[%s0 + $0x30] sm:$0xf]
  %v58 = vld [vmem:[%s0 + $0x34] sm:$0xf]
  %v59 = vld [vmem:[%s0 + $0x38] sm:$0xf]
  %v60 = vld [vmem:[%s0 + $0x3c] sm:$0xf]
  %v61 = vld [vmem:[%s0 + $0x40] sm:$0xf]
  %v62 = vld [vmem:[%s0 + $0x44] sm:$0xf]
  %v63 = vld [vmem:[%s0 + $0x48] sm:$0xf]
  %v64 = vld [vmem:[%s0 + $0x4c] sm:$0xf]
  %v65 = vld [vmem:[%s0 + $0x50] sm:$0xf]
  %v66 = vld [vmem:[%s0 + $0x54] sm:$0xf]
  %v67 = vld [vmem:[%s0 + $0x58] sm:$0xf]
  %v68 = vld [vmem:[%s0 + $0x5c] sm:$0xf]
  %v69 = vld [vmem:[%s0 + $0x60] sm:$0xf]
  %v70 = vld [vmem:[%s0 + $0x64] sm:$0xf]
  %v71 = vld [vmem:[%s0 + $0x68] sm:$0xf]
  %v72 = vld [vmem:[%s0 + $0x6c] sm:$0xf]
  %v73 = vld [vmem:[%s0 + $0x70] sm:$0xf]
  %v74 = vld [vmem:[%s0 + $0x74] sm:$0xf]
  %v75 = vld [vmem:[%s0 + $0x78] sm:$0xf]
  %v76 = vld [vmem:[%s0 + $0x7c] sm:$0xf]
  %v77 = vld [vmem:[%s1] sm:$0xff]
  %v78 = vld [vmem:[%s1 + $0x8] sm:$0xff]
  %v79 = vld [vmem:[%s1 + $0x10] sm:$0xff]
  %v80 = vld [vmem:[%s1 + $0x18] sm:$0xff]
  %v81 = vld [vmem:[%s1 + $0x20] sm:$0xff]
  %v82 = vld [vmem:[%s1 + $0x28] sm:$0xff]
  %v83 = vld [vmem:[%s1 + $0x30] sm:$0xff]
  %v84 = vld [vmem:[%s1 + $0x38] sm:$0xff]
  %v85 = vld [vmem:[%s1 + $0x40] sm:$0xff]
  %v86 = vld [vmem:[%s1 + $0x48] sm:$0xff]
  %v87 = vld [vmem:[%s1 + $0x50] sm:$0xff]
  %v88 = vld [vmem:[%s1 + $0x58] sm:$0xff]
  %v89 = vld [vmem:[%s1 + $0x60] sm:$0xff]
  %v90 = vld [vmem:[%s1 + $0x68] sm:$0xff]
  %v91 = vld [vmem:[%s1 + $0x70] sm:$0xff]
  %v92 = vld [vmem:[%s1 + $0x78] sm:$0xff]
  %v93 = vld [vmem:[%s2] sm:$0x3]
  %v95 = vperm.slane %v93, 0
  %v96 = vperm.slane %v93, 1
  %v131 = vunpack.c.l.b16 %v45
  %v132 = vunpack.c.l.b16 %v46
  %v133 = vunpack.c.l.b16 %v47
  %v134 = vunpack.c.l.b16 %v48
  %v135 = vunpack.c.l.b16 %v49
  %v136 = vunpack.c.l.b16 %v50
  %v137 = vunpack.c.l.b16 %v51
  %v138 = vunpack.c.l.b16 %v52
  %v139 = vunpack.c.l.b16 %v53
  %v140 = vunpack.c.l.b16 %v54
  %v141 = vunpack.c.l.b16 %v55
  %v142 = vunpack.c.l.b16 %v56
  %v143 = vunpack.c.l.b16 %v57
  %v144 = vunpack.c.l.b16 %v58
  %v145 = vunpack.c.l.b16 %v59
  %v146 = vunpack.c.l.b16 %v60
  %v147 = vunpack.c.l.b16 %v61
  %v148 = vunpack.c.l.b16 %v62
  %v149 = vunpack.c.l.b16 %v63
  %v150 = vunpack.c.l.b16 %v64
  %v151 = vunpack.c.l.b16 %v65
  %v152 = vunpack.c.l.b16 %v66
  %v153 = vunpack.c.l.b16 %v67
  %v154 = vunpack.c.l.b16 %v68
  %v155 = vunpack.c.l.b16 %v69
  %v156 = vunpack.c.l.b16 %v70
  %v157 = vunpack.c.l.b16 %v71
  %v158 = vunpack.c.l.b16 %v72
  %v159 = vunpack.c.l.b16 %v73
  %v160 = vunpack.c.l.b16 %v74
  %v161 = vunpack.c.l.b16 %v75
  %v162 = vunpack.c.l.b16 %v76
  %v163 = vpack.c.b16 %v132, %v131
  %v164 = vpack.c.b16 %v134, %v133
  %v165 = vpack.c.b16 %v136, %v135
  %v166 = vpack.c.b16 %v138, %v137
  %v167 = vpack.c.b16 %v140, %v139
  %v168 = vpack.c.b16 %v142, %v141
  %v169 = vpack.c.b16 %v144, %v143
  %v170 = vpack.c.b16 %v146, %v145
  %v171 = vpack.c.b16 %v148, %v147
  %v172 = vpack.c.b16 %v150, %v149
  %v173 = vpack.c.b16 %v152, %v151
  %v174 = vpack.c.b16 %v154, %v153
  %v175 = vpack.c.b16 %v156, %v155
  %v176 = vpack.c.b16 %v158, %v157
  %v177 = vpack.c.b16 %v160, %v159
  %v178 = vpack.c.b16 %v162, %v161
  %v211 = vunpack.c.l.b16 %v77
  %v212 = vunpack.c.h.b16 %v77
  %v213 = vunpack.c.l.b16 %v78
  %v214 = vunpack.c.h.b16 %v78
  %v215 = vunpack.c.l.b16 %v79
  %v216 = vunpack.c.h.b16 %v79
  %v217 = vunpack.c.l.b16 %v80
  %v218 = vunpack.c.h.b16 %v80
  %v219 = vunpack.c.l.b16 %v81
  %v220 = vunpack.c.h.b16 %v81
  %v221 = vunpack.c.l.b16 %v82
  %v222 = vunpack.c.h.b16 %v82
  %v223 = vunpack.c.l.b16 %v83
  %v224 = vunpack.c.h.b16 %v83
  %v225 = vunpack.c.l.b16 %v84
  %v226 = vunpack.c.h.b16 %v84
  %v227 = vunpack.c.l.b16 %v85
  %v228 = vunpack.c.h.b16 %v85
  %v229 = vunpack.c.l.b16 %v86
  %v230 = vunpack.c.h.b16 %v86
  %v231 = vunpack.c.l.b16 %v87
  %v232 = vunpack.c.h.b16 %v87
  %v233 = vunpack.c.l.b16 %v88
  %v234 = vunpack.c.h.b16 %v88
  %v235 = vunpack.c.l.b16 %v89
  %v236 = vunpack.c.h.b16 %v89
  %v237 = vunpack.c.l.b16 %v90
  %v238 = vunpack.c.h.b16 %v90
  %v239 = vunpack.c.l.b16 %v91
  %v240 = vunpack.c.h.b16 %v91
  %v241 = vunpack.c.l.b16 %v92
  %v242 = vunpack.c.h.b16 %v92
  %v243 = vpack.c.b16 %v213, %v211
  %v244 = vpack.c.b16 %v214, %v212
  %v245 = vpack.c.b16 %v217, %v215
  %v246 = vpack.c.b16 %v218, %v216
  %v247 = vpack.c.b16 %v221, %v219
  %v248 = vpack.c.b16 %v222, %v220
  %v249 = vpack.c.b16 %v225, %v223
  %v250 = vpack.c.b16 %v226, %v224
  %v251 = vpack.c.b16 %v229, %v227
  %v252 = vpack.c.b16 %v230, %v228
  %v253 = vpack.c.b16 %v233, %v231
  %v254 = vpack.c.b16 %v234, %v232
  %v255 = vpack.c.b16 %v237, %v235
  %v256 = vpack.c.b16 %v238, %v236
  %v257 = vpack.c.b16 %v241, %v239
  %v258 = vpack.c.b16 %v242, %v240
  %275 = vmatpush.bf16.msra.mxu0 %v257
  %276 = vmatpush.bf16.msra.mxu0 %v255
  %277 = vmatpush.bf16.msra.mxu0 %v253
  %278 = vmatpush.bf16.msra.mxu0 %v251
  %279 = vmatpush.bf16.msra.mxu0 %v249
  %280 = vmatpush.bf16.msra.mxu0 %v247
  %281 = vmatpush.bf16.msra.mxu0 %v245
  %282 = vmatpush.bf16.msra.mxu0 %v243
  %283 = vmatmul.bf16.gmra.mxu0 %v163
  %v284 = vpop.f32.mrf.mxu0
  %v285 = vadd.f32 %v95, %v284
  %v286 = vpop.f32.mrf.mxu0
  %v287 = vadd.f32 %v95, %v286
  %288 = vmatmul.bf16.gmra.mxu0 %v164
  %v289 = vpop.f32.mrf.mxu0
  %v290 = vadd.f32 %v95, %v289
  %v291 = vpop.f32.mrf.mxu0
  %v292 = vadd.f32 %v95, %v291
  %293 = vmatmul.bf16.gmra.mxu0 %v165
  %v294 = vpop.f32.mrf.mxu0
  %v295 = vadd.f32 %v95, %v294
  %v296 = vpop.f32.mrf.mxu0
  %v297 = vadd.f32 %v95, %v296
  %298 = vmatmul.bf16.gmra.mxu0 %v166
  %v299 = vpop.f32.mrf.mxu0
  %v300 = vadd.f32 %v95, %v299
  %v301 = vpop.f32.mrf.mxu0
  %v302 = vadd.f32 %v95, %v301
  %303 = vmatmul.bf16.gmra.mxu0 %v167
  %v304 = vpop.f32.mrf.mxu0
  %v305 = vadd.f32 %v95, %v304
  %v306 = vpop.f32.mrf.mxu0
  %v307 = vadd.f32 %v95, %v306
  %308 = vmatmul.bf16.gmra.mxu0 %v168
  %v309 = vpop.f32.mrf.mxu0
  %v310 = vadd.f32 %v95, %v309
  %v311 = vpop.f32.mrf.mxu0
  %v312 = vadd.f32 %v95, %v311
  %313 = vmatmul.bf16.gmra.mxu0 %v169
  %v314 = vpop.f32.mrf.mxu0
  %v315 = vadd.f32 %v95, %v314
  %v316 = vpop.f32.mrf.mxu0
  %v317 = vadd.f32 %v95, %v316
  %318 = vmatmul.bf16.gmra.mxu0 %v170
  %v319 = vpop.f32.mrf.mxu0
  %v320 = vadd.f32 %v95, %v319
  %v321 = vpop.f32.mrf.mxu0
  %v322 = vadd.f32 %v95, %v321
  %323 = vmatmul.bf16.gmra.mxu0 %v171
  %v324 = vpop.f32.mrf.mxu0
  %v325 = vadd.f32 %v95, %v324
  %v326 = vpop.f32.mrf.mxu0
  %v327 = vadd.f32 %v95, %v326
  %328 = vmatmul.bf16.gmra.mxu0 %v172
  %v329 = vpop.f32.mrf.mxu0
  %v330 = vadd.f32 %v95, %v329
  %v331 = vpop.f32.mrf.mxu0
  %v332 = vadd.f32 %v95, %v331
  %333 = vmatmul.bf16.gmra.mxu0 %v173
  %v334 = vpop.f32.mrf.mxu0
  %v335 = vadd.f32 %v95, %v334
  %v336 = vpop.f32.mrf.mxu0
  %v337 = vadd.f32 %v95, %v336
  %338 = vmatmul.bf16.gmra.mxu0 %v174
  %v339 = vpop.f32.mrf.mxu0
  %v340 = vadd.f32 %v95, %v339
  %v341 = vpop.f32.mrf.mxu0
  %v342 = vadd.f32 %v95, %v341
  %343 = vmatmul.bf16.gmra.mxu0 %v175
  %v344 = vpop.f32.mrf.mxu0
  %v345 = vadd.f32 %v95, %v344
  %v346 = vpop.f32.mrf.mxu0
  %v347 = vadd.f32 %v95, %v346
  %348 = vmatmul.bf16.gmra.mxu0 %v176
  %v349 = vpop.f32.mrf.mxu0
  %v350 = vadd.f32 %v95, %v349
  %v351 = vpop.f32.mrf.mxu0
  %v352 = vadd.f32 %v95, %v351
  %353 = vmatmul.bf16.gmra.mxu0 %v177
  %v354 = vpop.f32.mrf.mxu0
  %v355 = vadd.f32 %v95, %v354
  %v356 = vpop.f32.mrf.mxu0
  %v357 = vadd.f32 %v95, %v356
  %358 = vmatmul.bf16.gmra.mxu0 %v178
  %v359 = vpop.f32.mrf.mxu0
  %v360 = vadd.f32 %v95, %v359
  %v361 = vpop.f32.mrf.mxu0
  %v362 = vadd.f32 %v95, %v361
  %363 = vdwg.mxu0
  %364 = vmatpush.bf16.msra.mxu0 %v258
  %365 = vmatpush.bf16.msra.mxu0 %v256
  %366 = vmatpush.bf16.msra.mxu0 %v254
  %367 = vmatpush.bf16.msra.mxu0 %v252
  %368 = vmatpush.bf16.msra.mxu0 %v250
  %369 = vmatpush.bf16.msra.mxu0 %v248
  %370 = vmatpush.bf16.msra.mxu0 %v246
  %371 = vmatpush.bf16.msra.mxu0 %v244
  %372 = vmatmul.bf16.gmra.mxu0 %v163
  %v373 = vpop.f32.mrf.mxu0
  %v374 = vadd.f32 %v96, %v373
  %v375 = vpop.f32.mrf.mxu0
  %v376 = vadd.f32 %v96, %v375
  %377 = vmatmul.bf16.gmra.mxu0 %v164
  %v378 = vpop.f32.mrf.mxu0
  %v379 = vadd.f32 %v96, %v378
  %v380 = vpop.f32.mrf.mxu0
  %v381 = vadd.f32 %v96, %v380
  %382 = vmatmul.bf16.gmra.mxu0 %v165
  %v383 = vpop.f32.mrf.mxu0
  %v384 = vadd.f32 %v96, %v383
  %v385 = vpop.f32.mrf.mxu0
  %v386 = vadd.f32 %v96, %v385
  %387 = vmatmul.bf16.gmra.mxu0 %v166
  %v388 = vpop.f32.mrf.mxu0
  %v389 = vadd.f32 %v96, %v388
  %v390 = vpop.f32.mrf.mxu0
  %v391 = vadd.f32 %v96, %v390
  %392 = vmatmul.bf16.gmra.mxu0 %v167
  %v393 = vpop.f32.mrf.mxu0
  %v394 = vadd.f32 %v96, %v393
  %v395 = vpop.f32.mrf.mxu0
  %v396 = vadd.f32 %v96, %v395
  %397 = vmatmul.bf16.gmra.mxu0 %v168
  %v398 = vpop.f32.mrf.mxu0
  %v399 = vadd.f32 %v96, %v398
  %v400 = vpop.f32.mrf.mxu0
  %v401 = vadd.f32 %v96, %v400
  %402 = vmatmul.bf16.gmra.mxu0 %v169
  %v403 = vpop.f32.mrf.mxu0
  %v404 = vadd.f32 %v96, %v403
  %v405 = vpop.f32.mrf.mxu0
  %v406 = vadd.f32 %v96, %v405
  %407 = vmatmul.bf16.gmra.mxu0 %v170
  %v408 = vpop.f32.mrf.mxu0
  %v409 = vadd.f32 %v96, %v408
  %v410 = vpop.f32.mrf.mxu0
  %v411 = vadd.f32 %v96, %v410
  %412 = vmatmul.bf16.gmra.mxu0 %v171
  %v413 = vpop.f32.mrf.mxu0
  %v414 = vadd.f32 %v96, %v413
  %v415 = vpop.f32.mrf.mxu0
  %v416 = vadd.f32 %v96, %v415
  %417 = vmatmul.bf16.gmra.mxu0 %v172
  %v418 = vpop.f32.mrf.mxu0
  %v419 = vadd.f32 %v96, %v418
  %v420 = vpop.f32.mrf.mxu0
  %v421 = vadd.f32 %v96, %v420
  %422 = vmatmul.bf16.gmra.mxu0 %v173
  %v423 = vpop.f32.mrf.mxu0
  %v424 = vadd.f32 %v96, %v423
  %v425 = vpop.f32.mrf.mxu0
  %v426 = vadd.f32 %v96, %v425
  %427 = vmatmul.bf16.gmra.mxu0 %v174
  %v428 = vpop.f32.mrf.mxu0
  %v429 = vadd.f32 %v96, %v428
  %v430 = vpop.f32.mrf.mxu0
  %v431 = vadd.f32 %v96, %v430
  %432 = vmatmul.bf16.gmra.mxu0 %v175
  %v433 = vpop.f32.mrf.mxu0
  %v434 = vadd.f32 %v96, %v433
  %v435 = vpop.f32.mrf.mxu0
  %v436 = vadd.f32 %v96, %v435
  %437 = vmatmul.bf16.gmra.mxu0 %v176
  %v438 = vpop.f32.mrf.mxu0
  %v439 = vadd.f32 %v96, %v438
  %v440 = vpop.f32.mrf.mxu0
  %v441 = vadd.f32 %v96, %v440
  %442 = vmatmul.bf16.gmra.mxu0 %v177
  %v443 = vpop.f32.mrf.mxu0
  %v444 = vadd.f32 %v96, %v443
  %v445 = vpop.f32.mrf.mxu0
  %v446 = vadd.f32 %v96, %v445
  %447 = vmatmul.bf16.gmra.mxu0 %v178
  %v448 = vpop.f32.mrf.mxu0
  %v449 = vadd.f32 %v96, %v448
  %v450 = vpop.f32.mrf.mxu0
  %v451 = vadd.f32 %v96, %v450
  %452 = vdwg.mxu0
  %v453 = vld [vmem:[%s3] sm:$0x3]
  %v454 = vld [vmem:[%s4] sm:$0x3]
  %v455 = vadd.f32 %v285, %v287
  %v456 = vadd.f32 %v455, %v290
  %v457 = vadd.f32 %v456, %v292
  %v458 = vadd.f32 %v457, %v295
  %v459 = vadd.f32 %v458, %v297
  %v460 = vadd.f32 %v459, %v300
  %v461 = vadd.f32 %v460, %v302
  %v462 = vadd.f32 %v461, %v305
  %v463 = vadd.f32 %v462, %v307
  %v464 = vadd.f32 %v463, %v310
  %v465 = vadd.f32 %v464, %v312
  %v466 = vadd.f32 %v465, %v315
  %v467 = vadd.f32 %v466, %v317
  %v468 = vadd.f32 %v467, %v320
  %v469 = vadd.f32 %v468, %v322
  %v470 = vadd.f32 %v469, %v325
  %v471 = vadd.f32 %v470, %v327
  %v472 = vadd.f32 %v471, %v330
  %v473 = vadd.f32 %v472, %v332
  %v474 = vadd.f32 %v473, %v335
  %v475 = vadd.f32 %v474, %v337
  %v476 = vadd.f32 %v475, %v340
  %v477 = vadd.f32 %v476, %v342
  %v478 = vadd.f32 %v477, %v345
  %v479 = vadd.f32 %v478, %v347
  %v480 = vadd.f32 %v479, %v350
  %v481 = vadd.f32 %v480, %v352
  %v482 = vadd.f32 %v481, %v355
  %v483 = vadd.f32 %v482, %v357
  %v484 = vadd.f32 %v483, %v360
  %v485 = vadd.f32 %v484, %v362
  %v486 = vrot.slane %v485, 4
  %v487 = vadd.f32 %v485, %v486
  %v488 = vrot.slane %v487, 2
  %v489 = vadd.f32 %v487, %v488
  %v490 = vrot.slane %v489, 1
  %v491 = vadd.f32 %v489, %v490
  %v492 = vadd.f32 %v374, %v376
  %v493 = vadd.f32 %v492, %v379
  %v494 = vadd.f32 %v493, %v381
  %v495 = vadd.f32 %v494, %v384
  %v496 = vadd.f32 %v495, %v386
  %v497 = vadd.f32 %v496, %v389
  %v498 = vadd.f32 %v497, %v391
  %v499 = vadd.f32 %v498, %v394
  %v500 = vadd.f32 %v499, %v396
  %v501 = vadd.f32 %v500, %v399
  %v502 = vadd.f32 %v501, %v401
  %v503 = vadd.f32 %v502, %v404
  %v504 = vadd.f32 %v503, %v406
  %v505 = vadd.f32 %v504, %v409
  %v506 = vadd.f32 %v505, %v411
  %v507 = vadd.f32 %v506, %v414
  %v508 = vadd.f32 %v507, %v416
  %v509 = vadd.f32 %v508, %v419
  %v510 = vadd.f32 %v509, %v421
  %v511 = vadd.f32 %v510, %v424
  %v512 = vadd.f32 %v511, %v426
  %v513 = vadd.f32 %v512, %v429
  %v514 = vadd.f32 %v513, %v431
  %v515 = vadd.f32 %v514, %v434
  %v516 = vadd.f32 %v515, %v436
  %v517 = vadd.f32 %v516, %v439
  %v518 = vadd.f32 %v517, %v441
  %v519 = vadd.f32 %v518, %v444
  %v520 = vadd.f32 %v519, %v446
  %v521 = vadd.f32 %v520, %v449
  %v522 = vadd.f32 %v521, %v451
  %v523 = vrot.slane %v522, 4
  %v524 = vadd.f32 %v522, %v523
  %v525 = vrot.slane %v524, 2
  %v526 = vadd.f32 %v524, %v525
  %v527 = vrot.slane %v526, 1
  %v528 = vadd.f32 %v526, %v527
  %v529 = vmul.f32 %v491, 0.00390625
  %v530 = vmul.f32 %v528, 0.00390625
  %v531 = vmul.f32 %v285, %v285
  %v532 = vmul.f32 %v374, %v374
  %v533 = vmul.f32 %v287, %v287
  %v534 = vmul.f32 %v376, %v376
  %v535 = vmul.f32 %v290, %v290
  %v536 = vmul.f32 %v379, %v379
  %v537 = vmul.f32 %v292, %v292
  %v538 = vmul.f32 %v381, %v381
  %v539 = vmul.f32 %v295, %v295
  %v540 = vmul.f32 %v384, %v384
  %v541 = vmul.f32 %v297, %v297
  %v542 = vmul.f32 %v386, %v386
  %v543 = vmul.f32 %v300, %v300
  %v544 = vmul.f32 %v389, %v389
  %v545 = vmul.f32 %v302, %v302
  %v546 = vmul.f32 %v391, %v391
  %v547 = vmul.f32 %v305, %v305
  %v548 = vmul.f32 %v394, %v394
  %v549 = vmul.f32 %v307, %v307
  %v550 = vmul.f32 %v396, %v396
  %v551 = vmul.f32 %v310, %v310
  %v552 = vmul.f32 %v399, %v399
  %v553 = vmul.f32 %v312, %v312
  %v554 = vmul.f32 %v401, %v401
  %v555 = vmul.f32 %v315, %v315
  %v556 = vmul.f32 %v404, %v404
  %v557 = vmul.f32 %v317, %v317
  %v558 = vmul.f32 %v406, %v406
  %v559 = vmul.f32 %v320, %v320
  %v560 = vmul.f32 %v409, %v409
  %v561 = vmul.f32 %v322, %v322
  %v562 = vmul.f32 %v411, %v411
  %v563 = vmul.f32 %v325, %v325
  %v564 = vmul.f32 %v414, %v414
  %v565 = vmul.f32 %v327, %v327
  %v566 = vmul.f32 %v416, %v416
  %v567 = vmul.f32 %v330, %v330
  %v568 = vmul.f32 %v419, %v419
  %v569 = vmul.f32 %v332, %v332
  %v570 = vmul.f32 %v421, %v421
  %v571 = vmul.f32 %v335, %v335
  %v572 = vmul.f32 %v424, %v424
  %v573 = vmul.f32 %v337, %v337
  %v574 = vmul.f32 %v426, %v426
  %v575 = vmul.f32 %v340, %v340
  %v576 = vmul.f32 %v429, %v429
  %v577 = vmul.f32 %v342, %v342
  %v578 = vmul.f32 %v431, %v431
  %v579 = vmul.f32 %v345, %v345
  %v580 = vmul.f32 %v434, %v434
  %v581 = vmul.f32 %v347, %v347
  %v582 = vmul.f32 %v436, %v436
  %v583 = vmul.f32 %v350, %v350
  %v584 = vmul.f32 %v439, %v439
  %v585 = vmul.f32 %v352, %v352
  %v586 = vmul.f32 %v441, %v441
  %v587 = vmul.f32 %v355, %v355
  %v588 = vmul.f32 %v444, %v444
  %v589 = vmul.f32 %v357, %v357
  %v590 = vmul.f32 %v446, %v446
  %v591 = vmul.f32 %v360, %v360
  %v592 = vmul.f32 %v449, %v449
  %v593 = vmul.f32 %v362, %v362
  %v594 = vmul.f32 %v451, %v451
  %v595 = vadd.f32 %v531, %v533
  %v596 = vadd.f32 %v595, %v535
  %v597 = vadd.f32 %v596, %v537
  %v598 = vadd.f32 %v597, %v539
  %v599 = vadd.f32 %v598, %v541
  %v600 = vadd.f32 %v599, %v543
  %v601 = vadd.f32 %v600, %v545
  %v602 = vadd.f32 %v601, %v547
  %v603 = vadd.f32 %v602, %v549
  %v604 = vadd.f32 %v603, %v551
  %v605 = vadd.f32 %v604, %v553
  %v606 = vadd.f32 %v605, %v555
  %v607 = vadd.f32 %v606, %v557
  %v608 = vadd.f32 %v607, %v559
  %v609 = vadd.f32 %v608, %v561
  %v610 = vadd.f32 %v609, %v563
  %v611 = vadd.f32 %v610, %v565
  %v612 = vadd.f32 %v611, %v567
  %v613 = vadd.f32 %v612, %v569
  %v614 = vadd.f32 %v613, %v571
  %v615 = vadd.f32 %v614, %v573
  %v616 = vadd.f32 %v615, %v575
  %v617 = vadd.f32 %v616, %v577
  %v618 = vadd.f32 %v617, %v579
  %v619 = vadd.f32 %v618, %v581
  %v620 = vadd.f32 %v619, %v583
  %v621 = vadd.f32 %v620, %v585
  %v622 = vadd.f32 %v621, %v587
  %v623 = vadd.f32 %v622, %v589
  %v624 = vadd.f32 %v623, %v591
  %v625 = vadd.f32 %v624, %v593
  %v626 = vrot.slane %v625, 4
  %v627 = vadd.f32 %v625, %v626
  %v628 = vrot.slane %v627, 2
  %v629 = vadd.f32 %v627, %v628
  %v630 = vrot.slane %v629, 1
  %v631 = vadd.f32 %v629, %v630
  %v632 = vadd.f32 %v532, %v534
  %v633 = vadd.f32 %v632, %v536
  %v634 = vadd.f32 %v633, %v538
  %v635 = vadd.f32 %v634, %v540
  %v636 = vadd.f32 %v635, %v542
  %v637 = vadd.f32 %v636, %v544
  %v638 = vadd.f32 %v637, %v546
  %v639 = vadd.f32 %v638, %v548
  %v640 = vadd.f32 %v639, %v550
  %v641 = vadd.f32 %v640, %v552
  %v642 = vadd.f32 %v641, %v554
  %v643 = vadd.f32 %v642, %v556
  %v644 = vadd.f32 %v643, %v558
  %v645 = vadd.f32 %v644, %v560
  %v646 = vadd.f32 %v645, %v562
  %v647 = vadd.f32 %v646, %v564
  %v648 = vadd.f32 %v647, %v566
  %v649 = vadd.f32 %v648, %v568
  %v650 = vadd.f32 %v649, %v570
  %v651 = vadd.f32 %v650, %v572
  %v652 = vadd.f32 %v651, %v574
  %v653 = vadd.f32 %v652, %v576
  %v654 = vadd.f32 %v653, %v578
  %v655 = vadd.f32 %v654, %v580
  %v656 = vadd.f32 %v655, %v582
  %v657 = vadd.f32 %v656, %v584
  %v658 = vadd.f32 %v657, %v586
  %v659 = vadd.f32 %v658, %v588
  %v660 = vadd.f32 %v659, %v590
  %v661 = vadd.f32 %v660, %v592
  %v662 = vadd.f32 %v661, %v594
  %v663 = vrot.slane %v662, 4
  %v664 = vadd.f32 %v662, %v663
  %v665 = vrot.slane %v664, 2
  %v666 = vadd.f32 %v664, %v665
  %v667 = vrot.slane %v666, 1
  %v668 = vadd.f32 %v666, %v667
  %v669 = vmul.f32 %v631, 0.00390625
  %v670 = vmul.f32 %v668, 0.00390625
  %v671 = vmul.f32 %v529, %v529
  %v672 = vmul.f32 %v530, %v530
  %v673 = vsub.f32 %v669, %v671
  %v674 = vsub.f32 %v670, %v672
  %v675 = vmax.f32 %v673, 0.0
  %v676 = vmax.f32 %v674, 0.0
  %v677 = vadd.f32 %v675, 1e-05
  %v678 = vadd.f32 %v676, 1e-05
  %v679 = vrsqrt.pop %v677
  %v680 = vmul.f32 %v679, %v677
  %v681 = vmul.f32 %v680, %v679
  %v682 = vmul.f32 0.5, %v681
  %v683 = vsub.f32 1.5, %v682
  %v684 = vmul.f32 %v679, %v683
  %vm685 = vweird.f32 %v677
  %vm686 = vweird.f32 %v679
  %vm687 = vmor %vm685, %vm686
  %v688 = vsel %vm687, %v679, %v684
  %v689 = vrsqrt.pop %v678
  %v690 = vmul.f32 %v689, %v678
  %v691 = vmul.f32 %v690, %v689
  %v692 = vmul.f32 0.5, %v691
  %v693 = vsub.f32 1.5, %v692
  %v694 = vmul.f32 %v689, %v693
  %vm695 = vweird.f32 %v678
  %vm696 = vweird.f32 %v689
  %vm697 = vmor %vm695, %vm696
  %v698 = vsel %vm697, %v689, %v694
  %v701 = vrot.slane %v698, 7
  %vm702 = vcmask 1040384
  %v703 = vsel %vm702, %v688, %v701
  %v705 = vmul.f32 %v453, %v703
  %v707 = vperm.slane %v705, 0
  %v708 = vperm.slane %v705, 1
  %v711 = vmul.f32 %v285, %v707
  %v712 = vmul.f32 %v374, %v708
  %v713 = vmul.f32 %v287, %v707
  %v714 = vmul.f32 %v376, %v708
  %v715 = vmul.f32 %v290, %v707
  %v716 = vmul.f32 %v379, %v708
  %v717 = vmul.f32 %v292, %v707
  %v718 = vmul.f32 %v381, %v708
  %v719 = vmul.f32 %v295, %v707
  %v720 = vmul.f32 %v384, %v708
  %v721 = vmul.f32 %v297, %v707
  %v722 = vmul.f32 %v386, %v708
  %v723 = vmul.f32 %v300, %v707
  %v724 = vmul.f32 %v389, %v708
  %v725 = vmul.f32 %v302, %v707
  %v726 = vmul.f32 %v391, %v708
  %v727 = vmul.f32 %v305, %v707
  %v728 = vmul.f32 %v394, %v708
  %v729 = vmul.f32 %v307, %v707
  %v730 = vmul.f32 %v396, %v708
  %v731 = vmul.f32 %v310, %v707
  %v732 = vmul.f32 %v399, %v708
  %v733 = vmul.f32 %v312, %v707
  %v734 = vmul.f32 %v401, %v708
  %v735 = vmul.f32 %v315, %v707
  %v736 = vmul.f32 %v404, %v708
  %v737 = vmul.f32 %v317, %v707
  %v738 = vmul.f32 %v406, %v708
  %v739 = vmul.f32 %v320, %v707
  %v740 = vmul.f32 %v409, %v708
  %v741 = vmul.f32 %v322, %v707
  %v742 = vmul.f32 %v411, %v708
  %v743 = vmul.f32 %v325, %v707
  %v744 = vmul.f32 %v414, %v708
  %v745 = vmul.f32 %v327, %v707
  %v746 = vmul.f32 %v416, %v708
  %v747 = vmul.f32 %v330, %v707
  %v748 = vmul.f32 %v419, %v708
  %v749 = vmul.f32 %v332, %v707
  %v750 = vmul.f32 %v421, %v708
  %v751 = vmul.f32 %v335, %v707
  %v752 = vmul.f32 %v424, %v708
  %v753 = vmul.f32 %v337, %v707
  %v754 = vmul.f32 %v426, %v708
  %v755 = vmul.f32 %v340, %v707
  %v756 = vmul.f32 %v429, %v708
  %v757 = vmul.f32 %v342, %v707
  %v758 = vmul.f32 %v431, %v708
  %v759 = vmul.f32 %v345, %v707
  %v760 = vmul.f32 %v434, %v708
  %v761 = vmul.f32 %v347, %v707
  %v762 = vmul.f32 %v436, %v708
  %v763 = vmul.f32 %v350, %v707
  %v764 = vmul.f32 %v439, %v708
  %v765 = vmul.f32 %v352, %v707
  %v766 = vmul.f32 %v441, %v708
  %v767 = vmul.f32 %v355, %v707
  %v768 = vmul.f32 %v444, %v708
  %v769 = vmul.f32 %v357, %v707
  %v770 = vmul.f32 %v446, %v708
  %v771 = vmul.f32 %v360, %v707
  %v772 = vmul.f32 %v449, %v708
  %v773 = vmul.f32 %v362, %v707
  %v774 = vmul.f32 %v451, %v708
  %v775 = vmul.f32 %v529, %v707
  %v776 = vmul.f32 %v530, %v708
  %v779 = vrot.slane %v776, 7
  %v780 = vsel %vm702, %v775, %v779
  %v782 = vsub.f32 %v454, %v780
  %v784 = vperm.slane %v782, 0
  %v785 = vperm.slane %v782, 1
  %v788 = vadd.f32 %v711, %v784
  %v789 = vadd.f32 %v712, %v785
  %v790 = vadd.f32 %v713, %v784
  %v791 = vadd.f32 %v714, %v785
  %v792 = vadd.f32 %v715, %v784
  %v793 = vadd.f32 %v716, %v785
  %v794 = vadd.f32 %v717, %v784
  %v795 = vadd.f32 %v718, %v785
  %v796 = vadd.f32 %v719, %v784
  %v797 = vadd.f32 %v720, %v785
  %v798 = vadd.f32 %v721, %v784
  %v799 = vadd.f32 %v722, %v785
  %v800 = vadd.f32 %v723, %v784
  %v801 = vadd.f32 %v724, %v785
  %v802 = vadd.f32 %v725, %v784
  %v803 = vadd.f32 %v726, %v785
  %v804 = vadd.f32 %v727, %v784
  %v805 = vadd.f32 %v728, %v785
  %v806 = vadd.f32 %v729, %v784
  %v807 = vadd.f32 %v730, %v785
  %v808 = vadd.f32 %v731, %v784
  %v809 = vadd.f32 %v732, %v785
  %v810 = vadd.f32 %v733, %v784
  %v811 = vadd.f32 %v734, %v785
  %v812 = vadd.f32 %v735, %v784
  %v813 = vadd.f32 %v736, %v785
  %v814 = vadd.f32 %v737, %v784
  %v815 = vadd.f32 %v738, %v785
  %v816 = vadd.f32 %v739, %v784
  %v817 = vadd.f32 %v740, %v785
  %v818 = vadd.f32 %v741, %v784
  %v819 = vadd.f32 %v742, %v785
  %v820 = vadd.f32 %v743, %v784
  %v821 = vadd.f32 %v744, %v785
  %v822 = vadd.f32 %v745, %v784
  %v823 = vadd.f32 %v746, %v785
  %v824 = vadd.f32 %v747, %v784
  %v825 = vadd.f32 %v748, %v785
  %v826 = vadd.f32 %v749, %v784
  %v827 = vadd.f32 %v750, %v785
  %v828 = vadd.f32 %v751, %v784
  %v829 = vadd.f32 %v752, %v785
  %v830 = vadd.f32 %v753, %v784
  %v831 = vadd.f32 %v754, %v785
  %v832 = vadd.f32 %v755, %v784
  %v833 = vadd.f32 %v756, %v785
  %v834 = vadd.f32 %v757, %v784
  %v835 = vadd.f32 %v758, %v785
  %v836 = vadd.f32 %v759, %v784
  %v837 = vadd.f32 %v760, %v785
  %v838 = vadd.f32 %v761, %v784
  %v839 = vadd.f32 %v762, %v785
  %v840 = vadd.f32 %v763, %v784
  %v841 = vadd.f32 %v764, %v785
  %v842 = vadd.f32 %v765, %v784
  %v843 = vadd.f32 %v766, %v785
  %v844 = vadd.f32 %v767, %v784
  %v845 = vadd.f32 %v768, %v785
  %v846 = vadd.f32 %v769, %v784
  %v847 = vadd.f32 %v770, %v785
  %v848 = vadd.f32 %v771, %v784
  %v849 = vadd.f32 %v772, %v785
  %v850 = vadd.f32 %v773, %v784
  %v851 = vadd.f32 %v774, %v785
  %v852 = vmax.f32 %v788, 0.0
  %v853 = vmax.f32 %v789, 0.0
  %v854 = vmax.f32 %v790, 0.0
  %v855 = vmax.f32 %v791, 0.0
  %v856 = vmax.f32 %v792, 0.0
  %v857 = vmax.f32 %v793, 0.0
  %v858 = vmax.f32 %v794, 0.0
  %v859 = vmax.f32 %v795, 0.0
  %v860 = vmax.f32 %v796, 0.0
  %v861 = vmax.f32 %v797, 0.0
  %v862 = vmax.f32 %v798, 0.0
  %v863 = vmax.f32 %v799, 0.0
  %v864 = vmax.f32 %v800, 0.0
  %v865 = vmax.f32 %v801, 0.0
  %v866 = vmax.f32 %v802, 0.0
  %v867 = vmax.f32 %v803, 0.0
  %v868 = vmax.f32 %v804, 0.0
  %v869 = vmax.f32 %v805, 0.0
  %v870 = vmax.f32 %v806, 0.0
  %v871 = vmax.f32 %v807, 0.0
  %v872 = vmax.f32 %v808, 0.0
  %v873 = vmax.f32 %v809, 0.0
  %v874 = vmax.f32 %v810, 0.0
  %v875 = vmax.f32 %v811, 0.0
  %v876 = vmax.f32 %v812, 0.0
  %v877 = vmax.f32 %v813, 0.0
  %v878 = vmax.f32 %v814, 0.0
  %v879 = vmax.f32 %v815, 0.0
  %v880 = vmax.f32 %v816, 0.0
  %v881 = vmax.f32 %v817, 0.0
  %v882 = vmax.f32 %v818, 0.0
  %v883 = vmax.f32 %v819, 0.0
  %v884 = vmax.f32 %v820, 0.0
  %v885 = vmax.f32 %v821, 0.0
  %v886 = vmax.f32 %v822, 0.0
  %v887 = vmax.f32 %v823, 0.0
  %v888 = vmax.f32 %v824, 0.0
  %v889 = vmax.f32 %v825, 0.0
  %v890 = vmax.f32 %v826, 0.0
  %v891 = vmax.f32 %v827, 0.0
  %v892 = vmax.f32 %v828, 0.0
  %v893 = vmax.f32 %v829, 0.0
  %v894 = vmax.f32 %v830, 0.0
  %v895 = vmax.f32 %v831, 0.0
  %v896 = vmax.f32 %v832, 0.0
  %v897 = vmax.f32 %v833, 0.0
  %v898 = vmax.f32 %v834, 0.0
  %v899 = vmax.f32 %v835, 0.0
  %v900 = vmax.f32 %v836, 0.0
  %v901 = vmax.f32 %v837, 0.0
  %v902 = vmax.f32 %v838, 0.0
  %v903 = vmax.f32 %v839, 0.0
  %v904 = vmax.f32 %v840, 0.0
  %v905 = vmax.f32 %v841, 0.0
  %v906 = vmax.f32 %v842, 0.0
  %v907 = vmax.f32 %v843, 0.0
  %v908 = vmax.f32 %v844, 0.0
  %v909 = vmax.f32 %v845, 0.0
  %v910 = vmax.f32 %v846, 0.0
  %v911 = vmax.f32 %v847, 0.0
  %v912 = vmax.f32 %v848, 0.0
  %v913 = vmax.f32 %v849, 0.0
  %v914 = vmax.f32 %v850, 0.0
  %v915 = vmax.f32 %v851, 0.0
  %v916 = vpack.c.bf16 %v854, %v852
  %v917 = vpack.c.bf16 %v855, %v853
  %v918 = vpack.c.bf16 %v858, %v856
  %v919 = vpack.c.bf16 %v859, %v857
  %v920 = vpack.c.bf16 %v862, %v860
  %v921 = vpack.c.bf16 %v863, %v861
  %v922 = vpack.c.bf16 %v866, %v864
  %v923 = vpack.c.bf16 %v867, %v865
  %v924 = vpack.c.bf16 %v870, %v868
  %v925 = vpack.c.bf16 %v871, %v869
  %v926 = vpack.c.bf16 %v874, %v872
  %v927 = vpack.c.bf16 %v875, %v873
  %v928 = vpack.c.bf16 %v878, %v876
  %v929 = vpack.c.bf16 %v879, %v877
  %v930 = vpack.c.bf16 %v882, %v880
  %v931 = vpack.c.bf16 %v883, %v881
  %v932 = vpack.c.bf16 %v886, %v884
  %v933 = vpack.c.bf16 %v887, %v885
  %v934 = vpack.c.bf16 %v890, %v888
  %v935 = vpack.c.bf16 %v891, %v889
  %v936 = vpack.c.bf16 %v894, %v892
  %v937 = vpack.c.bf16 %v895, %v893
  %v938 = vpack.c.bf16 %v898, %v896
  %v939 = vpack.c.bf16 %v899, %v897
  %v940 = vpack.c.bf16 %v902, %v900
  %v941 = vpack.c.bf16 %v903, %v901
  %v942 = vpack.c.bf16 %v906, %v904
  %v943 = vpack.c.bf16 %v907, %v905
  %v944 = vpack.c.bf16 %v910, %v908
  %v945 = vpack.c.bf16 %v911, %v909
  %v946 = vpack.c.bf16 %v914, %v912
  %v947 = vpack.c.bf16 %v915, %v913
  %v948 = vld [vmem:[%s5] sm:$0xff]
  %v949 = vld [vmem:[%s5 + $0x8] sm:$0xff]
  %v950 = vld [vmem:[%s5 + $0x10] sm:$0xff]
  %v951 = vld [vmem:[%s5 + $0x18] sm:$0xff]
  %v952 = vld [vmem:[%s5 + $0x20] sm:$0xff]
  %v953 = vld [vmem:[%s5 + $0x28] sm:$0xff]
  %v954 = vld [vmem:[%s5 + $0x30] sm:$0xff]
  %v955 = vld [vmem:[%s5 + $0x38] sm:$0xff]
  %v956 = vld [vmem:[%s5 + $0x40] sm:$0xff]
  %v957 = vld [vmem:[%s5 + $0x48] sm:$0xff]
  %v958 = vld [vmem:[%s5 + $0x50] sm:$0xff]
  %v959 = vld [vmem:[%s5 + $0x58] sm:$0xff]
  %v960 = vld [vmem:[%s5 + $0x60] sm:$0xff]
  %v961 = vld [vmem:[%s5 + $0x68] sm:$0xff]
  %v962 = vld [vmem:[%s5 + $0x70] sm:$0xff]
  %v963 = vld [vmem:[%s5 + $0x78] sm:$0xff]
  %v964 = vld [vmem:[%s5 + $0x80] sm:$0xff]
  %v965 = vld [vmem:[%s5 + $0x88] sm:$0xff]
  %v966 = vld [vmem:[%s5 + $0x90] sm:$0xff]
  %v967 = vld [vmem:[%s5 + $0x98] sm:$0xff]
  %v968 = vld [vmem:[%s5 + $0xa0] sm:$0xff]
  %v969 = vld [vmem:[%s5 + $0xa8] sm:$0xff]
  %v970 = vld [vmem:[%s5 + $0xb0] sm:$0xff]
  %v971 = vld [vmem:[%s5 + $0xb8] sm:$0xff]
  %v972 = vld [vmem:[%s5 + $0xc0] sm:$0xff]
  %v973 = vld [vmem:[%s5 + $0xc8] sm:$0xff]
  %v974 = vld [vmem:[%s5 + $0xd0] sm:$0xff]
  %v975 = vld [vmem:[%s5 + $0xd8] sm:$0xff]
  %v976 = vld [vmem:[%s5 + $0xe0] sm:$0xff]
  %v977 = vld [vmem:[%s5 + $0xe8] sm:$0xff]
  %v978 = vld [vmem:[%s5 + $0xf0] sm:$0xff]
  %v979 = vld [vmem:[%s5 + $0xf8] sm:$0xff]
  %v980 = vld [vmem:[%s6] sm:$0x3]
  %v982 = vperm.slane %v980, 0
  %v983 = vperm.slane %v980, 1
  %v1018 = vunpack.c.l.b16 %v948
  %v1019 = vunpack.c.h.b16 %v948
  %v1020 = vunpack.c.l.b16 %v949
  %v1021 = vunpack.c.h.b16 %v949
  %v1022 = vunpack.c.l.b16 %v950
  %v1023 = vunpack.c.h.b16 %v950
  %v1024 = vunpack.c.l.b16 %v951
  %v1025 = vunpack.c.h.b16 %v951
  %v1026 = vunpack.c.l.b16 %v952
  %v1027 = vunpack.c.h.b16 %v952
  %v1028 = vunpack.c.l.b16 %v953
  %v1029 = vunpack.c.h.b16 %v953
  %v1030 = vunpack.c.l.b16 %v954
  %v1031 = vunpack.c.h.b16 %v954
  %v1032 = vunpack.c.l.b16 %v955
  %v1033 = vunpack.c.h.b16 %v955
  %v1034 = vunpack.c.l.b16 %v956
  %v1035 = vunpack.c.h.b16 %v956
  %v1036 = vunpack.c.l.b16 %v957
  %v1037 = vunpack.c.h.b16 %v957
  %v1038 = vunpack.c.l.b16 %v958
  %v1039 = vunpack.c.h.b16 %v958
  %v1040 = vunpack.c.l.b16 %v959
  %v1041 = vunpack.c.h.b16 %v959
  %v1042 = vunpack.c.l.b16 %v960
  %v1043 = vunpack.c.h.b16 %v960
  %v1044 = vunpack.c.l.b16 %v961
  %v1045 = vunpack.c.h.b16 %v961
  %v1046 = vunpack.c.l.b16 %v962
  %v1047 = vunpack.c.h.b16 %v962
  %v1048 = vunpack.c.l.b16 %v963
  %v1049 = vunpack.c.h.b16 %v963
  %v1050 = vunpack.c.l.b16 %v964
  %v1051 = vunpack.c.h.b16 %v964
  %v1052 = vunpack.c.l.b16 %v965
  %v1053 = vunpack.c.h.b16 %v965
  %v1054 = vunpack.c.l.b16 %v966
  %v1055 = vunpack.c.h.b16 %v966
  %v1056 = vunpack.c.l.b16 %v967
  %v1057 = vunpack.c.h.b16 %v967
  %v1058 = vunpack.c.l.b16 %v968
  %v1059 = vunpack.c.h.b16 %v968
  %v1060 = vunpack.c.l.b16 %v969
  %v1061 = vunpack.c.h.b16 %v969
  %v1062 = vunpack.c.l.b16 %v970
  %v1063 = vunpack.c.h.b16 %v970
  %v1064 = vunpack.c.l.b16 %v971
  %v1065 = vunpack.c.h.b16 %v971
  %v1066 = vunpack.c.l.b16 %v972
  %v1067 = vunpack.c.h.b16 %v972
  %v1068 = vunpack.c.l.b16 %v973
  %v1069 = vunpack.c.h.b16 %v973
  %v1070 = vunpack.c.l.b16 %v974
  %v1071 = vunpack.c.h.b16 %v974
  %v1072 = vunpack.c.l.b16 %v975
  %v1073 = vunpack.c.h.b16 %v975
  %v1074 = vunpack.c.l.b16 %v976
  %v1075 = vunpack.c.h.b16 %v976
  %v1076 = vunpack.c.l.b16 %v977
  %v1077 = vunpack.c.h.b16 %v977
  %v1078 = vunpack.c.l.b16 %v978
  %v1079 = vunpack.c.h.b16 %v978
  %v1080 = vunpack.c.l.b16 %v979
  %v1081 = vunpack.c.h.b16 %v979
  %v1082 = vpack.c.b16 %v1020, %v1018
  %v1083 = vpack.c.b16 %v1021, %v1019
  %v1084 = vpack.c.b16 %v1024, %v1022
  %v1085 = vpack.c.b16 %v1025, %v1023
  %v1086 = vpack.c.b16 %v1028, %v1026
  %v1087 = vpack.c.b16 %v1029, %v1027
  %v1088 = vpack.c.b16 %v1032, %v1030
  %v1089 = vpack.c.b16 %v1033, %v1031
  %v1090 = vpack.c.b16 %v1036, %v1034
  %v1091 = vpack.c.b16 %v1037, %v1035
  %v1092 = vpack.c.b16 %v1040, %v1038
  %v1093 = vpack.c.b16 %v1041, %v1039
  %v1094 = vpack.c.b16 %v1044, %v1042
  %v1095 = vpack.c.b16 %v1045, %v1043
  %v1096 = vpack.c.b16 %v1048, %v1046
  %v1097 = vpack.c.b16 %v1049, %v1047
  %v1098 = vpack.c.b16 %v1052, %v1050
  %v1099 = vpack.c.b16 %v1053, %v1051
  %v1100 = vpack.c.b16 %v1056, %v1054
  %v1101 = vpack.c.b16 %v1057, %v1055
  %v1102 = vpack.c.b16 %v1060, %v1058
  %v1103 = vpack.c.b16 %v1061, %v1059
  %v1104 = vpack.c.b16 %v1064, %v1062
  %v1105 = vpack.c.b16 %v1065, %v1063
  %v1106 = vpack.c.b16 %v1068, %v1066
  %v1107 = vpack.c.b16 %v1069, %v1067
  %v1108 = vpack.c.b16 %v1072, %v1070
  %v1109 = vpack.c.b16 %v1073, %v1071
  %v1110 = vpack.c.b16 %v1076, %v1074
  %v1111 = vpack.c.b16 %v1077, %v1075
  %v1112 = vpack.c.b16 %v1080, %v1078
  %v1113 = vpack.c.b16 %v1081, %v1079
  %1146 = vmatpush.bf16.msra.mxu0 %v1096
  %1147 = vmatpush.bf16.msra.mxu0 %v1094
  %1148 = vmatpush.bf16.msra.mxu0 %v1092
  %1149 = vmatpush.bf16.msra.mxu0 %v1090
  %1150 = vmatpush.bf16.msra.mxu0 %v1088
  %1151 = vmatpush.bf16.msra.mxu0 %v1086
  %1152 = vmatpush.bf16.msra.mxu0 %v1084
  %1153 = vmatpush.bf16.msra.mxu0 %v1082
  %1154 = vmatmul.bf16.gmra.mxu0 %v916
  %v1155 = vpop.f32.mrf.mxu0
  %v1156 = vadd.f32 %v982, %v1155
  %v1157 = vpop.f32.mrf.mxu0
  %v1158 = vadd.f32 %v982, %v1157
  %1159 = vmatmul.bf16.gmra.mxu0 %v918
  %v1160 = vpop.f32.mrf.mxu0
  %v1161 = vadd.f32 %v982, %v1160
  %v1162 = vpop.f32.mrf.mxu0
  %v1163 = vadd.f32 %v982, %v1162
  %1164 = vmatmul.bf16.gmra.mxu0 %v920
  %v1165 = vpop.f32.mrf.mxu0
  %v1166 = vadd.f32 %v982, %v1165
  %v1167 = vpop.f32.mrf.mxu0
  %v1168 = vadd.f32 %v982, %v1167
  %1169 = vmatmul.bf16.gmra.mxu0 %v922
  %v1170 = vpop.f32.mrf.mxu0
  %v1171 = vadd.f32 %v982, %v1170
  %v1172 = vpop.f32.mrf.mxu0
  %v1173 = vadd.f32 %v982, %v1172
  %1174 = vmatmul.bf16.gmra.mxu0 %v924
  %v1175 = vpop.f32.mrf.mxu0
  %v1176 = vadd.f32 %v982, %v1175
  %v1177 = vpop.f32.mrf.mxu0
  %v1178 = vadd.f32 %v982, %v1177
  %1179 = vmatmul.bf16.gmra.mxu0 %v926
  %v1180 = vpop.f32.mrf.mxu0
  %v1181 = vadd.f32 %v982, %v1180
  %v1182 = vpop.f32.mrf.mxu0
  %v1183 = vadd.f32 %v982, %v1182
  %1184 = vmatmul.bf16.gmra.mxu0 %v928
  %v1185 = vpop.f32.mrf.mxu0
  %v1186 = vadd.f32 %v982, %v1185
  %v1187 = vpop.f32.mrf.mxu0
  %v1188 = vadd.f32 %v982, %v1187
  %1189 = vmatmul.bf16.gmra.mxu0 %v930
  %v1190 = vpop.f32.mrf.mxu0
  %v1191 = vadd.f32 %v982, %v1190
  %v1192 = vpop.f32.mrf.mxu0
  %v1193 = vadd.f32 %v982, %v1192
  %1194 = vmatmul.bf16.gmra.mxu0 %v932
  %v1195 = vpop.f32.mrf.mxu0
  %v1196 = vadd.f32 %v982, %v1195
  %v1197 = vpop.f32.mrf.mxu0
  %v1198 = vadd.f32 %v982, %v1197
  %1199 = vmatmul.bf16.gmra.mxu0 %v934
  %v1200 = vpop.f32.mrf.mxu0
  %v1201 = vadd.f32 %v982, %v1200
  %v1202 = vpop.f32.mrf.mxu0
  %v1203 = vadd.f32 %v982, %v1202
  %1204 = vmatmul.bf16.gmra.mxu0 %v936
  %v1205 = vpop.f32.mrf.mxu0
  %v1206 = vadd.f32 %v982, %v1205
  %v1207 = vpop.f32.mrf.mxu0
  %v1208 = vadd.f32 %v982, %v1207
  %1209 = vmatmul.bf16.gmra.mxu0 %v938
  %v1210 = vpop.f32.mrf.mxu0
  %v1211 = vadd.f32 %v982, %v1210
  %v1212 = vpop.f32.mrf.mxu0
  %v1213 = vadd.f32 %v982, %v1212
  %1214 = vmatmul.bf16.gmra.mxu0 %v940
  %v1215 = vpop.f32.mrf.mxu0
  %v1216 = vadd.f32 %v982, %v1215
  %v1217 = vpop.f32.mrf.mxu0
  %v1218 = vadd.f32 %v982, %v1217
  %1219 = vmatmul.bf16.gmra.mxu0 %v942
  %v1220 = vpop.f32.mrf.mxu0
  %v1221 = vadd.f32 %v982, %v1220
  %v1222 = vpop.f32.mrf.mxu0
  %v1223 = vadd.f32 %v982, %v1222
  %1224 = vmatmul.bf16.gmra.mxu0 %v944
  %v1225 = vpop.f32.mrf.mxu0
  %v1226 = vadd.f32 %v982, %v1225
  %v1227 = vpop.f32.mrf.mxu0
  %v1228 = vadd.f32 %v982, %v1227
  %1229 = vmatmul.bf16.gmra.mxu0 %v946
  %v1230 = vpop.f32.mrf.mxu0
  %v1231 = vadd.f32 %v982, %v1230
  %v1232 = vpop.f32.mrf.mxu0
  %v1233 = vadd.f32 %v982, %v1232
  %1234 = vdwg.mxu0
  %1235 = vmatpush.bf16.msra.mxu0 %v1112
  %1236 = vmatpush.bf16.msra.mxu0 %v1110
  %1237 = vmatpush.bf16.msra.mxu0 %v1108
  %1238 = vmatpush.bf16.msra.mxu0 %v1106
  %1239 = vmatpush.bf16.msra.mxu0 %v1104
  %1240 = vmatpush.bf16.msra.mxu0 %v1102
  %1241 = vmatpush.bf16.msra.mxu0 %v1100
  %1242 = vmatpush.bf16.msra.mxu0 %v1098
  %1243 = vmatmul.bf16.gmra.mxu0 %v917
  %v1244 = vpop.f32.mrf.mxu0
  %v1245 = vadd.f32 %v1156, %v1244
  %v1246 = vpop.f32.mrf.mxu0
  %v1247 = vadd.f32 %v1158, %v1246
  %1248 = vmatmul.bf16.gmra.mxu0 %v919
  %v1249 = vpop.f32.mrf.mxu0
  %v1250 = vadd.f32 %v1161, %v1249
  %v1251 = vpop.f32.mrf.mxu0
  %v1252 = vadd.f32 %v1163, %v1251
  %1253 = vmatmul.bf16.gmra.mxu0 %v921
  %v1254 = vpop.f32.mrf.mxu0
  %v1255 = vadd.f32 %v1166, %v1254
  %v1256 = vpop.f32.mrf.mxu0
  %v1257 = vadd.f32 %v1168, %v1256
  %1258 = vmatmul.bf16.gmra.mxu0 %v923
  %v1259 = vpop.f32.mrf.mxu0
  %v1260 = vadd.f32 %v1171, %v1259
  %v1261 = vpop.f32.mrf.mxu0
  %v1262 = vadd.f32 %v1173, %v1261
  %1263 = vmatmul.bf16.gmra.mxu0 %v925
  %v1264 = vpop.f32.mrf.mxu0
  %v1265 = vadd.f32 %v1176, %v1264
  %v1266 = vpop.f32.mrf.mxu0
  %v1267 = vadd.f32 %v1178, %v1266
  %1268 = vmatmul.bf16.gmra.mxu0 %v927
  %v1269 = vpop.f32.mrf.mxu0
  %v1270 = vadd.f32 %v1181, %v1269
  %v1271 = vpop.f32.mrf.mxu0
  %v1272 = vadd.f32 %v1183, %v1271
  %1273 = vmatmul.bf16.gmra.mxu0 %v929
  %v1274 = vpop.f32.mrf.mxu0
  %v1275 = vadd.f32 %v1186, %v1274
  %v1276 = vpop.f32.mrf.mxu0
  %v1277 = vadd.f32 %v1188, %v1276
  %1278 = vmatmul.bf16.gmra.mxu0 %v931
  %v1279 = vpop.f32.mrf.mxu0
  %v1280 = vadd.f32 %v1191, %v1279
  %v1281 = vpop.f32.mrf.mxu0
  %v1282 = vadd.f32 %v1193, %v1281
  %1283 = vmatmul.bf16.gmra.mxu0 %v933
  %v1284 = vpop.f32.mrf.mxu0
  %v1285 = vadd.f32 %v1196, %v1284
  %v1286 = vpop.f32.mrf.mxu0
  %v1287 = vadd.f32 %v1198, %v1286
  %1288 = vmatmul.bf16.gmra.mxu0 %v935
  %v1289 = vpop.f32.mrf.mxu0
  %v1290 = vadd.f32 %v1201, %v1289
  %v1291 = vpop.f32.mrf.mxu0
  %v1292 = vadd.f32 %v1203, %v1291
  %1293 = vmatmul.bf16.gmra.mxu0 %v937
  %v1294 = vpop.f32.mrf.mxu0
  %v1295 = vadd.f32 %v1206, %v1294
  %v1296 = vpop.f32.mrf.mxu0
  %v1297 = vadd.f32 %v1208, %v1296
  %1298 = vmatmul.bf16.gmra.mxu0 %v939
  %v1299 = vpop.f32.mrf.mxu0
  %v1300 = vadd.f32 %v1211, %v1299
  %v1301 = vpop.f32.mrf.mxu0
  %v1302 = vadd.f32 %v1213, %v1301
  %1303 = vmatmul.bf16.gmra.mxu0 %v941
  %v1304 = vpop.f32.mrf.mxu0
  %v1305 = vadd.f32 %v1216, %v1304
  %v1306 = vpop.f32.mrf.mxu0
  %v1307 = vadd.f32 %v1218, %v1306
  %1308 = vmatmul.bf16.gmra.mxu0 %v943
  %v1309 = vpop.f32.mrf.mxu0
  %v1310 = vadd.f32 %v1221, %v1309
  %v1311 = vpop.f32.mrf.mxu0
  %v1312 = vadd.f32 %v1223, %v1311
  %1313 = vmatmul.bf16.gmra.mxu0 %v945
  %v1314 = vpop.f32.mrf.mxu0
  %v1315 = vadd.f32 %v1226, %v1314
  %v1316 = vpop.f32.mrf.mxu0
  %v1317 = vadd.f32 %v1228, %v1316
  %1318 = vmatmul.bf16.gmra.mxu0 %v947
  %v1319 = vpop.f32.mrf.mxu0
  %v1320 = vadd.f32 %v1231, %v1319
  %v1321 = vpop.f32.mrf.mxu0
  %v1322 = vadd.f32 %v1233, %v1321
  %1323 = vdwg.mxu0
  %1324 = vmatpush.bf16.msra.mxu0 %v1097
  %1325 = vmatpush.bf16.msra.mxu0 %v1095
  %1326 = vmatpush.bf16.msra.mxu0 %v1093
  %1327 = vmatpush.bf16.msra.mxu0 %v1091
  %1328 = vmatpush.bf16.msra.mxu0 %v1089
  %1329 = vmatpush.bf16.msra.mxu0 %v1087
  %1330 = vmatpush.bf16.msra.mxu0 %v1085
  %1331 = vmatpush.bf16.msra.mxu0 %v1083
  %1332 = vmatmul.bf16.gmra.mxu0 %v916
  %v1333 = vpop.f32.mrf.mxu0
  %v1334 = vadd.f32 %v983, %v1333
  %v1335 = vpop.f32.mrf.mxu0
  %v1336 = vadd.f32 %v983, %v1335
  %1337 = vmatmul.bf16.gmra.mxu0 %v918
  %v1338 = vpop.f32.mrf.mxu0
  %v1339 = vadd.f32 %v983, %v1338
  %v1340 = vpop.f32.mrf.mxu0
  %v1341 = vadd.f32 %v983, %v1340
  %1342 = vmatmul.bf16.gmra.mxu0 %v920
  %v1343 = vpop.f32.mrf.mxu0
  %v1344 = vadd.f32 %v983, %v1343
  %v1345 = vpop.f32.mrf.mxu0
  %v1346 = vadd.f32 %v983, %v1345
  %1347 = vmatmul.bf16.gmra.mxu0 %v922
  %v1348 = vpop.f32.mrf.mxu0
  %v1349 = vadd.f32 %v983, %v1348
  %v1350 = vpop.f32.mrf.mxu0
  %v1351 = vadd.f32 %v983, %v1350
  %1352 = vmatmul.bf16.gmra.mxu0 %v924
  %v1353 = vpop.f32.mrf.mxu0
  %v1354 = vadd.f32 %v983, %v1353
  %v1355 = vpop.f32.mrf.mxu0
  %v1356 = vadd.f32 %v983, %v1355
  %1357 = vmatmul.bf16.gmra.mxu0 %v926
  %v1358 = vpop.f32.mrf.mxu0
  %v1359 = vadd.f32 %v983, %v1358
  %v1360 = vpop.f32.mrf.mxu0
  %v1361 = vadd.f32 %v983, %v1360
  %1362 = vmatmul.bf16.gmra.mxu0 %v928
  %v1363 = vpop.f32.mrf.mxu0
  %v1364 = vadd.f32 %v983, %v1363
  %v1365 = vpop.f32.mrf.mxu0
  %v1366 = vadd.f32 %v983, %v1365
  %1367 = vmatmul.bf16.gmra.mxu0 %v930
  %v1368 = vpop.f32.mrf.mxu0
  %v1369 = vadd.f32 %v983, %v1368
  %v1370 = vpop.f32.mrf.mxu0
  %v1371 = vadd.f32 %v983, %v1370
  %1372 = vmatmul.bf16.gmra.mxu0 %v932
  %v1373 = vpop.f32.mrf.mxu0
  %v1374 = vadd.f32 %v983, %v1373
  %v1375 = vpop.f32.mrf.mxu0
  %v1376 = vadd.f32 %v983, %v1375
  %1377 = vmatmul.bf16.gmra.mxu0 %v934
  %v1378 = vpop.f32.mrf.mxu0
  %v1379 = vadd.f32 %v983, %v1378
  %v1380 = vpop.f32.mrf.mxu0
  %v1381 = vadd.f32 %v983, %v1380
  %1382 = vmatmul.bf16.gmra.mxu0 %v936
  %v1383 = vpop.f32.mrf.mxu0
  %v1384 = vadd.f32 %v983, %v1383
  %v1385 = vpop.f32.mrf.mxu0
  %v1386 = vadd.f32 %v983, %v1385
  %1387 = vmatmul.bf16.gmra.mxu0 %v938
  %v1388 = vpop.f32.mrf.mxu0
  %v1389 = vadd.f32 %v983, %v1388
  %v1390 = vpop.f32.mrf.mxu0
  %v1391 = vadd.f32 %v983, %v1390
  %1392 = vmatmul.bf16.gmra.mxu0 %v940
  %v1393 = vpop.f32.mrf.mxu0
  %v1394 = vadd.f32 %v983, %v1393
  %v1395 = vpop.f32.mrf.mxu0
  %v1396 = vadd.f32 %v983, %v1395
  %1397 = vmatmul.bf16.gmra.mxu0 %v942
  %v1398 = vpop.f32.mrf.mxu0
  %v1399 = vadd.f32 %v983, %v1398
  %v1400 = vpop.f32.mrf.mxu0
  %v1401 = vadd.f32 %v983, %v1400
  %1402 = vmatmul.bf16.gmra.mxu0 %v944
  %v1403 = vpop.f32.mrf.mxu0
  %v1404 = vadd.f32 %v983, %v1403
  %v1405 = vpop.f32.mrf.mxu0
  %v1406 = vadd.f32 %v983, %v1405
  %1407 = vmatmul.bf16.gmra.mxu0 %v946
  %v1408 = vpop.f32.mrf.mxu0
  %v1409 = vadd.f32 %v983, %v1408
  %v1410 = vpop.f32.mrf.mxu0
  %v1411 = vadd.f32 %v983, %v1410
  %1412 = vdwg.mxu0
  %1413 = vmatpush.bf16.msra.mxu0 %v1113
  %1414 = vmatpush.bf16.msra.mxu0 %v1111
  %1415 = vmatpush.bf16.msra.mxu0 %v1109
  %1416 = vmatpush.bf16.msra.mxu0 %v1107
  %1417 = vmatpush.bf16.msra.mxu0 %v1105
  %1418 = vmatpush.bf16.msra.mxu0 %v1103
  %1419 = vmatpush.bf16.msra.mxu0 %v1101
  %1420 = vmatpush.bf16.msra.mxu0 %v1099
  %1421 = vmatmul.bf16.gmra.mxu0 %v917
  %v1422 = vpop.f32.mrf.mxu0
  %v1423 = vadd.f32 %v1334, %v1422
  %v1424 = vpop.f32.mrf.mxu0
  %v1425 = vadd.f32 %v1336, %v1424
  %1426 = vmatmul.bf16.gmra.mxu0 %v919
  %v1427 = vpop.f32.mrf.mxu0
  %v1428 = vadd.f32 %v1339, %v1427
  %v1429 = vpop.f32.mrf.mxu0
  %v1430 = vadd.f32 %v1341, %v1429
  %1431 = vmatmul.bf16.gmra.mxu0 %v921
  %v1432 = vpop.f32.mrf.mxu0
  %v1433 = vadd.f32 %v1344, %v1432
  %v1434 = vpop.f32.mrf.mxu0
  %v1435 = vadd.f32 %v1346, %v1434
  %1436 = vmatmul.bf16.gmra.mxu0 %v923
  %v1437 = vpop.f32.mrf.mxu0
  %v1438 = vadd.f32 %v1349, %v1437
  %v1439 = vpop.f32.mrf.mxu0
  %v1440 = vadd.f32 %v1351, %v1439
  %1441 = vmatmul.bf16.gmra.mxu0 %v925
  %v1442 = vpop.f32.mrf.mxu0
  %v1443 = vadd.f32 %v1354, %v1442
  %v1444 = vpop.f32.mrf.mxu0
  %v1445 = vadd.f32 %v1356, %v1444
  %1446 = vmatmul.bf16.gmra.mxu0 %v927
  %v1447 = vpop.f32.mrf.mxu0
  %v1448 = vadd.f32 %v1359, %v1447
  %v1449 = vpop.f32.mrf.mxu0
  %v1450 = vadd.f32 %v1361, %v1449
  %1451 = vmatmul.bf16.gmra.mxu0 %v929
  %v1452 = vpop.f32.mrf.mxu0
  %v1453 = vadd.f32 %v1364, %v1452
  %v1454 = vpop.f32.mrf.mxu0
  %v1455 = vadd.f32 %v1366, %v1454
  %1456 = vmatmul.bf16.gmra.mxu0 %v931
  %v1457 = vpop.f32.mrf.mxu0
  %v1458 = vadd.f32 %v1369, %v1457
  %v1459 = vpop.f32.mrf.mxu0
  %v1460 = vadd.f32 %v1371, %v1459
  %1461 = vmatmul.bf16.gmra.mxu0 %v933
  %v1462 = vpop.f32.mrf.mxu0
  %v1463 = vadd.f32 %v1374, %v1462
  %v1464 = vpop.f32.mrf.mxu0
  %v1465 = vadd.f32 %v1376, %v1464
  %1466 = vmatmul.bf16.gmra.mxu0 %v935
  %v1467 = vpop.f32.mrf.mxu0
  %v1468 = vadd.f32 %v1379, %v1467
  %v1469 = vpop.f32.mrf.mxu0
  %v1470 = vadd.f32 %v1381, %v1469
  %1471 = vmatmul.bf16.gmra.mxu0 %v937
  %v1472 = vpop.f32.mrf.mxu0
  %v1473 = vadd.f32 %v1384, %v1472
  %v1474 = vpop.f32.mrf.mxu0
  %v1475 = vadd.f32 %v1386, %v1474
  %1476 = vmatmul.bf16.gmra.mxu0 %v939
  %v1477 = vpop.f32.mrf.mxu0
  %v1478 = vadd.f32 %v1389, %v1477
  %v1479 = vpop.f32.mrf.mxu0
  %v1480 = vadd.f32 %v1391, %v1479
  %1481 = vmatmul.bf16.gmra.mxu0 %v941
  %v1482 = vpop.f32.mrf.mxu0
  %v1483 = vadd.f32 %v1394, %v1482
  %v1484 = vpop.f32.mrf.mxu0
  %v1485 = vadd.f32 %v1396, %v1484
  %1486 = vmatmul.bf16.gmra.mxu0 %v943
  %v1487 = vpop.f32.mrf.mxu0
  %v1488 = vadd.f32 %v1399, %v1487
  %v1489 = vpop.f32.mrf.mxu0
  %v1490 = vadd.f32 %v1401, %v1489
  %1491 = vmatmul.bf16.gmra.mxu0 %v945
  %v1492 = vpop.f32.mrf.mxu0
  %v1493 = vadd.f32 %v1404, %v1492
  %v1494 = vpop.f32.mrf.mxu0
  %v1495 = vadd.f32 %v1406, %v1494
  %1496 = vmatmul.bf16.gmra.mxu0 %v947
  %v1497 = vpop.f32.mrf.mxu0
  %v1498 = vadd.f32 %v1409, %v1497
  %v1499 = vpop.f32.mrf.mxu0
  %v1500 = vadd.f32 %v1411, %v1499
  %1501 = vdwg.mxu0
  %v1502 = vld [vmem:[%s7] sm:$0x3]
  %v1503 = vld [vmem:[%s8] sm:$0x3]
  %v1504 = vadd.f32 %v1245, %v1247
  %v1505 = vadd.f32 %v1504, %v1250
  %v1506 = vadd.f32 %v1505, %v1252
  %v1507 = vadd.f32 %v1506, %v1255
  %v1508 = vadd.f32 %v1507, %v1257
  %v1509 = vadd.f32 %v1508, %v1260
  %v1510 = vadd.f32 %v1509, %v1262
  %v1511 = vadd.f32 %v1510, %v1265
  %v1512 = vadd.f32 %v1511, %v1267
  %v1513 = vadd.f32 %v1512, %v1270
  %v1514 = vadd.f32 %v1513, %v1272
  %v1515 = vadd.f32 %v1514, %v1275
  %v1516 = vadd.f32 %v1515, %v1277
  %v1517 = vadd.f32 %v1516, %v1280
  %v1518 = vadd.f32 %v1517, %v1282
  %v1519 = vadd.f32 %v1518, %v1285
  %v1520 = vadd.f32 %v1519, %v1287
  %v1521 = vadd.f32 %v1520, %v1290
  %v1522 = vadd.f32 %v1521, %v1292
  %v1523 = vadd.f32 %v1522, %v1295
  %v1524 = vadd.f32 %v1523, %v1297
  %v1525 = vadd.f32 %v1524, %v1300
  %v1526 = vadd.f32 %v1525, %v1302
  %v1527 = vadd.f32 %v1526, %v1305
  %v1528 = vadd.f32 %v1527, %v1307
  %v1529 = vadd.f32 %v1528, %v1310
  %v1530 = vadd.f32 %v1529, %v1312
  %v1531 = vadd.f32 %v1530, %v1315
  %v1532 = vadd.f32 %v1531, %v1317
  %v1533 = vadd.f32 %v1532, %v1320
  %v1534 = vadd.f32 %v1533, %v1322
  %v1535 = vrot.slane %v1534, 4
  %v1536 = vadd.f32 %v1534, %v1535
  %v1537 = vrot.slane %v1536, 2
  %v1538 = vadd.f32 %v1536, %v1537
  %v1539 = vrot.slane %v1538, 1
  %v1540 = vadd.f32 %v1538, %v1539
  %v1541 = vadd.f32 %v1423, %v1425
  %v1542 = vadd.f32 %v1541, %v1428
  %v1543 = vadd.f32 %v1542, %v1430
  %v1544 = vadd.f32 %v1543, %v1433
  %v1545 = vadd.f32 %v1544, %v1435
  %v1546 = vadd.f32 %v1545, %v1438
  %v1547 = vadd.f32 %v1546, %v1440
  %v1548 = vadd.f32 %v1547, %v1443
  %v1549 = vadd.f32 %v1548, %v1445
  %v1550 = vadd.f32 %v1549, %v1448
  %v1551 = vadd.f32 %v1550, %v1450
  %v1552 = vadd.f32 %v1551, %v1453
  %v1553 = vadd.f32 %v1552, %v1455
  %v1554 = vadd.f32 %v1553, %v1458
  %v1555 = vadd.f32 %v1554, %v1460
  %v1556 = vadd.f32 %v1555, %v1463
  %v1557 = vadd.f32 %v1556, %v1465
  %v1558 = vadd.f32 %v1557, %v1468
  %v1559 = vadd.f32 %v1558, %v1470
  %v1560 = vadd.f32 %v1559, %v1473
  %v1561 = vadd.f32 %v1560, %v1475
  %v1562 = vadd.f32 %v1561, %v1478
  %v1563 = vadd.f32 %v1562, %v1480
  %v1564 = vadd.f32 %v1563, %v1483
  %v1565 = vadd.f32 %v1564, %v1485
  %v1566 = vadd.f32 %v1565, %v1488
  %v1567 = vadd.f32 %v1566, %v1490
  %v1568 = vadd.f32 %v1567, %v1493
  %v1569 = vadd.f32 %v1568, %v1495
  %v1570 = vadd.f32 %v1569, %v1498
  %v1571 = vadd.f32 %v1570, %v1500
  %v1572 = vrot.slane %v1571, 4
  %v1573 = vadd.f32 %v1571, %v1572
  %v1574 = vrot.slane %v1573, 2
  %v1575 = vadd.f32 %v1573, %v1574
  %v1576 = vrot.slane %v1575, 1
  %v1577 = vadd.f32 %v1575, %v1576
  %v1578 = vmul.f32 %v1540, 0.00390625
  %v1579 = vmul.f32 %v1577, 0.00390625
  %v1580 = vmul.f32 %v1245, %v1245
  %v1581 = vmul.f32 %v1423, %v1423
  %v1582 = vmul.f32 %v1247, %v1247
  %v1583 = vmul.f32 %v1425, %v1425
  %v1584 = vmul.f32 %v1250, %v1250
  %v1585 = vmul.f32 %v1428, %v1428
  %v1586 = vmul.f32 %v1252, %v1252
  %v1587 = vmul.f32 %v1430, %v1430
  %v1588 = vmul.f32 %v1255, %v1255
  %v1589 = vmul.f32 %v1433, %v1433
  %v1590 = vmul.f32 %v1257, %v1257
  %v1591 = vmul.f32 %v1435, %v1435
  %v1592 = vmul.f32 %v1260, %v1260
  %v1593 = vmul.f32 %v1438, %v1438
  %v1594 = vmul.f32 %v1262, %v1262
  %v1595 = vmul.f32 %v1440, %v1440
  %v1596 = vmul.f32 %v1265, %v1265
  %v1597 = vmul.f32 %v1443, %v1443
  %v1598 = vmul.f32 %v1267, %v1267
  %v1599 = vmul.f32 %v1445, %v1445
  %v1600 = vmul.f32 %v1270, %v1270
  %v1601 = vmul.f32 %v1448, %v1448
  %v1602 = vmul.f32 %v1272, %v1272
  %v1603 = vmul.f32 %v1450, %v1450
  %v1604 = vmul.f32 %v1275, %v1275
  %v1605 = vmul.f32 %v1453, %v1453
  %v1606 = vmul.f32 %v1277, %v1277
  %v1607 = vmul.f32 %v1455, %v1455
  %v1608 = vmul.f32 %v1280, %v1280
  %v1609 = vmul.f32 %v1458, %v1458
  %v1610 = vmul.f32 %v1282, %v1282
  %v1611 = vmul.f32 %v1460, %v1460
  %v1612 = vmul.f32 %v1285, %v1285
  %v1613 = vmul.f32 %v1463, %v1463
  %v1614 = vmul.f32 %v1287, %v1287
  %v1615 = vmul.f32 %v1465, %v1465
  %v1616 = vmul.f32 %v1290, %v1290
  %v1617 = vmul.f32 %v1468, %v1468
  %v1618 = vmul.f32 %v1292, %v1292
  %v1619 = vmul.f32 %v1470, %v1470
  %v1620 = vmul.f32 %v1295, %v1295
  %v1621 = vmul.f32 %v1473, %v1473
  %v1622 = vmul.f32 %v1297, %v1297
  %v1623 = vmul.f32 %v1475, %v1475
  %v1624 = vmul.f32 %v1300, %v1300
  %v1625 = vmul.f32 %v1478, %v1478
  %v1626 = vmul.f32 %v1302, %v1302
  %v1627 = vmul.f32 %v1480, %v1480
  %v1628 = vmul.f32 %v1305, %v1305
  %v1629 = vmul.f32 %v1483, %v1483
  %v1630 = vmul.f32 %v1307, %v1307
  %v1631 = vmul.f32 %v1485, %v1485
  %v1632 = vmul.f32 %v1310, %v1310
  %v1633 = vmul.f32 %v1488, %v1488
  %v1634 = vmul.f32 %v1312, %v1312
  %v1635 = vmul.f32 %v1490, %v1490
  %v1636 = vmul.f32 %v1315, %v1315
  %v1637 = vmul.f32 %v1493, %v1493
  %v1638 = vmul.f32 %v1317, %v1317
  %v1639 = vmul.f32 %v1495, %v1495
  %v1640 = vmul.f32 %v1320, %v1320
  %v1641 = vmul.f32 %v1498, %v1498
  %v1642 = vmul.f32 %v1322, %v1322
  %v1643 = vmul.f32 %v1500, %v1500
  %v1644 = vadd.f32 %v1580, %v1582
  %v1645 = vadd.f32 %v1644, %v1584
  %v1646 = vadd.f32 %v1645, %v1586
  %v1647 = vadd.f32 %v1646, %v1588
  %v1648 = vadd.f32 %v1647, %v1590
  %v1649 = vadd.f32 %v1648, %v1592
  %v1650 = vadd.f32 %v1649, %v1594
  %v1651 = vadd.f32 %v1650, %v1596
  %v1652 = vadd.f32 %v1651, %v1598
  %v1653 = vadd.f32 %v1652, %v1600
  %v1654 = vadd.f32 %v1653, %v1602
  %v1655 = vadd.f32 %v1654, %v1604
  %v1656 = vadd.f32 %v1655, %v1606
  %v1657 = vadd.f32 %v1656, %v1608
  %v1658 = vadd.f32 %v1657, %v1610
  %v1659 = vadd.f32 %v1658, %v1612
  %v1660 = vadd.f32 %v1659, %v1614
  %v1661 = vadd.f32 %v1660, %v1616
  %v1662 = vadd.f32 %v1661, %v1618
  %v1663 = vadd.f32 %v1662, %v1620
  %v1664 = vadd.f32 %v1663, %v1622
  %v1665 = vadd.f32 %v1664, %v1624
  %v1666 = vadd.f32 %v1665, %v1626
  %v1667 = vadd.f32 %v1666, %v1628
  %v1668 = vadd.f32 %v1667, %v1630
  %v1669 = vadd.f32 %v1668, %v1632
  %v1670 = vadd.f32 %v1669, %v1634
  %v1671 = vadd.f32 %v1670, %v1636
  %v1672 = vadd.f32 %v1671, %v1638
  %v1673 = vadd.f32 %v1672, %v1640
  %v1674 = vadd.f32 %v1673, %v1642
  %v1675 = vrot.slane %v1674, 4
  %v1676 = vadd.f32 %v1674, %v1675
  %v1677 = vrot.slane %v1676, 2
  %v1678 = vadd.f32 %v1676, %v1677
  %v1679 = vrot.slane %v1678, 1
  %v1680 = vadd.f32 %v1678, %v1679
  %v1681 = vadd.f32 %v1581, %v1583
  %v1682 = vadd.f32 %v1681, %v1585
  %v1683 = vadd.f32 %v1682, %v1587
  %v1684 = vadd.f32 %v1683, %v1589
  %v1685 = vadd.f32 %v1684, %v1591
  %v1686 = vadd.f32 %v1685, %v1593
  %v1687 = vadd.f32 %v1686, %v1595
  %v1688 = vadd.f32 %v1687, %v1597
  %v1689 = vadd.f32 %v1688, %v1599
  %v1690 = vadd.f32 %v1689, %v1601
  %v1691 = vadd.f32 %v1690, %v1603
  %v1692 = vadd.f32 %v1691, %v1605
  %v1693 = vadd.f32 %v1692, %v1607
  %v1694 = vadd.f32 %v1693, %v1609
  %v1695 = vadd.f32 %v1694, %v1611
  %v1696 = vadd.f32 %v1695, %v1613
  %v1697 = vadd.f32 %v1696, %v1615
  %v1698 = vadd.f32 %v1697, %v1617
  %v1699 = vadd.f32 %v1698, %v1619
  %v1700 = vadd.f32 %v1699, %v1621
  %v1701 = vadd.f32 %v1700, %v1623
  %v1702 = vadd.f32 %v1701, %v1625
  %v1703 = vadd.f32 %v1702, %v1627
  %v1704 = vadd.f32 %v1703, %v1629
  %v1705 = vadd.f32 %v1704, %v1631
  %v1706 = vadd.f32 %v1705, %v1633
  %v1707 = vadd.f32 %v1706, %v1635
  %v1708 = vadd.f32 %v1707, %v1637
  %v1709 = vadd.f32 %v1708, %v1639
  %v1710 = vadd.f32 %v1709, %v1641
  %v1711 = vadd.f32 %v1710, %v1643
  %v1712 = vrot.slane %v1711, 4
  %v1713 = vadd.f32 %v1711, %v1712
  %v1714 = vrot.slane %v1713, 2
  %v1715 = vadd.f32 %v1713, %v1714
  %v1716 = vrot.slane %v1715, 1
  %v1717 = vadd.f32 %v1715, %v1716
  %v1718 = vmul.f32 %v1680, 0.00390625
  %v1719 = vmul.f32 %v1717, 0.00390625
  %v1720 = vmul.f32 %v1578, %v1578
  %v1721 = vmul.f32 %v1579, %v1579
  %v1722 = vsub.f32 %v1718, %v1720
  %v1723 = vsub.f32 %v1719, %v1721
  %v1724 = vmax.f32 %v1722, 0.0
  %v1725 = vmax.f32 %v1723, 0.0
  %v1726 = vadd.f32 %v1724, 1e-05
  %v1727 = vadd.f32 %v1725, 1e-05
  %v1728 = vrsqrt.pop %v1726
  %v1729 = vmul.f32 %v1728, %v1726
  %v1730 = vmul.f32 %v1729, %v1728
  %v1731 = vmul.f32 0.5, %v1730
  %v1732 = vsub.f32 1.5, %v1731
  %v1733 = vmul.f32 %v1728, %v1732
  %vm1734 = vweird.f32 %v1726
  %vm1735 = vweird.f32 %v1728
  %vm1736 = vmor %vm1734, %vm1735
  %v1737 = vsel %vm1736, %v1728, %v1733
  %v1738 = vrsqrt.pop %v1727
  %v1739 = vmul.f32 %v1738, %v1727
  %v1740 = vmul.f32 %v1739, %v1738
  %v1741 = vmul.f32 0.5, %v1740
  %v1742 = vsub.f32 1.5, %v1741
  %v1743 = vmul.f32 %v1738, %v1742
  %vm1744 = vweird.f32 %v1727
  %vm1745 = vweird.f32 %v1738
  %vm1746 = vmor %vm1744, %vm1745
  %v1747 = vsel %vm1746, %v1738, %v1743
  %v1750 = vrot.slane %v1747, 7
  %v1751 = vsel %vm702, %v1737, %v1750
  %v1753 = vmul.f32 %v1502, %v1751
  %v1755 = vperm.slane %v1753, 0
  %v1756 = vperm.slane %v1753, 1
  %v1759 = vmul.f32 %v1245, %v1755
  %v1760 = vmul.f32 %v1423, %v1756
  %v1761 = vmul.f32 %v1247, %v1755
  %v1762 = vmul.f32 %v1425, %v1756
  %v1763 = vmul.f32 %v1250, %v1755
  %v1764 = vmul.f32 %v1428, %v1756
  %v1765 = vmul.f32 %v1252, %v1755
  %v1766 = vmul.f32 %v1430, %v1756
  %v1767 = vmul.f32 %v1255, %v1755
  %v1768 = vmul.f32 %v1433, %v1756
  %v1769 = vmul.f32 %v1257, %v1755
  %v1770 = vmul.f32 %v1435, %v1756
  %v1771 = vmul.f32 %v1260, %v1755
  %v1772 = vmul.f32 %v1438, %v1756
  %v1773 = vmul.f32 %v1262, %v1755
  %v1774 = vmul.f32 %v1440, %v1756
  %v1775 = vmul.f32 %v1265, %v1755
  %v1776 = vmul.f32 %v1443, %v1756
  %v1777 = vmul.f32 %v1267, %v1755
  %v1778 = vmul.f32 %v1445, %v1756
  %v1779 = vmul.f32 %v1270, %v1755
  %v1780 = vmul.f32 %v1448, %v1756
  %v1781 = vmul.f32 %v1272, %v1755
  %v1782 = vmul.f32 %v1450, %v1756
  %v1783 = vmul.f32 %v1275, %v1755
  %v1784 = vmul.f32 %v1453, %v1756
  %v1785 = vmul.f32 %v1277, %v1755
  %v1786 = vmul.f32 %v1455, %v1756
  %v1787 = vmul.f32 %v1280, %v1755
  %v1788 = vmul.f32 %v1458, %v1756
  %v1789 = vmul.f32 %v1282, %v1755
  %v1790 = vmul.f32 %v1460, %v1756
  %v1791 = vmul.f32 %v1285, %v1755
  %v1792 = vmul.f32 %v1463, %v1756
  %v1793 = vmul.f32 %v1287, %v1755
  %v1794 = vmul.f32 %v1465, %v1756
  %v1795 = vmul.f32 %v1290, %v1755
  %v1796 = vmul.f32 %v1468, %v1756
  %v1797 = vmul.f32 %v1292, %v1755
  %v1798 = vmul.f32 %v1470, %v1756
  %v1799 = vmul.f32 %v1295, %v1755
  %v1800 = vmul.f32 %v1473, %v1756
  %v1801 = vmul.f32 %v1297, %v1755
  %v1802 = vmul.f32 %v1475, %v1756
  %v1803 = vmul.f32 %v1300, %v1755
  %v1804 = vmul.f32 %v1478, %v1756
  %v1805 = vmul.f32 %v1302, %v1755
  %v1806 = vmul.f32 %v1480, %v1756
  %v1807 = vmul.f32 %v1305, %v1755
  %v1808 = vmul.f32 %v1483, %v1756
  %v1809 = vmul.f32 %v1307, %v1755
  %v1810 = vmul.f32 %v1485, %v1756
  %v1811 = vmul.f32 %v1310, %v1755
  %v1812 = vmul.f32 %v1488, %v1756
  %v1813 = vmul.f32 %v1312, %v1755
  %v1814 = vmul.f32 %v1490, %v1756
  %v1815 = vmul.f32 %v1315, %v1755
  %v1816 = vmul.f32 %v1493, %v1756
  %v1817 = vmul.f32 %v1317, %v1755
  %v1818 = vmul.f32 %v1495, %v1756
  %v1819 = vmul.f32 %v1320, %v1755
  %v1820 = vmul.f32 %v1498, %v1756
  %v1821 = vmul.f32 %v1322, %v1755
  %v1822 = vmul.f32 %v1500, %v1756
  %v1823 = vmul.f32 %v1578, %v1755
  %v1824 = vmul.f32 %v1579, %v1756
  %v1827 = vrot.slane %v1824, 7
  %v1828 = vsel %vm702, %v1823, %v1827
  %v1830 = vsub.f32 %v1503, %v1828
  %v1832 = vperm.slane %v1830, 0
  %v1833 = vperm.slane %v1830, 1
  %v1836 = vadd.f32 %v1759, %v1832
  %v1837 = vadd.f32 %v1760, %v1833
  %v1838 = vadd.f32 %v1761, %v1832
  %v1839 = vadd.f32 %v1762, %v1833
  %v1840 = vadd.f32 %v1763, %v1832
  %v1841 = vadd.f32 %v1764, %v1833
  %v1842 = vadd.f32 %v1765, %v1832
  %v1843 = vadd.f32 %v1766, %v1833
  %v1844 = vadd.f32 %v1767, %v1832
  %v1845 = vadd.f32 %v1768, %v1833
  %v1846 = vadd.f32 %v1769, %v1832
  %v1847 = vadd.f32 %v1770, %v1833
  %v1848 = vadd.f32 %v1771, %v1832
  %v1849 = vadd.f32 %v1772, %v1833
  %v1850 = vadd.f32 %v1773, %v1832
  %v1851 = vadd.f32 %v1774, %v1833
  %v1852 = vadd.f32 %v1775, %v1832
  %v1853 = vadd.f32 %v1776, %v1833
  %v1854 = vadd.f32 %v1777, %v1832
  %v1855 = vadd.f32 %v1778, %v1833
  %v1856 = vadd.f32 %v1779, %v1832
  %v1857 = vadd.f32 %v1780, %v1833
  %v1858 = vadd.f32 %v1781, %v1832
  %v1859 = vadd.f32 %v1782, %v1833
  %v1860 = vadd.f32 %v1783, %v1832
  %v1861 = vadd.f32 %v1784, %v1833
  %v1862 = vadd.f32 %v1785, %v1832
  %v1863 = vadd.f32 %v1786, %v1833
  %v1864 = vadd.f32 %v1787, %v1832
  %v1865 = vadd.f32 %v1788, %v1833
  %v1866 = vadd.f32 %v1789, %v1832
  %v1867 = vadd.f32 %v1790, %v1833
  %v1868 = vadd.f32 %v1791, %v1832
  %v1869 = vadd.f32 %v1792, %v1833
  %v1870 = vadd.f32 %v1793, %v1832
  %v1871 = vadd.f32 %v1794, %v1833
  %v1872 = vadd.f32 %v1795, %v1832
  %v1873 = vadd.f32 %v1796, %v1833
  %v1874 = vadd.f32 %v1797, %v1832
  %v1875 = vadd.f32 %v1798, %v1833
  %v1876 = vadd.f32 %v1799, %v1832
  %v1877 = vadd.f32 %v1800, %v1833
  %v1878 = vadd.f32 %v1801, %v1832
  %v1879 = vadd.f32 %v1802, %v1833
  %v1880 = vadd.f32 %v1803, %v1832
  %v1881 = vadd.f32 %v1804, %v1833
  %v1882 = vadd.f32 %v1805, %v1832
  %v1883 = vadd.f32 %v1806, %v1833
  %v1884 = vadd.f32 %v1807, %v1832
  %v1885 = vadd.f32 %v1808, %v1833
  %v1886 = vadd.f32 %v1809, %v1832
  %v1887 = vadd.f32 %v1810, %v1833
  %v1888 = vadd.f32 %v1811, %v1832
  %v1889 = vadd.f32 %v1812, %v1833
  %v1890 = vadd.f32 %v1813, %v1832
  %v1891 = vadd.f32 %v1814, %v1833
  %v1892 = vadd.f32 %v1815, %v1832
  %v1893 = vadd.f32 %v1816, %v1833
  %v1894 = vadd.f32 %v1817, %v1832
  %v1895 = vadd.f32 %v1818, %v1833
  %v1896 = vadd.f32 %v1819, %v1832
  %v1897 = vadd.f32 %v1820, %v1833
  %v1898 = vadd.f32 %v1821, %v1832
  %v1899 = vadd.f32 %v1822, %v1833
  %v1900 = vmax.f32 %v1836, 0.0
  %v1901 = vmax.f32 %v1837, 0.0
  %v1902 = vmax.f32 %v1838, 0.0
  %v1903 = vmax.f32 %v1839, 0.0
  %v1904 = vmax.f32 %v1840, 0.0
  %v1905 = vmax.f32 %v1841, 0.0
  %v1906 = vmax.f32 %v1842, 0.0
  %v1907 = vmax.f32 %v1843, 0.0
  %v1908 = vmax.f32 %v1844, 0.0
  %v1909 = vmax.f32 %v1845, 0.0
  %v1910 = vmax.f32 %v1846, 0.0
  %v1911 = vmax.f32 %v1847, 0.0
  %v1912 = vmax.f32 %v1848, 0.0
  %v1913 = vmax.f32 %v1849, 0.0
  %v1914 = vmax.f32 %v1850, 0.0
  %v1915 = vmax.f32 %v1851, 0.0
  %v1916 = vmax.f32 %v1852, 0.0
  %v1917 = vmax.f32 %v1853, 0.0
  %v1918 = vmax.f32 %v1854, 0.0
  %v1919 = vmax.f32 %v1855, 0.0
  %v1920 = vmax.f32 %v1856, 0.0
  %v1921 = vmax.f32 %v1857, 0.0
  %v1922 = vmax.f32 %v1858, 0.0
  %v1923 = vmax.f32 %v1859, 0.0
  %v1924 = vmax.f32 %v1860, 0.0
  %v1925 = vmax.f32 %v1861, 0.0
  %v1926 = vmax.f32 %v1862, 0.0
  %v1927 = vmax.f32 %v1863, 0.0
  %v1928 = vmax.f32 %v1864, 0.0
  %v1929 = vmax.f32 %v1865, 0.0
  %v1930 = vmax.f32 %v1866, 0.0
  %v1931 = vmax.f32 %v1867, 0.0
  %v1932 = vmax.f32 %v1868, 0.0
  %v1933 = vmax.f32 %v1869, 0.0
  %v1934 = vmax.f32 %v1870, 0.0
  %v1935 = vmax.f32 %v1871, 0.0
  %v1936 = vmax.f32 %v1872, 0.0
  %v1937 = vmax.f32 %v1873, 0.0
  %v1938 = vmax.f32 %v1874, 0.0
  %v1939 = vmax.f32 %v1875, 0.0
  %v1940 = vmax.f32 %v1876, 0.0
  %v1941 = vmax.f32 %v1877, 0.0
  %v1942 = vmax.f32 %v1878, 0.0
  %v1943 = vmax.f32 %v1879, 0.0
  %v1944 = vmax.f32 %v1880, 0.0
  %v1945 = vmax.f32 %v1881, 0.0
  %v1946 = vmax.f32 %v1882, 0.0
  %v1947 = vmax.f32 %v1883, 0.0
  %v1948 = vmax.f32 %v1884, 0.0
  %v1949 = vmax.f32 %v1885, 0.0
  %v1950 = vmax.f32 %v1886, 0.0
  %v1951 = vmax.f32 %v1887, 0.0
  %v1952 = vmax.f32 %v1888, 0.0
  %v1953 = vmax.f32 %v1889, 0.0
  %v1954 = vmax.f32 %v1890, 0.0
  %v1955 = vmax.f32 %v1891, 0.0
  %v1956 = vmax.f32 %v1892, 0.0
  %v1957 = vmax.f32 %v1893, 0.0
  %v1958 = vmax.f32 %v1894, 0.0
  %v1959 = vmax.f32 %v1895, 0.0
  %v1960 = vmax.f32 %v1896, 0.0
  %v1961 = vmax.f32 %v1897, 0.0
  %v1962 = vmax.f32 %v1898, 0.0
  %v1963 = vmax.f32 %v1899, 0.0
  %v1964 = vpack.c.bf16 %v1902, %v1900
  %v1965 = vpack.c.bf16 %v1903, %v1901
  %v1966 = vpack.c.bf16 %v1906, %v1904
  %v1967 = vpack.c.bf16 %v1907, %v1905
  %v1968 = vpack.c.bf16 %v1910, %v1908
  %v1969 = vpack.c.bf16 %v1911, %v1909
  %v1970 = vpack.c.bf16 %v1914, %v1912
  %v1971 = vpack.c.bf16 %v1915, %v1913
  %v1972 = vpack.c.bf16 %v1918, %v1916
  %v1973 = vpack.c.bf16 %v1919, %v1917
  %v1974 = vpack.c.bf16 %v1922, %v1920
  %v1975 = vpack.c.bf16 %v1923, %v1921
  %v1976 = vpack.c.bf16 %v1926, %v1924
  %v1977 = vpack.c.bf16 %v1927, %v1925
  %v1978 = vpack.c.bf16 %v1930, %v1928
  %v1979 = vpack.c.bf16 %v1931, %v1929
  %v1980 = vpack.c.bf16 %v1934, %v1932
  %v1981 = vpack.c.bf16 %v1935, %v1933
  %v1982 = vpack.c.bf16 %v1938, %v1936
  %v1983 = vpack.c.bf16 %v1939, %v1937
  %v1984 = vpack.c.bf16 %v1942, %v1940
  %v1985 = vpack.c.bf16 %v1943, %v1941
  %v1986 = vpack.c.bf16 %v1946, %v1944
  %v1987 = vpack.c.bf16 %v1947, %v1945
  %v1988 = vpack.c.bf16 %v1950, %v1948
  %v1989 = vpack.c.bf16 %v1951, %v1949
  %v1990 = vpack.c.bf16 %v1954, %v1952
  %v1991 = vpack.c.bf16 %v1955, %v1953
  %v1992 = vpack.c.bf16 %v1958, %v1956
  %v1993 = vpack.c.bf16 %v1959, %v1957
  %v1994 = vpack.c.bf16 %v1962, %v1960
  %v1995 = vpack.c.bf16 %v1963, %v1961
  %v1996 = vld [vmem:[%s9] sm:$0xf]
  %v1997 = vld [vmem:[%s9 + $0x4] sm:$0xf]
  %v1998 = vld [vmem:[%s9 + $0x8] sm:$0xf]
  %v1999 = vld [vmem:[%s9 + $0xc] sm:$0xf]
  %v2000 = vld [vmem:[%s9 + $0x10] sm:$0xf]
  %v2001 = vld [vmem:[%s9 + $0x14] sm:$0xf]
  %v2002 = vld [vmem:[%s9 + $0x18] sm:$0xf]
  %v2003 = vld [vmem:[%s9 + $0x1c] sm:$0xf]
  %v2004 = vld [vmem:[%s9 + $0x20] sm:$0xf]
  %v2005 = vld [vmem:[%s9 + $0x24] sm:$0xf]
  %v2006 = vld [vmem:[%s9 + $0x28] sm:$0xf]
  %v2007 = vld [vmem:[%s9 + $0x2c] sm:$0xf]
  %v2008 = vld [vmem:[%s9 + $0x30] sm:$0xf]
  %v2009 = vld [vmem:[%s9 + $0x34] sm:$0xf]
  %v2010 = vld [vmem:[%s9 + $0x38] sm:$0xf]
  %v2011 = vld [vmem:[%s9 + $0x3c] sm:$0xf]
  %v2012 = vld [vmem:[%s9 + $0x40] sm:$0xf]
  %v2013 = vld [vmem:[%s9 + $0x44] sm:$0xf]
  %v2014 = vld [vmem:[%s9 + $0x48] sm:$0xf]
  %v2015 = vld [vmem:[%s9 + $0x4c] sm:$0xf]
  %v2016 = vld [vmem:[%s9 + $0x50] sm:$0xf]
  %v2017 = vld [vmem:[%s9 + $0x54] sm:$0xf]
  %v2018 = vld [vmem:[%s9 + $0x58] sm:$0xf]
  %v2019 = vld [vmem:[%s9 + $0x5c] sm:$0xf]
  %v2020 = vld [vmem:[%s9 + $0x60] sm:$0xf]
  %v2021 = vld [vmem:[%s9 + $0x64] sm:$0xf]
  %v2022 = vld [vmem:[%s9 + $0x68] sm:$0xf]
  %v2023 = vld [vmem:[%s9 + $0x6c] sm:$0xf]
  %v2024 = vld [vmem:[%s9 + $0x70] sm:$0xf]
  %v2025 = vld [vmem:[%s9 + $0x74] sm:$0xf]
  %v2026 = vld [vmem:[%s9 + $0x78] sm:$0xf]
  %v2027 = vld [vmem:[%s9 + $0x7c] sm:$0xf]
  %v2028 = vld [vmem:[%s10] sm:$0x1]
  %v2030 = vperm.slane %v2028, 0
  %v2064 = vunpack.c.l.b16 %v1996
  %v2065 = vunpack.c.l.b16 %v1997
  %v2066 = vunpack.c.l.b16 %v1998
  %v2067 = vunpack.c.l.b16 %v1999
  %v2068 = vunpack.c.l.b16 %v2000
  %v2069 = vunpack.c.l.b16 %v2001
  %v2070 = vunpack.c.l.b16 %v2002
  %v2071 = vunpack.c.l.b16 %v2003
  %v2072 = vunpack.c.l.b16 %v2004
  %v2073 = vunpack.c.l.b16 %v2005
  %v2074 = vunpack.c.l.b16 %v2006
  %v2075 = vunpack.c.l.b16 %v2007
  %v2076 = vunpack.c.l.b16 %v2008
  %v2077 = vunpack.c.l.b16 %v2009
  %v2078 = vunpack.c.l.b16 %v2010
  %v2079 = vunpack.c.l.b16 %v2011
  %v2080 = vunpack.c.l.b16 %v2012
  %v2081 = vunpack.c.l.b16 %v2013
  %v2082 = vunpack.c.l.b16 %v2014
  %v2083 = vunpack.c.l.b16 %v2015
  %v2084 = vunpack.c.l.b16 %v2016
  %v2085 = vunpack.c.l.b16 %v2017
  %v2086 = vunpack.c.l.b16 %v2018
  %v2087 = vunpack.c.l.b16 %v2019
  %v2088 = vunpack.c.l.b16 %v2020
  %v2089 = vunpack.c.l.b16 %v2021
  %v2090 = vunpack.c.l.b16 %v2022
  %v2091 = vunpack.c.l.b16 %v2023
  %v2092 = vunpack.c.l.b16 %v2024
  %v2093 = vunpack.c.l.b16 %v2025
  %v2094 = vunpack.c.l.b16 %v2026
  %v2095 = vunpack.c.l.b16 %v2027
  %v2096 = vpack.c.b16 %v2065, %v2064
  %v2097 = vpack.c.b16 %v2067, %v2066
  %v2098 = vpack.c.b16 %v2069, %v2068
  %v2099 = vpack.c.b16 %v2071, %v2070
  %v2100 = vpack.c.b16 %v2073, %v2072
  %v2101 = vpack.c.b16 %v2075, %v2074
  %v2102 = vpack.c.b16 %v2077, %v2076
  %v2103 = vpack.c.b16 %v2079, %v2078
  %v2104 = vpack.c.b16 %v2081, %v2080
  %v2105 = vpack.c.b16 %v2083, %v2082
  %v2106 = vpack.c.b16 %v2085, %v2084
  %v2107 = vpack.c.b16 %v2087, %v2086
  %v2108 = vpack.c.b16 %v2089, %v2088
  %v2109 = vpack.c.b16 %v2091, %v2090
  %v2110 = vpack.c.b16 %v2093, %v2092
  %v2111 = vpack.c.b16 %v2095, %v2094
  %2128 = vmatpush.bf16.msra.mxu0 %v2103
  %2129 = vmatpush.bf16.msra.mxu0 %v2102
  %2130 = vmatpush.bf16.msra.mxu0 %v2101
  %2131 = vmatpush.bf16.msra.mxu0 %v2100
  %2132 = vmatpush.bf16.msra.mxu0 %v2099
  %2133 = vmatpush.bf16.msra.mxu0 %v2098
  %2134 = vmatpush.bf16.msra.mxu0 %v2097
  %2135 = vmatpush.bf16.msra.mxu0 %v2096
  %2136 = vmatmul.bf16.gmra.mxu0 %v1964
  %v2137 = vpop.f32.mrf.mxu0
  %v2138 = vadd.f32 %v2030, %v2137
  %v2139 = vpop.f32.mrf.mxu0
  %v2140 = vadd.f32 %v2030, %v2139
  %2141 = vmatmul.bf16.gmra.mxu0 %v1966
  %v2142 = vpop.f32.mrf.mxu0
  %v2143 = vadd.f32 %v2030, %v2142
  %v2144 = vpop.f32.mrf.mxu0
  %v2145 = vadd.f32 %v2030, %v2144
  %2146 = vmatmul.bf16.gmra.mxu0 %v1968
  %v2147 = vpop.f32.mrf.mxu0
  %v2148 = vadd.f32 %v2030, %v2147
  %v2149 = vpop.f32.mrf.mxu0
  %v2150 = vadd.f32 %v2030, %v2149
  %2151 = vmatmul.bf16.gmra.mxu0 %v1970
  %v2152 = vpop.f32.mrf.mxu0
  %v2153 = vadd.f32 %v2030, %v2152
  %v2154 = vpop.f32.mrf.mxu0
  %v2155 = vadd.f32 %v2030, %v2154
  %2156 = vmatmul.bf16.gmra.mxu0 %v1972
  %v2157 = vpop.f32.mrf.mxu0
  %v2158 = vadd.f32 %v2030, %v2157
  %v2159 = vpop.f32.mrf.mxu0
  %v2160 = vadd.f32 %v2030, %v2159
  %2161 = vmatmul.bf16.gmra.mxu0 %v1974
  %v2162 = vpop.f32.mrf.mxu0
  %v2163 = vadd.f32 %v2030, %v2162
  %v2164 = vpop.f32.mrf.mxu0
  %v2165 = vadd.f32 %v2030, %v2164
  %2166 = vmatmul.bf16.gmra.mxu0 %v1976
  %v2167 = vpop.f32.mrf.mxu0
  %v2168 = vadd.f32 %v2030, %v2167
  %v2169 = vpop.f32.mrf.mxu0
  %v2170 = vadd.f32 %v2030, %v2169
  %2171 = vmatmul.bf16.gmra.mxu0 %v1978
  %v2172 = vpop.f32.mrf.mxu0
  %v2173 = vadd.f32 %v2030, %v2172
  %v2174 = vpop.f32.mrf.mxu0
  %v2175 = vadd.f32 %v2030, %v2174
  %2176 = vmatmul.bf16.gmra.mxu0 %v1980
  %v2177 = vpop.f32.mrf.mxu0
  %v2178 = vadd.f32 %v2030, %v2177
  %v2179 = vpop.f32.mrf.mxu0
  %v2180 = vadd.f32 %v2030, %v2179
  %2181 = vmatmul.bf16.gmra.mxu0 %v1982
  %v2182 = vpop.f32.mrf.mxu0
  %v2183 = vadd.f32 %v2030, %v2182
  %v2184 = vpop.f32.mrf.mxu0
  %v2185 = vadd.f32 %v2030, %v2184
  %2186 = vmatmul.bf16.gmra.mxu0 %v1984
  %v2187 = vpop.f32.mrf.mxu0
  %v2188 = vadd.f32 %v2030, %v2187
  %v2189 = vpop.f32.mrf.mxu0
  %v2190 = vadd.f32 %v2030, %v2189
  %2191 = vmatmul.bf16.gmra.mxu0 %v1986
  %v2192 = vpop.f32.mrf.mxu0
  %v2193 = vadd.f32 %v2030, %v2192
  %v2194 = vpop.f32.mrf.mxu0
  %v2195 = vadd.f32 %v2030, %v2194
  %2196 = vmatmul.bf16.gmra.mxu0 %v1988
  %v2197 = vpop.f32.mrf.mxu0
  %v2198 = vadd.f32 %v2030, %v2197
  %v2199 = vpop.f32.mrf.mxu0
  %v2200 = vadd.f32 %v2030, %v2199
  %2201 = vmatmul.bf16.gmra.mxu0 %v1990
  %v2202 = vpop.f32.mrf.mxu0
  %v2203 = vadd.f32 %v2030, %v2202
  %v2204 = vpop.f32.mrf.mxu0
  %v2205 = vadd.f32 %v2030, %v2204
  %2206 = vmatmul.bf16.gmra.mxu0 %v1992
  %v2207 = vpop.f32.mrf.mxu0
  %v2208 = vadd.f32 %v2030, %v2207
  %v2209 = vpop.f32.mrf.mxu0
  %v2210 = vadd.f32 %v2030, %v2209
  %2211 = vmatmul.bf16.gmra.mxu0 %v1994
  %v2212 = vpop.f32.mrf.mxu0
  %v2213 = vadd.f32 %v2030, %v2212
  %v2214 = vpop.f32.mrf.mxu0
  %v2215 = vadd.f32 %v2030, %v2214
  %2216 = vdwg.mxu0
  %2217 = vmatpush.bf16.msra.mxu0 %v2111
  %2218 = vmatpush.bf16.msra.mxu0 %v2110
  %2219 = vmatpush.bf16.msra.mxu0 %v2109
  %2220 = vmatpush.bf16.msra.mxu0 %v2108
  %2221 = vmatpush.bf16.msra.mxu0 %v2107
  %2222 = vmatpush.bf16.msra.mxu0 %v2106
  %2223 = vmatpush.bf16.msra.mxu0 %v2105
  %2224 = vmatpush.bf16.msra.mxu0 %v2104
  %2225 = vmatmul.bf16.gmra.mxu0 %v1965
  %v2226 = vpop.f32.mrf.mxu0
  %v2227 = vadd.f32 %v2138, %v2226
  %v2228 = vpop.f32.mrf.mxu0
  %v2229 = vadd.f32 %v2140, %v2228
  %2230 = vmatmul.bf16.gmra.mxu0 %v1967
  %v2231 = vpop.f32.mrf.mxu0
  %v2232 = vadd.f32 %v2143, %v2231
  %v2233 = vpop.f32.mrf.mxu0
  %v2234 = vadd.f32 %v2145, %v2233
  %2235 = vmatmul.bf16.gmra.mxu0 %v1969
  %v2236 = vpop.f32.mrf.mxu0
  %v2237 = vadd.f32 %v2148, %v2236
  %v2238 = vpop.f32.mrf.mxu0
  %v2239 = vadd.f32 %v2150, %v2238
  %2240 = vmatmul.bf16.gmra.mxu0 %v1971
  %v2241 = vpop.f32.mrf.mxu0
  %v2242 = vadd.f32 %v2153, %v2241
  %v2243 = vpop.f32.mrf.mxu0
  %v2244 = vadd.f32 %v2155, %v2243
  %2245 = vmatmul.bf16.gmra.mxu0 %v1973
  %v2246 = vpop.f32.mrf.mxu0
  %v2247 = vadd.f32 %v2158, %v2246
  %v2248 = vpop.f32.mrf.mxu0
  %v2249 = vadd.f32 %v2160, %v2248
  %2250 = vmatmul.bf16.gmra.mxu0 %v1975
  %v2251 = vpop.f32.mrf.mxu0
  %v2252 = vadd.f32 %v2163, %v2251
  %v2253 = vpop.f32.mrf.mxu0
  %v2254 = vadd.f32 %v2165, %v2253
  %2255 = vmatmul.bf16.gmra.mxu0 %v1977
  %v2256 = vpop.f32.mrf.mxu0
  %v2257 = vadd.f32 %v2168, %v2256
  %v2258 = vpop.f32.mrf.mxu0
  %v2259 = vadd.f32 %v2170, %v2258
  %2260 = vmatmul.bf16.gmra.mxu0 %v1979
  %v2261 = vpop.f32.mrf.mxu0
  %v2262 = vadd.f32 %v2173, %v2261
  %v2263 = vpop.f32.mrf.mxu0
  %v2264 = vadd.f32 %v2175, %v2263
  %2265 = vmatmul.bf16.gmra.mxu0 %v1981
  %v2266 = vpop.f32.mrf.mxu0
  %v2267 = vadd.f32 %v2178, %v2266
  %v2268 = vpop.f32.mrf.mxu0
  %v2269 = vadd.f32 %v2180, %v2268
  %2270 = vmatmul.bf16.gmra.mxu0 %v1983
  %v2271 = vpop.f32.mrf.mxu0
  %v2272 = vadd.f32 %v2183, %v2271
  %v2273 = vpop.f32.mrf.mxu0
  %v2274 = vadd.f32 %v2185, %v2273
  %2275 = vmatmul.bf16.gmra.mxu0 %v1985
  %v2276 = vpop.f32.mrf.mxu0
  %v2277 = vadd.f32 %v2188, %v2276
  %v2278 = vpop.f32.mrf.mxu0
  %v2279 = vadd.f32 %v2190, %v2278
  %2280 = vmatmul.bf16.gmra.mxu0 %v1987
  %v2281 = vpop.f32.mrf.mxu0
  %v2282 = vadd.f32 %v2193, %v2281
  %v2283 = vpop.f32.mrf.mxu0
  %v2284 = vadd.f32 %v2195, %v2283
  %2285 = vmatmul.bf16.gmra.mxu0 %v1989
  %v2286 = vpop.f32.mrf.mxu0
  %v2287 = vadd.f32 %v2198, %v2286
  %v2288 = vpop.f32.mrf.mxu0
  %v2289 = vadd.f32 %v2200, %v2288
  %2290 = vmatmul.bf16.gmra.mxu0 %v1991
  %v2291 = vpop.f32.mrf.mxu0
  %v2292 = vadd.f32 %v2203, %v2291
  %v2293 = vpop.f32.mrf.mxu0
  %v2294 = vadd.f32 %v2205, %v2293
  %2295 = vmatmul.bf16.gmra.mxu0 %v1993
  %v2296 = vpop.f32.mrf.mxu0
  %v2297 = vadd.f32 %v2208, %v2296
  %v2298 = vpop.f32.mrf.mxu0
  %v2299 = vadd.f32 %v2210, %v2298
  %2300 = vmatmul.bf16.gmra.mxu0 %v1995
  %v2301 = vpop.f32.mrf.mxu0
  %v2302 = vadd.f32 %v2213, %v2301
  %v2303 = vpop.f32.mrf.mxu0
  %v2304 = vadd.f32 %v2215, %v2303
  %2305 = vdwg.mxu0
  %v2306 = vmax.f32 %v2227, 0.0
  %v2307 = vmax.f32 %v2229, 0.0
  %v2308 = vmax.f32 %v2232, 0.0
  %v2309 = vmax.f32 %v2234, 0.0
  %v2310 = vmax.f32 %v2237, 0.0
  %v2311 = vmax.f32 %v2239, 0.0
  %v2312 = vmax.f32 %v2242, 0.0
  %v2313 = vmax.f32 %v2244, 0.0
  %v2314 = vmax.f32 %v2247, 0.0
  %v2315 = vmax.f32 %v2249, 0.0
  %v2316 = vmax.f32 %v2252, 0.0
  %v2317 = vmax.f32 %v2254, 0.0
  %v2318 = vmax.f32 %v2257, 0.0
  %v2319 = vmax.f32 %v2259, 0.0
  %v2320 = vmax.f32 %v2262, 0.0
  %v2321 = vmax.f32 %v2264, 0.0
  %v2322 = vmax.f32 %v2267, 0.0
  %v2323 = vmax.f32 %v2269, 0.0
  %v2324 = vmax.f32 %v2272, 0.0
  %v2325 = vmax.f32 %v2274, 0.0
  %v2326 = vmax.f32 %v2277, 0.0
  %v2327 = vmax.f32 %v2279, 0.0
  %v2328 = vmax.f32 %v2282, 0.0
  %v2329 = vmax.f32 %v2284, 0.0
  %v2330 = vmax.f32 %v2287, 0.0
  %v2331 = vmax.f32 %v2289, 0.0
  %v2332 = vmax.f32 %v2292, 0.0
  %v2333 = vmax.f32 %v2294, 0.0
  %v2334 = vmax.f32 %v2297, 0.0
  %v2335 = vmax.f32 %v2299, 0.0
  %v2336 = vmax.f32 %v2302, 0.0
  %v2337 = vmax.f32 %v2304, 0.0
  %v2338 = vpack.c.bf16 %v2307, %v2306
  %v2339 = vpack.c.bf16 %v2309, %v2308
  %v2340 = vpack.c.bf16 %v2311, %v2310
  %v2341 = vpack.c.bf16 %v2313, %v2312
  %v2342 = vpack.c.bf16 %v2315, %v2314
  %v2343 = vpack.c.bf16 %v2317, %v2316
  %v2344 = vpack.c.bf16 %v2319, %v2318
  %v2345 = vpack.c.bf16 %v2321, %v2320
  %v2346 = vpack.c.bf16 %v2323, %v2322
  %v2347 = vpack.c.bf16 %v2325, %v2324
  %v2348 = vpack.c.bf16 %v2327, %v2326
  %v2349 = vpack.c.bf16 %v2329, %v2328
  %v2350 = vpack.c.bf16 %v2331, %v2330
  %v2351 = vpack.c.bf16 %v2333, %v2332
  %v2352 = vpack.c.bf16 %v2335, %v2334
  %v2353 = vpack.c.bf16 %v2337, %v2336
  %v2354 = vld [vmem:[%s11] sm:$0xf]
  %v2355 = vld [vmem:[%s11 + $0x4] sm:$0xf]
  %v2356 = vld [vmem:[%s11 + $0x8] sm:$0xf]
  %v2357 = vld [vmem:[%s11 + $0xc] sm:$0xf]
  %v2358 = vld [vmem:[%s11 + $0x10] sm:$0xf]
  %v2359 = vld [vmem:[%s11 + $0x14] sm:$0xf]
  %v2360 = vld [vmem:[%s11 + $0x18] sm:$0xf]
  %v2361 = vld [vmem:[%s11 + $0x1c] sm:$0xf]
  %v2362 = vld [vmem:[%s11 + $0x20] sm:$0xf]
  %v2363 = vld [vmem:[%s11 + $0x24] sm:$0xf]
  %v2364 = vld [vmem:[%s11 + $0x28] sm:$0xf]
  %v2365 = vld [vmem:[%s11 + $0x2c] sm:$0xf]
  %v2366 = vld [vmem:[%s11 + $0x30] sm:$0xf]
  %v2367 = vld [vmem:[%s11 + $0x34] sm:$0xf]
  %v2368 = vld [vmem:[%s11 + $0x38] sm:$0xf]
  %v2369 = vld [vmem:[%s11 + $0x3c] sm:$0xf]
  %v2370 = vld [vmem:[%s12] sm:$0x1]
  %v2372 = vperm.slane %v2370, 0
  %v2390 = vunpack.c.l.b16 %v2354
  %v2391 = vunpack.c.l.b16 %v2355
  %v2392 = vunpack.c.l.b16 %v2356
  %v2393 = vunpack.c.l.b16 %v2357
  %v2394 = vunpack.c.l.b16 %v2358
  %v2395 = vunpack.c.l.b16 %v2359
  %v2396 = vunpack.c.l.b16 %v2360
  %v2397 = vunpack.c.l.b16 %v2361
  %v2398 = vunpack.c.l.b16 %v2362
  %v2399 = vunpack.c.l.b16 %v2363
  %v2400 = vunpack.c.l.b16 %v2364
  %v2401 = vunpack.c.l.b16 %v2365
  %v2402 = vunpack.c.l.b16 %v2366
  %v2403 = vunpack.c.l.b16 %v2367
  %v2404 = vunpack.c.l.b16 %v2368
  %v2405 = vunpack.c.l.b16 %v2369
  %v2406 = vpack.c.b16 %v2391, %v2390
  %v2407 = vpack.c.b16 %v2393, %v2392
  %v2408 = vpack.c.b16 %v2395, %v2394
  %v2409 = vpack.c.b16 %v2397, %v2396
  %v2410 = vpack.c.b16 %v2399, %v2398
  %v2411 = vpack.c.b16 %v2401, %v2400
  %v2412 = vpack.c.b16 %v2403, %v2402
  %v2413 = vpack.c.b16 %v2405, %v2404
  %2422 = vmatpush.bf16.msra.mxu0 %v2413
  %2423 = vmatpush.bf16.msra.mxu0 %v2412
  %2424 = vmatpush.bf16.msra.mxu0 %v2411
  %2425 = vmatpush.bf16.msra.mxu0 %v2410
  %2426 = vmatpush.bf16.msra.mxu0 %v2409
  %2427 = vmatpush.bf16.msra.mxu0 %v2408
  %2428 = vmatpush.bf16.msra.mxu0 %v2407
  %2429 = vmatpush.bf16.msra.mxu0 %v2406
  %2430 = vmatmul.bf16.gmra.mxu0 %v2338
  %v2431 = vpop.f32.mrf.mxu0
  %v2432 = vadd.f32 %v2372, %v2431
  %v2433 = vpop.f32.mrf.mxu0
  %v2434 = vadd.f32 %v2372, %v2433
  %2435 = vmatmul.bf16.gmra.mxu0 %v2339
  %v2436 = vpop.f32.mrf.mxu0
  %v2437 = vadd.f32 %v2372, %v2436
  %v2438 = vpop.f32.mrf.mxu0
  %v2439 = vadd.f32 %v2372, %v2438
  %2440 = vmatmul.bf16.gmra.mxu0 %v2340
  %v2441 = vpop.f32.mrf.mxu0
  %v2442 = vadd.f32 %v2372, %v2441
  %v2443 = vpop.f32.mrf.mxu0
  %v2444 = vadd.f32 %v2372, %v2443
  %2445 = vmatmul.bf16.gmra.mxu0 %v2341
  %v2446 = vpop.f32.mrf.mxu0
  %v2447 = vadd.f32 %v2372, %v2446
  %v2448 = vpop.f32.mrf.mxu0
  %v2449 = vadd.f32 %v2372, %v2448
  %2450 = vmatmul.bf16.gmra.mxu0 %v2342
  %v2451 = vpop.f32.mrf.mxu0
  %v2452 = vadd.f32 %v2372, %v2451
  %v2453 = vpop.f32.mrf.mxu0
  %v2454 = vadd.f32 %v2372, %v2453
  %2455 = vmatmul.bf16.gmra.mxu0 %v2343
  %v2456 = vpop.f32.mrf.mxu0
  %v2457 = vadd.f32 %v2372, %v2456
  %v2458 = vpop.f32.mrf.mxu0
  %v2459 = vadd.f32 %v2372, %v2458
  %2460 = vmatmul.bf16.gmra.mxu0 %v2344
  %v2461 = vpop.f32.mrf.mxu0
  %v2462 = vadd.f32 %v2372, %v2461
  %v2463 = vpop.f32.mrf.mxu0
  %v2464 = vadd.f32 %v2372, %v2463
  %2465 = vmatmul.bf16.gmra.mxu0 %v2345
  %v2466 = vpop.f32.mrf.mxu0
  %v2467 = vadd.f32 %v2372, %v2466
  %v2468 = vpop.f32.mrf.mxu0
  %v2469 = vadd.f32 %v2372, %v2468
  %2470 = vmatmul.bf16.gmra.mxu0 %v2346
  %v2471 = vpop.f32.mrf.mxu0
  %v2472 = vadd.f32 %v2372, %v2471
  %v2473 = vpop.f32.mrf.mxu0
  %v2474 = vadd.f32 %v2372, %v2473
  %2475 = vmatmul.bf16.gmra.mxu0 %v2347
  %v2476 = vpop.f32.mrf.mxu0
  %v2477 = vadd.f32 %v2372, %v2476
  %v2478 = vpop.f32.mrf.mxu0
  %v2479 = vadd.f32 %v2372, %v2478
  %2480 = vmatmul.bf16.gmra.mxu0 %v2348
  %v2481 = vpop.f32.mrf.mxu0
  %v2482 = vadd.f32 %v2372, %v2481
  %v2483 = vpop.f32.mrf.mxu0
  %v2484 = vadd.f32 %v2372, %v2483
  %2485 = vmatmul.bf16.gmra.mxu0 %v2349
  %v2486 = vpop.f32.mrf.mxu0
  %v2487 = vadd.f32 %v2372, %v2486
  %v2488 = vpop.f32.mrf.mxu0
  %v2489 = vadd.f32 %v2372, %v2488
  %2490 = vmatmul.bf16.gmra.mxu0 %v2350
  %v2491 = vpop.f32.mrf.mxu0
  %v2492 = vadd.f32 %v2372, %v2491
  %v2493 = vpop.f32.mrf.mxu0
  %v2494 = vadd.f32 %v2372, %v2493
  %2495 = vmatmul.bf16.gmra.mxu0 %v2351
  %v2496 = vpop.f32.mrf.mxu0
  %v2497 = vadd.f32 %v2372, %v2496
  %v2498 = vpop.f32.mrf.mxu0
  %v2499 = vadd.f32 %v2372, %v2498
  %2500 = vmatmul.bf16.gmra.mxu0 %v2352
  %v2501 = vpop.f32.mrf.mxu0
  %v2502 = vadd.f32 %v2372, %v2501
  %v2503 = vpop.f32.mrf.mxu0
  %v2504 = vadd.f32 %v2372, %v2503
  %2505 = vmatmul.bf16.gmra.mxu0 %v2353
  %v2506 = vpop.f32.mrf.mxu0
  %v2507 = vadd.f32 %v2372, %v2506
  %v2508 = vpop.f32.mrf.mxu0
  %v2509 = vadd.f32 %v2372, %v2508
  %2510 = vdwg.mxu0
  %v2511 = vxor.u32 %v2432, 2147483648
  %v2512 = vxor.u32 %v2434, 2147483648
  %v2513 = vxor.u32 %v2437, 2147483648
  %v2514 = vxor.u32 %v2439, 2147483648
  %v2515 = vxor.u32 %v2442, 2147483648
  %v2516 = vxor.u32 %v2444, 2147483648
  %v2517 = vxor.u32 %v2447, 2147483648
  %v2518 = vxor.u32 %v2449, 2147483648
  %v2519 = vxor.u32 %v2452, 2147483648
  %v2520 = vxor.u32 %v2454, 2147483648
  %v2521 = vxor.u32 %v2457, 2147483648
  %v2522 = vxor.u32 %v2459, 2147483648
  %v2523 = vxor.u32 %v2462, 2147483648
  %v2524 = vxor.u32 %v2464, 2147483648
  %v2525 = vxor.u32 %v2467, 2147483648
  %v2526 = vxor.u32 %v2469, 2147483648
  %v2527 = vxor.u32 %v2472, 2147483648
  %v2528 = vxor.u32 %v2474, 2147483648
  %v2529 = vxor.u32 %v2477, 2147483648
  %v2530 = vxor.u32 %v2479, 2147483648
  %v2531 = vxor.u32 %v2482, 2147483648
  %v2532 = vxor.u32 %v2484, 2147483648
  %v2533 = vxor.u32 %v2487, 2147483648
  %v2534 = vxor.u32 %v2489, 2147483648
  %v2535 = vxor.u32 %v2492, 2147483648
  %v2536 = vxor.u32 %v2494, 2147483648
  %v2537 = vxor.u32 %v2497, 2147483648
  %v2538 = vxor.u32 %v2499, 2147483648
  %v2539 = vxor.u32 %v2502, 2147483648
  %v2540 = vxor.u32 %v2504, 2147483648
  %v2541 = vxor.u32 %v2507, 2147483648
  %v2542 = vxor.u32 %v2509, 2147483648
  %v2543 = vmul.f32 %v2511, 1.442695
  %v2544 = vpow.pop %v2543
  %v2545 = vmul.f32 %v2512, 1.442695
  %v2546 = vpow.pop %v2545
  %v2547 = vmul.f32 %v2513, 1.442695
  %v2548 = vpow.pop %v2547
  %v2549 = vmul.f32 %v2514, 1.442695
  %v2550 = vpow.pop %v2549
  %v2551 = vmul.f32 %v2515, 1.442695
  %v2552 = vpow.pop %v2551
  %v2553 = vmul.f32 %v2516, 1.442695
  %v2554 = vpow.pop %v2553
  %v2555 = vmul.f32 %v2517, 1.442695
  %v2556 = vpow.pop %v2555
  %v2557 = vmul.f32 %v2518, 1.442695
  %v2558 = vpow.pop %v2557
  %v2559 = vmul.f32 %v2519, 1.442695
  %v2560 = vpow.pop %v2559
  %v2561 = vmul.f32 %v2520, 1.442695
  %v2562 = vpow.pop %v2561
  %v2563 = vmul.f32 %v2521, 1.442695
  %v2564 = vpow.pop %v2563
  %v2565 = vmul.f32 %v2522, 1.442695
  %v2566 = vpow.pop %v2565
  %v2567 = vmul.f32 %v2523, 1.442695
  %v2568 = vpow.pop %v2567
  %v2569 = vmul.f32 %v2524, 1.442695
  %v2570 = vpow.pop %v2569
  %v2571 = vmul.f32 %v2525, 1.442695
  %v2572 = vpow.pop %v2571
  %v2573 = vmul.f32 %v2526, 1.442695
  %v2574 = vpow.pop %v2573
  %v2575 = vmul.f32 %v2527, 1.442695
  %v2576 = vpow.pop %v2575
  %v2577 = vmul.f32 %v2528, 1.442695
  %v2578 = vpow.pop %v2577
  %v2579 = vmul.f32 %v2529, 1.442695
  %v2580 = vpow.pop %v2579
  %v2581 = vmul.f32 %v2530, 1.442695
  %v2582 = vpow.pop %v2581
  %v2583 = vmul.f32 %v2531, 1.442695
  %v2584 = vpow.pop %v2583
  %v2585 = vmul.f32 %v2532, 1.442695
  %v2586 = vpow.pop %v2585
  %v2587 = vmul.f32 %v2533, 1.442695
  %v2588 = vpow.pop %v2587
  %v2589 = vmul.f32 %v2534, 1.442695
  %v2590 = vpow.pop %v2589
  %v2591 = vmul.f32 %v2535, 1.442695
  %v2592 = vpow.pop %v2591
  %v2593 = vmul.f32 %v2536, 1.442695
  %v2594 = vpow.pop %v2593
  %v2595 = vmul.f32 %v2537, 1.442695
  %v2596 = vpow.pop %v2595
  %v2597 = vmul.f32 %v2538, 1.442695
  %v2598 = vpow.pop %v2597
  %v2599 = vmul.f32 %v2539, 1.442695
  %v2600 = vpow.pop %v2599
  %v2601 = vmul.f32 %v2540, 1.442695
  %v2602 = vpow.pop %v2601
  %v2603 = vmul.f32 %v2541, 1.442695
  %v2604 = vpow.pop %v2603
  %v2605 = vmul.f32 %v2542, 1.442695
  %v2606 = vpow.pop %v2605
  %v2607 = vadd.f32 %v2544, 1.0
  %v2608 = vadd.f32 %v2546, 1.0
  %v2609 = vadd.f32 %v2548, 1.0
  %v2610 = vadd.f32 %v2550, 1.0
  %v2611 = vadd.f32 %v2552, 1.0
  %v2612 = vadd.f32 %v2554, 1.0
  %v2613 = vadd.f32 %v2556, 1.0
  %v2614 = vadd.f32 %v2558, 1.0
  %v2615 = vadd.f32 %v2560, 1.0
  %v2616 = vadd.f32 %v2562, 1.0
  %v2617 = vadd.f32 %v2564, 1.0
  %v2618 = vadd.f32 %v2566, 1.0
  %v2619 = vadd.f32 %v2568, 1.0
  %v2620 = vadd.f32 %v2570, 1.0
  %v2621 = vadd.f32 %v2572, 1.0
  %v2622 = vadd.f32 %v2574, 1.0
  %v2623 = vadd.f32 %v2576, 1.0
  %v2624 = vadd.f32 %v2578, 1.0
  %v2625 = vadd.f32 %v2580, 1.0
  %v2626 = vadd.f32 %v2582, 1.0
  %v2627 = vadd.f32 %v2584, 1.0
  %v2628 = vadd.f32 %v2586, 1.0
  %v2629 = vadd.f32 %v2588, 1.0
  %v2630 = vadd.f32 %v2590, 1.0
  %v2631 = vadd.f32 %v2592, 1.0
  %v2632 = vadd.f32 %v2594, 1.0
  %v2633 = vadd.f32 %v2596, 1.0
  %v2634 = vadd.f32 %v2598, 1.0
  %v2635 = vadd.f32 %v2600, 1.0
  %v2636 = vadd.f32 %v2602, 1.0
  %v2637 = vadd.f32 %v2604, 1.0
  %v2638 = vadd.f32 %v2606, 1.0
  %v2639 = vrcp.pop %v2607
  %v2640 = vmul.f32 %v2607, %v2639
  %v2641 = vsub.f32 1.0, %v2640
  %v2642 = vmul.f32 %v2639, %v2641
  %v2643 = vadd.f32 %v2639, %v2642
  %vm2644 = vweird.f32 %v2607
  %vm2645 = vweird.f32 %v2639
  %vm2646 = vmor %vm2644, %vm2645
  %v2647 = vsel %vm2646, %v2639, %v2643
  %v2648 = vand.u32 2147483647, %v2607
  %vm2649 = vcmp.eq.f32.partialorder %v2648, 8.507059e+37
  %v2650 = vand.u32 %v2607, 2147483648
  %v2651 = vor.u32 1.1754944e-38, %v2650
  %v2652 = vsel %vm2649, %v2651, %v2647
  %v2653 = vmul.f32 1.0, %v2652
  %v2654 = vrcp.pop %v2608
  %v2655 = vmul.f32 %v2608, %v2654
  %v2656 = vsub.f32 1.0, %v2655
  %v2657 = vmul.f32 %v2654, %v2656
  %v2658 = vadd.f32 %v2654, %v2657
  %vm2659 = vweird.f32 %v2608
  %vm2660 = vweird.f32 %v2654
  %vm2661 = vmor %vm2659, %vm2660
  %v2662 = vsel %vm2661, %v2654, %v2658
  %v2663 = vand.u32 2147483647, %v2608
  %vm2664 = vcmp.eq.f32.partialorder %v2663, 8.507059e+37
  %v2665 = vand.u32 %v2608, 2147483648
  %v2666 = vor.u32 1.1754944e-38, %v2665
  %v2667 = vsel %vm2664, %v2666, %v2662
  %v2668 = vmul.f32 1.0, %v2667
  %v2669 = vrcp.pop %v2609
  %v2670 = vmul.f32 %v2609, %v2669
  %v2671 = vsub.f32 1.0, %v2670
  %v2672 = vmul.f32 %v2669, %v2671
  %v2673 = vadd.f32 %v2669, %v2672
  %vm2674 = vweird.f32 %v2609
  %vm2675 = vweird.f32 %v2669
  %vm2676 = vmor %vm2674, %vm2675
  %v2677 = vsel %vm2676, %v2669, %v2673
  %v2678 = vand.u32 2147483647, %v2609
  %vm2679 = vcmp.eq.f32.partialorder %v2678, 8.507059e+37
  %v2680 = vand.u32 %v2609, 2147483648
  %v2681 = vor.u32 1.1754944e-38, %v2680
  %v2682 = vsel %vm2679, %v2681, %v2677
  %v2683 = vmul.f32 1.0, %v2682
  %v2684 = vrcp.pop %v2610
  %v2685 = vmul.f32 %v2610, %v2684
  %v2686 = vsub.f32 1.0, %v2685
  %v2687 = vmul.f32 %v2684, %v2686
  %v2688 = vadd.f32 %v2684, %v2687
  %vm2689 = vweird.f32 %v2610
  %vm2690 = vweird.f32 %v2684
  %vm2691 = vmor %vm2689, %vm2690
  %v2692 = vsel %vm2691, %v2684, %v2688
  %v2693 = vand.u32 2147483647, %v2610
  %vm2694 = vcmp.eq.f32.partialorder %v2693, 8.507059e+37
  %v2695 = vand.u32 %v2610, 2147483648
  %v2696 = vor.u32 1.1754944e-38, %v2695
  %v2697 = vsel %vm2694, %v2696, %v2692
  %v2698 = vmul.f32 1.0, %v2697
  %v2699 = vrcp.pop %v2611
  %v2700 = vmul.f32 %v2611, %v2699
  %v2701 = vsub.f32 1.0, %v2700
  %v2702 = vmul.f32 %v2699, %v2701
  %v2703 = vadd.f32 %v2699, %v2702
  %vm2704 = vweird.f32 %v2611
  %vm2705 = vweird.f32 %v2699
  %vm2706 = vmor %vm2704, %vm2705
  %v2707 = vsel %vm2706, %v2699, %v2703
  %v2708 = vand.u32 2147483647, %v2611
  %vm2709 = vcmp.eq.f32.partialorder %v2708, 8.507059e+37
  %v2710 = vand.u32 %v2611, 2147483648
  %v2711 = vor.u32 1.1754944e-38, %v2710
  %v2712 = vsel %vm2709, %v2711, %v2707
  %v2713 = vmul.f32 1.0, %v2712
  %v2714 = vrcp.pop %v2612
  %v2715 = vmul.f32 %v2612, %v2714
  %v2716 = vsub.f32 1.0, %v2715
  %v2717 = vmul.f32 %v2714, %v2716
  %v2718 = vadd.f32 %v2714, %v2717
  %vm2719 = vweird.f32 %v2612
  %vm2720 = vweird.f32 %v2714
  %vm2721 = vmor %vm2719, %vm2720
  %v2722 = vsel %vm2721, %v2714, %v2718
  %v2723 = vand.u32 2147483647, %v2612
  %vm2724 = vcmp.eq.f32.partialorder %v2723, 8.507059e+37
  %v2725 = vand.u32 %v2612, 2147483648
  %v2726 = vor.u32 1.1754944e-38, %v2725
  %v2727 = vsel %vm2724, %v2726, %v2722
  %v2728 = vmul.f32 1.0, %v2727
  %v2729 = vrcp.pop %v2613
  %v2730 = vmul.f32 %v2613, %v2729
  %v2731 = vsub.f32 1.0, %v2730
  %v2732 = vmul.f32 %v2729, %v2731
  %v2733 = vadd.f32 %v2729, %v2732
  %vm2734 = vweird.f32 %v2613
  %vm2735 = vweird.f32 %v2729
  %vm2736 = vmor %vm2734, %vm2735
  %v2737 = vsel %vm2736, %v2729, %v2733
  %v2738 = vand.u32 2147483647, %v2613
  %vm2739 = vcmp.eq.f32.partialorder %v2738, 8.507059e+37
  %v2740 = vand.u32 %v2613, 2147483648
  %v2741 = vor.u32 1.1754944e-38, %v2740
  %v2742 = vsel %vm2739, %v2741, %v2737
  %v2743 = vmul.f32 1.0, %v2742
  %v2744 = vrcp.pop %v2614
  %v2745 = vmul.f32 %v2614, %v2744
  %v2746 = vsub.f32 1.0, %v2745
  %v2747 = vmul.f32 %v2744, %v2746
  %v2748 = vadd.f32 %v2744, %v2747
  %vm2749 = vweird.f32 %v2614
  %vm2750 = vweird.f32 %v2744
  %vm2751 = vmor %vm2749, %vm2750
  %v2752 = vsel %vm2751, %v2744, %v2748
  %v2753 = vand.u32 2147483647, %v2614
  %vm2754 = vcmp.eq.f32.partialorder %v2753, 8.507059e+37
  %v2755 = vand.u32 %v2614, 2147483648
  %v2756 = vor.u32 1.1754944e-38, %v2755
  %v2757 = vsel %vm2754, %v2756, %v2752
  %v2758 = vmul.f32 1.0, %v2757
  %v2759 = vrcp.pop %v2615
  %v2760 = vmul.f32 %v2615, %v2759
  %v2761 = vsub.f32 1.0, %v2760
  %v2762 = vmul.f32 %v2759, %v2761
  %v2763 = vadd.f32 %v2759, %v2762
  %vm2764 = vweird.f32 %v2615
  %vm2765 = vweird.f32 %v2759
  %vm2766 = vmor %vm2764, %vm2765
  %v2767 = vsel %vm2766, %v2759, %v2763
  %v2768 = vand.u32 2147483647, %v2615
  %vm2769 = vcmp.eq.f32.partialorder %v2768, 8.507059e+37
  %v2770 = vand.u32 %v2615, 2147483648
  %v2771 = vor.u32 1.1754944e-38, %v2770
  %v2772 = vsel %vm2769, %v2771, %v2767
  %v2773 = vmul.f32 1.0, %v2772
  %v2774 = vrcp.pop %v2616
  %v2775 = vmul.f32 %v2616, %v2774
  %v2776 = vsub.f32 1.0, %v2775
  %v2777 = vmul.f32 %v2774, %v2776
  %v2778 = vadd.f32 %v2774, %v2777
  %vm2779 = vweird.f32 %v2616
  %vm2780 = vweird.f32 %v2774
  %vm2781 = vmor %vm2779, %vm2780
  %v2782 = vsel %vm2781, %v2774, %v2778
  %v2783 = vand.u32 2147483647, %v2616
  %vm2784 = vcmp.eq.f32.partialorder %v2783, 8.507059e+37
  %v2785 = vand.u32 %v2616, 2147483648
  %v2786 = vor.u32 1.1754944e-38, %v2785
  %v2787 = vsel %vm2784, %v2786, %v2782
  %v2788 = vmul.f32 1.0, %v2787
  %v2789 = vrcp.pop %v2617
  %v2790 = vmul.f32 %v2617, %v2789
  %v2791 = vsub.f32 1.0, %v2790
  %v2792 = vmul.f32 %v2789, %v2791
  %v2793 = vadd.f32 %v2789, %v2792
  %vm2794 = vweird.f32 %v2617
  %vm2795 = vweird.f32 %v2789
  %vm2796 = vmor %vm2794, %vm2795
  %v2797 = vsel %vm2796, %v2789, %v2793
  %v2798 = vand.u32 2147483647, %v2617
  %vm2799 = vcmp.eq.f32.partialorder %v2798, 8.507059e+37
  %v2800 = vand.u32 %v2617, 2147483648
  %v2801 = vor.u32 1.1754944e-38, %v2800
  %v2802 = vsel %vm2799, %v2801, %v2797
  %v2803 = vmul.f32 1.0, %v2802
  %v2804 = vrcp.pop %v2618
  %v2805 = vmul.f32 %v2618, %v2804
  %v2806 = vsub.f32 1.0, %v2805
  %v2807 = vmul.f32 %v2804, %v2806
  %v2808 = vadd.f32 %v2804, %v2807
  %vm2809 = vweird.f32 %v2618
  %vm2810 = vweird.f32 %v2804
  %vm2811 = vmor %vm2809, %vm2810
  %v2812 = vsel %vm2811, %v2804, %v2808
  %v2813 = vand.u32 2147483647, %v2618
  %vm2814 = vcmp.eq.f32.partialorder %v2813, 8.507059e+37
  %v2815 = vand.u32 %v2618, 2147483648
  %v2816 = vor.u32 1.1754944e-38, %v2815
  %v2817 = vsel %vm2814, %v2816, %v2812
  %v2818 = vmul.f32 1.0, %v2817
  %v2819 = vrcp.pop %v2619
  %v2820 = vmul.f32 %v2619, %v2819
  %v2821 = vsub.f32 1.0, %v2820
  %v2822 = vmul.f32 %v2819, %v2821
  %v2823 = vadd.f32 %v2819, %v2822
  %vm2824 = vweird.f32 %v2619
  %vm2825 = vweird.f32 %v2819
  %vm2826 = vmor %vm2824, %vm2825
  %v2827 = vsel %vm2826, %v2819, %v2823
  %v2828 = vand.u32 2147483647, %v2619
  %vm2829 = vcmp.eq.f32.partialorder %v2828, 8.507059e+37
  %v2830 = vand.u32 %v2619, 2147483648
  %v2831 = vor.u32 1.1754944e-38, %v2830
  %v2832 = vsel %vm2829, %v2831, %v2827
  %v2833 = vmul.f32 1.0, %v2832
  %v2834 = vrcp.pop %v2620
  %v2835 = vmul.f32 %v2620, %v2834
  %v2836 = vsub.f32 1.0, %v2835
  %v2837 = vmul.f32 %v2834, %v2836
  %v2838 = vadd.f32 %v2834, %v2837
  %vm2839 = vweird.f32 %v2620
  %vm2840 = vweird.f32 %v2834
  %vm2841 = vmor %vm2839, %vm2840
  %v2842 = vsel %vm2841, %v2834, %v2838
  %v2843 = vand.u32 2147483647, %v2620
  %vm2844 = vcmp.eq.f32.partialorder %v2843, 8.507059e+37
  %v2845 = vand.u32 %v2620, 2147483648
  %v2846 = vor.u32 1.1754944e-38, %v2845
  %v2847 = vsel %vm2844, %v2846, %v2842
  %v2848 = vmul.f32 1.0, %v2847
  %v2849 = vrcp.pop %v2621
  %v2850 = vmul.f32 %v2621, %v2849
  %v2851 = vsub.f32 1.0, %v2850
  %v2852 = vmul.f32 %v2849, %v2851
  %v2853 = vadd.f32 %v2849, %v2852
  %vm2854 = vweird.f32 %v2621
  %vm2855 = vweird.f32 %v2849
  %vm2856 = vmor %vm2854, %vm2855
  %v2857 = vsel %vm2856, %v2849, %v2853
  %v2858 = vand.u32 2147483647, %v2621
  %vm2859 = vcmp.eq.f32.partialorder %v2858, 8.507059e+37
  %v2860 = vand.u32 %v2621, 2147483648
  %v2861 = vor.u32 1.1754944e-38, %v2860
  %v2862 = vsel %vm2859, %v2861, %v2857
  %v2863 = vmul.f32 1.0, %v2862
  %v2864 = vrcp.pop %v2622
  %v2865 = vmul.f32 %v2622, %v2864
  %v2866 = vsub.f32 1.0, %v2865
  %v2867 = vmul.f32 %v2864, %v2866
  %v2868 = vadd.f32 %v2864, %v2867
  %vm2869 = vweird.f32 %v2622
  %vm2870 = vweird.f32 %v2864
  %vm2871 = vmor %vm2869, %vm2870
  %v2872 = vsel %vm2871, %v2864, %v2868
  %v2873 = vand.u32 2147483647, %v2622
  %vm2874 = vcmp.eq.f32.partialorder %v2873, 8.507059e+37
  %v2875 = vand.u32 %v2622, 2147483648
  %v2876 = vor.u32 1.1754944e-38, %v2875
  %v2877 = vsel %vm2874, %v2876, %v2872
  %v2878 = vmul.f32 1.0, %v2877
  %v2879 = vrcp.pop %v2623
  %v2880 = vmul.f32 %v2623, %v2879
  %v2881 = vsub.f32 1.0, %v2880
  %v2882 = vmul.f32 %v2879, %v2881
  %v2883 = vadd.f32 %v2879, %v2882
  %vm2884 = vweird.f32 %v2623
  %vm2885 = vweird.f32 %v2879
  %vm2886 = vmor %vm2884, %vm2885
  %v2887 = vsel %vm2886, %v2879, %v2883
  %v2888 = vand.u32 2147483647, %v2623
  %vm2889 = vcmp.eq.f32.partialorder %v2888, 8.507059e+37
  %v2890 = vand.u32 %v2623, 2147483648
  %v2891 = vor.u32 1.1754944e-38, %v2890
  %v2892 = vsel %vm2889, %v2891, %v2887
  %v2893 = vmul.f32 1.0, %v2892
  %v2894 = vrcp.pop %v2624
  %v2895 = vmul.f32 %v2624, %v2894
  %v2896 = vsub.f32 1.0, %v2895
  %v2897 = vmul.f32 %v2894, %v2896
  %v2898 = vadd.f32 %v2894, %v2897
  %vm2899 = vweird.f32 %v2624
  %vm2900 = vweird.f32 %v2894
  %vm2901 = vmor %vm2899, %vm2900
  %v2902 = vsel %vm2901, %v2894, %v2898
  %v2903 = vand.u32 2147483647, %v2624
  %vm2904 = vcmp.eq.f32.partialorder %v2903, 8.507059e+37
  %v2905 = vand.u32 %v2624, 2147483648
  %v2906 = vor.u32 1.1754944e-38, %v2905
  %v2907 = vsel %vm2904, %v2906, %v2902
  %v2908 = vmul.f32 1.0, %v2907
  %v2909 = vrcp.pop %v2625
  %v2910 = vmul.f32 %v2625, %v2909
  %v2911 = vsub.f32 1.0, %v2910
  %v2912 = vmul.f32 %v2909, %v2911
  %v2913 = vadd.f32 %v2909, %v2912
  %vm2914 = vweird.f32 %v2625
  %vm2915 = vweird.f32 %v2909
  %vm2916 = vmor %vm2914, %vm2915
  %v2917 = vsel %vm2916, %v2909, %v2913
  %v2918 = vand.u32 2147483647, %v2625
  %vm2919 = vcmp.eq.f32.partialorder %v2918, 8.507059e+37
  %v2920 = vand.u32 %v2625, 2147483648
  %v2921 = vor.u32 1.1754944e-38, %v2920
  %v2922 = vsel %vm2919, %v2921, %v2917
  %v2923 = vmul.f32 1.0, %v2922
  %v2924 = vrcp.pop %v2626
  %v2925 = vmul.f32 %v2626, %v2924
  %v2926 = vsub.f32 1.0, %v2925
  %v2927 = vmul.f32 %v2924, %v2926
  %v2928 = vadd.f32 %v2924, %v2927
  %vm2929 = vweird.f32 %v2626
  %vm2930 = vweird.f32 %v2924
  %vm2931 = vmor %vm2929, %vm2930
  %v2932 = vsel %vm2931, %v2924, %v2928
  %v2933 = vand.u32 2147483647, %v2626
  %vm2934 = vcmp.eq.f32.partialorder %v2933, 8.507059e+37
  %v2935 = vand.u32 %v2626, 2147483648
  %v2936 = vor.u32 1.1754944e-38, %v2935
  %v2937 = vsel %vm2934, %v2936, %v2932
  %v2938 = vmul.f32 1.0, %v2937
  %v2939 = vrcp.pop %v2627
  %v2940 = vmul.f32 %v2627, %v2939
  %v2941 = vsub.f32 1.0, %v2940
  %v2942 = vmul.f32 %v2939, %v2941
  %v2943 = vadd.f32 %v2939, %v2942
  %vm2944 = vweird.f32 %v2627
  %vm2945 = vweird.f32 %v2939
  %vm2946 = vmor %vm2944, %vm2945
  %v2947 = vsel %vm2946, %v2939, %v2943
  %v2948 = vand.u32 2147483647, %v2627
  %vm2949 = vcmp.eq.f32.partialorder %v2948, 8.507059e+37
  %v2950 = vand.u32 %v2627, 2147483648
  %v2951 = vor.u32 1.1754944e-38, %v2950
  %v2952 = vsel %vm2949, %v2951, %v2947
  %v2953 = vmul.f32 1.0, %v2952
  %v2954 = vrcp.pop %v2628
  %v2955 = vmul.f32 %v2628, %v2954
  %v2956 = vsub.f32 1.0, %v2955
  %v2957 = vmul.f32 %v2954, %v2956
  %v2958 = vadd.f32 %v2954, %v2957
  %vm2959 = vweird.f32 %v2628
  %vm2960 = vweird.f32 %v2954
  %vm2961 = vmor %vm2959, %vm2960
  %v2962 = vsel %vm2961, %v2954, %v2958
  %v2963 = vand.u32 2147483647, %v2628
  %vm2964 = vcmp.eq.f32.partialorder %v2963, 8.507059e+37
  %v2965 = vand.u32 %v2628, 2147483648
  %v2966 = vor.u32 1.1754944e-38, %v2965
  %v2967 = vsel %vm2964, %v2966, %v2962
  %v2968 = vmul.f32 1.0, %v2967
  %v2969 = vrcp.pop %v2629
  %v2970 = vmul.f32 %v2629, %v2969
  %v2971 = vsub.f32 1.0, %v2970
  %v2972 = vmul.f32 %v2969, %v2971
  %v2973 = vadd.f32 %v2969, %v2972
  %vm2974 = vweird.f32 %v2629
  %vm2975 = vweird.f32 %v2969
  %vm2976 = vmor %vm2974, %vm2975
  %v2977 = vsel %vm2976, %v2969, %v2973
  %v2978 = vand.u32 2147483647, %v2629
  %vm2979 = vcmp.eq.f32.partialorder %v2978, 8.507059e+37
  %v2980 = vand.u32 %v2629, 2147483648
  %v2981 = vor.u32 1.1754944e-38, %v2980
  %v2982 = vsel %vm2979, %v2981, %v2977
  %v2983 = vmul.f32 1.0, %v2982
  %v2984 = vrcp.pop %v2630
  %v2985 = vmul.f32 %v2630, %v2984
  %v2986 = vsub.f32 1.0, %v2985
  %v2987 = vmul.f32 %v2984, %v2986
  %v2988 = vadd.f32 %v2984, %v2987
  %vm2989 = vweird.f32 %v2630
  %vm2990 = vweird.f32 %v2984
  %vm2991 = vmor %vm2989, %vm2990
  %v2992 = vsel %vm2991, %v2984, %v2988
  %v2993 = vand.u32 2147483647, %v2630
  %vm2994 = vcmp.eq.f32.partialorder %v2993, 8.507059e+37
  %v2995 = vand.u32 %v2630, 2147483648
  %v2996 = vor.u32 1.1754944e-38, %v2995
  %v2997 = vsel %vm2994, %v2996, %v2992
  %v2998 = vmul.f32 1.0, %v2997
  %v2999 = vrcp.pop %v2631
  %v3000 = vmul.f32 %v2631, %v2999
  %v3001 = vsub.f32 1.0, %v3000
  %v3002 = vmul.f32 %v2999, %v3001
  %v3003 = vadd.f32 %v2999, %v3002
  %vm3004 = vweird.f32 %v2631
  %vm3005 = vweird.f32 %v2999
  %vm3006 = vmor %vm3004, %vm3005
  %v3007 = vsel %vm3006, %v2999, %v3003
  %v3008 = vand.u32 2147483647, %v2631
  %vm3009 = vcmp.eq.f32.partialorder %v3008, 8.507059e+37
  %v3010 = vand.u32 %v2631, 2147483648
  %v3011 = vor.u32 1.1754944e-38, %v3010
  %v3012 = vsel %vm3009, %v3011, %v3007
  %v3013 = vmul.f32 1.0, %v3012
  %v3014 = vrcp.pop %v2632
  %v3015 = vmul.f32 %v2632, %v3014
  %v3016 = vsub.f32 1.0, %v3015
  %v3017 = vmul.f32 %v3014, %v3016
  %v3018 = vadd.f32 %v3014, %v3017
  %vm3019 = vweird.f32 %v2632
  %vm3020 = vweird.f32 %v3014
  %vm3021 = vmor %vm3019, %vm3020
  %v3022 = vsel %vm3021, %v3014, %v3018
  %v3023 = vand.u32 2147483647, %v2632
  %vm3024 = vcmp.eq.f32.partialorder %v3023, 8.507059e+37
  %v3025 = vand.u32 %v2632, 2147483648
  %v3026 = vor.u32 1.1754944e-38, %v3025
  %v3027 = vsel %vm3024, %v3026, %v3022
  %v3028 = vmul.f32 1.0, %v3027
  %v3029 = vrcp.pop %v2633
  %v3030 = vmul.f32 %v2633, %v3029
  %v3031 = vsub.f32 1.0, %v3030
  %v3032 = vmul.f32 %v3029, %v3031
  %v3033 = vadd.f32 %v3029, %v3032
  %vm3034 = vweird.f32 %v2633
  %vm3035 = vweird.f32 %v3029
  %vm3036 = vmor %vm3034, %vm3035
  %v3037 = vsel %vm3036, %v3029, %v3033
  %v3038 = vand.u32 2147483647, %v2633
  %vm3039 = vcmp.eq.f32.partialorder %v3038, 8.507059e+37
  %v3040 = vand.u32 %v2633, 2147483648
  %v3041 = vor.u32 1.1754944e-38, %v3040
  %v3042 = vsel %vm3039, %v3041, %v3037
  %v3043 = vmul.f32 1.0, %v3042
  %v3044 = vrcp.pop %v2634
  %v3045 = vmul.f32 %v2634, %v3044
  %v3046 = vsub.f32 1.0, %v3045
  %v3047 = vmul.f32 %v3044, %v3046
  %v3048 = vadd.f32 %v3044, %v3047
  %vm3049 = vweird.f32 %v2634
  %vm3050 = vweird.f32 %v3044
  %vm3051 = vmor %vm3049, %vm3050
  %v3052 = vsel %vm3051, %v3044, %v3048
  %v3053 = vand.u32 2147483647, %v2634
  %vm3054 = vcmp.eq.f32.partialorder %v3053, 8.507059e+37
  %v3055 = vand.u32 %v2634, 2147483648
  %v3056 = vor.u32 1.1754944e-38, %v3055
  %v3057 = vsel %vm3054, %v3056, %v3052
  %v3058 = vmul.f32 1.0, %v3057
  %v3059 = vrcp.pop %v2635
  %v3060 = vmul.f32 %v2635, %v3059
  %v3061 = vsub.f32 1.0, %v3060
  %v3062 = vmul.f32 %v3059, %v3061
  %v3063 = vadd.f32 %v3059, %v3062
  %vm3064 = vweird.f32 %v2635
  %vm3065 = vweird.f32 %v3059
  %vm3066 = vmor %vm3064, %vm3065
  %v3067 = vsel %vm3066, %v3059, %v3063
  %v3068 = vand.u32 2147483647, %v2635
  %vm3069 = vcmp.eq.f32.partialorder %v3068, 8.507059e+37
  %v3070 = vand.u32 %v2635, 2147483648
  %v3071 = vor.u32 1.1754944e-38, %v3070
  %v3072 = vsel %vm3069, %v3071, %v3067
  %v3073 = vmul.f32 1.0, %v3072
  %v3074 = vrcp.pop %v2636
  %v3075 = vmul.f32 %v2636, %v3074
  %v3076 = vsub.f32 1.0, %v3075
  %v3077 = vmul.f32 %v3074, %v3076
  %v3078 = vadd.f32 %v3074, %v3077
  %vm3079 = vweird.f32 %v2636
  %vm3080 = vweird.f32 %v3074
  %vm3081 = vmor %vm3079, %vm3080
  %v3082 = vsel %vm3081, %v3074, %v3078
  %v3083 = vand.u32 2147483647, %v2636
  %vm3084 = vcmp.eq.f32.partialorder %v3083, 8.507059e+37
  %v3085 = vand.u32 %v2636, 2147483648
  %v3086 = vor.u32 1.1754944e-38, %v3085
  %v3087 = vsel %vm3084, %v3086, %v3082
  %v3088 = vmul.f32 1.0, %v3087
  %v3089 = vrcp.pop %v2637
  %v3090 = vmul.f32 %v2637, %v3089
  %v3091 = vsub.f32 1.0, %v3090
  %v3092 = vmul.f32 %v3089, %v3091
  %v3093 = vadd.f32 %v3089, %v3092
  %vm3094 = vweird.f32 %v2637
  %vm3095 = vweird.f32 %v3089
  %vm3096 = vmor %vm3094, %vm3095
  %v3097 = vsel %vm3096, %v3089, %v3093
  %v3098 = vand.u32 2147483647, %v2637
  %vm3099 = vcmp.eq.f32.partialorder %v3098, 8.507059e+37
  %v3100 = vand.u32 %v2637, 2147483648
  %v3101 = vor.u32 1.1754944e-38, %v3100
  %v3102 = vsel %vm3099, %v3101, %v3097
  %v3103 = vmul.f32 1.0, %v3102
  %v3104 = vrcp.pop %v2638
  %v3105 = vmul.f32 %v2638, %v3104
  %v3106 = vsub.f32 1.0, %v3105
  %v3107 = vmul.f32 %v3104, %v3106
  %v3108 = vadd.f32 %v3104, %v3107
  %vm3109 = vweird.f32 %v2638
  %vm3110 = vweird.f32 %v3104
  %vm3111 = vmor %vm3109, %vm3110
  %v3112 = vsel %vm3111, %v3104, %v3108
  %v3113 = vand.u32 2147483647, %v2638
  %vm3114 = vcmp.eq.f32.partialorder %v3113, 8.507059e+37
  %v3115 = vand.u32 %v2638, 2147483648
  %v3116 = vor.u32 1.1754944e-38, %v3115
  %v3117 = vsel %vm3114, %v3116, %v3112
  %v3118 = vmul.f32 1.0, %v3117
  %v3119 = vpack.c.bf16 %v2668, %v2653
  %v3120 = vpack.c.bf16 %v2698, %v2683
  %v3121 = vpack.c.bf16 %v2728, %v2713
  %v3122 = vpack.c.bf16 %v2758, %v2743
  %v3123 = vpack.c.bf16 %v2788, %v2773
  %v3124 = vpack.c.bf16 %v2818, %v2803
  %v3125 = vpack.c.bf16 %v2848, %v2833
  %v3126 = vpack.c.bf16 %v2878, %v2863
  %v3127 = vpack.c.bf16 %v2908, %v2893
  %v3128 = vpack.c.bf16 %v2938, %v2923
  %v3129 = vpack.c.bf16 %v2968, %v2953
  %v3130 = vpack.c.bf16 %v2998, %v2983
  %v3131 = vpack.c.bf16 %v3028, %v3013
  %v3132 = vpack.c.bf16 %v3058, %v3043
  %v3133 = vpack.c.bf16 %v3088, %v3073
  %v3134 = vpack.c.bf16 %v3118, %v3103
  %3135 = vmatpush.bf16.xpose.msra.mxu0 %v3126
  %3136 = vmatpush.bf16.xpose.msra.mxu0 %v3125
  %3137 = vmatpush.bf16.xpose.msra.mxu0 %v3124
  %3138 = vmatpush.bf16.xpose.msra.mxu0 %v3123
  %3139 = vmatpush.bf16.xpose.msra.mxu0 %v3122
  %3140 = vmatpush.bf16.xpose.msra.mxu0 %v3121
  %3141 = vmatpush.bf16.xpose.msra.mxu0 %v3120
  %3142 = vmatpush.bf16.xpose.msra.mxu0 %v3119
  %3143 = vmatmul.bf16.gmra.mxu0 1006648320
  %v3144 = vpop.f32.mrf.mxu0
  %v3145 = vadd.f32 0.0, %v3144
  %v3146 = vpop.f32.mrf.mxu0
  %3147 = vdwg.mxu0
  %3148 = vmatpush.bf16.xpose.msra.mxu0 %v3134
  %3149 = vmatpush.bf16.xpose.msra.mxu0 %v3133
  %3150 = vmatpush.bf16.xpose.msra.mxu0 %v3132
  %3151 = vmatpush.bf16.xpose.msra.mxu0 %v3131
  %3152 = vmatpush.bf16.xpose.msra.mxu0 %v3130
  %3153 = vmatpush.bf16.xpose.msra.mxu0 %v3129
  %3154 = vmatpush.bf16.xpose.msra.mxu0 %v3128
  %3155 = vmatpush.bf16.xpose.msra.mxu0 %v3127
  %3156 = vmatmul.bf16.gmra.mxu0 1006648320
  %v3157 = vpop.f32.mrf.mxu0
  %v3158 = vadd.f32 0.0, %v3157
  %v3159 = vpop.f32.mrf.mxu0
  %3160 = vdwg.mxu0
  %3161 = vst [vmem:[%s13] sm:$0xff] %v3145
  %3162 = vst [vmem:[%s13 + $0x8] sm:$0xff] %v3158
  // Predicated region
  $region54: #{net_forward.1} parent=0 // pred_check
    _
  $region55: #{net_forward.1} parent=0 // pred_check_branch
    %3164 = sbr.rel (0) target = $region57
  $region56: #{net_forward.1} parent=0 // pred_region
    _
  $region57: #{net_forward.1} parent=0 // pred_fallthru
    _
  // Predicated region
  $region58: #{net_forward.1} parent=0 // pred_check
    _
  $region59: #{net_forward.1} parent=0 // pred_check_branch
    %3166 = sbr.rel (0) target = $region61
  $region60: #{net_forward.1} parent=0 // pred_region
    _
  $region61: #{net_forward.1} parent=0 // pred_fallthru
    _

</llo_original>
